<compile_context>
chip_gen: v5e
topology: v5e:2x2
jax: 0.10.0
libtpu: 0.0.40
codegen_flags: <defaults>
</compile_context>

<pallas_src>
import functools

import jax
import jax.numpy as jnp
from jax import lax
from jax.experimental import pallas as pl
from jax.experimental.pallas import tpu as pltpu


def _softplus5(x):
    # torch.nn.Softplus(beta=1, threshold=5): x if x > 5 else log1p(exp(x))
    return jnp.where(x > 5.0, x, jnp.log1p(jnp.exp(jnp.minimum(x, 5.0))))


def _round_up(n, m):
    return ((n + m - 1) // m) * m


def chromatin_aware_kernel(p_pad, n_sub, stb,
                           x_ref, wpc1_ref, wtf_ref, wd1_ref,
                           wd2_ref, wc2_ref, wc3_ref, out_ref):

    def run(t, carry):
        r0 = pl.multiple_of(t * stb, stb)
        x = x_ref[pl.ds(r0, stb), :]                         # bf16 (stb, g_pad)

        # Fused first-layer GEMM: [peak_encoder.W | chromatin.L1.W].
        fused = jnp.dot(x, wpc1_ref[...],
                        preferred_element_type=jnp.float32)

        # --- peak_encoder: Softplus(threshold=5)(x @ W_peak), carried in bf16
        #     (W_peak pre-masked by gene_peak_mask at prep time).
        peak = _softplus5(fused[:, :p_pad]).astype(jnp.bfloat16)

        # --- chromatin_model: L3(Softplus(L2(Tanh(L1(x))))) — sigmoid dropped,
        #     gate on the logit sign instead (sigmoid(z) > 0.5  <=>  z > 0).
        h = jnp.tanh(fused[:, p_pad:])
        h = _softplus5(jnp.dot(h.astype(jnp.bfloat16), wc2_ref[...],
                               preferred_element_type=jnp.float32))
        gate = jnp.dot(h.astype(jnp.bfloat16), wc3_ref[...],
                       preferred_element_type=jnp.float32) > 0.0

        # --- chromatin_encoder threshold (0.5) folded into the select (bf16).
        peak_activity = jnp.where(gate, peak, 0).astype(jnp.bfloat16)

        # --- tf_encoder: Softplus(peak_activity @ W_tf)  (W_tf pre-masked).
        tfa = _softplus5(jnp.dot(peak_activity, wtf_ref[...],
                                 preferred_element_type=jnp.float32))

        # --- decoder: Softplus(L2(Softplus(L1(tfa))))
        d = _softplus5(jnp.dot(tfa.astype(jnp.bfloat16), wd1_ref[...],
                               preferred_element_type=jnp.float32))
        out = _softplus5(jnp.dot(d.astype(jnp.bfloat16), wd2_ref[...],
                                 preferred_element_type=jnp.float32))

        out_ref[pl.ds(r0, stb), :] = out.astype(out_ref.dtype)
        return carry

    # Two independent sub-tile chains -> MXU / EUP co-issue.
    lax.fori_loop(0, n_sub, run, 0, unroll=True)


def prepare_weights(params):
    """One-time weight prep: pad to lane-dense tiles, fuse, cast to bf16."""
    g, p = params["w_peak"].shape
    _, k = params["w_tf"].shape
    g_pad = _round_up(g, 128)
    p_pad = _round_up(p, 128)
    k_pad = _round_up(k, 128)

    def _pad2(w, rows, cols):
        r, c = w.shape
        return jnp.pad(w, ((0, rows - r), (0, cols - c)))

    w_peak = _pad2(params["w_peak"], g_pad, p_pad)
    w_c1 = _pad2(params["w_c1"], g_pad, k_pad)
    w_pc1 = jnp.concatenate([w_peak, w_c1], axis=1).astype(jnp.bfloat16)
    w_tf = _pad2(params["w_tf"], p_pad, k_pad).astype(jnp.bfloat16)
    w_d1 = _pad2(params["w_d1"], k_pad, k_pad).astype(jnp.bfloat16)
    w_d2 = _pad2(params["w_d2"], k_pad, g_pad).astype(jnp.bfloat16)
    w_c2 = _pad2(params["w_c2"], k_pad, k_pad).astype(jnp.bfloat16)
    w_c3 = _pad2(params["w_c3"], k_pad, p_pad).astype(jnp.bfloat16)

    weights = (w_pc1, w_tf, w_d1, w_d2, w_c2, w_c3)
    dims = dict(g=g, p=p, k=k, g_pad=g_pad, p_pad=p_pad, k_pad=k_pad)
    return weights, dims


def _vmem_capacity_bytes():
    # Generation-aware VMEM capacity; conservative fallback = v7x (64 MiB/TC).
    try:
        return int(pltpu.get_tpu_info().vmem_capacity_bytes)
    except Exception:
        return 64 * 1024 * 1024


def chromatin_aware_forward(x, weights, dims, *, block_batch=512,
                            out_dtype=jnp.float32):
    B, g = x.shape
    assert g == dims["g"]
    g_pad, p_pad, k_pad = dims["g_pad"], dims["p_pad"], dims["k_pad"]

    weight_bytes = sum(int(w.size) * 2 for w in weights)  # bf16, single-buffered
    vmem_cap = _vmem_capacity_bytes()
    budget = int(vmem_cap * 0.70)
    out_itemsize = jnp.dtype(out_dtype).itemsize

    def tile_bytes(tb):
        # x double-buffer (bf16) + out double-buffer + rough intermediate slabs.
        return (2 * tb * g_pad * 2 + 2 * tb * g_pad * out_itemsize
                + tb * (p_pad + k_pad) * 4 * 3)

    # Batch tile: multiple of 16 (bf16 sublane packing), capped by block_batch,
    # sized so the grid has >= 2 steps when the batch allows (v7x megacore),
    # and shrunk to fit the per-generation VMEM budget.
    B16 = _round_up(B, 16)
    if B16 >= 32:
        TB = min(block_batch, _round_up((B16 + 1) // 2, 16))
    else:
        TB = B16
    while TB > 16 and weight_bytes + tile_bytes(TB) > budget:
        TB = max(16, _round_up(TB // 2, 16))

    B_pad = _round_up(B, TB)
    grid = (B_pad // TB,)

    # In-body sub-tiling: 2 independent chains when the tile is big enough.
    n_sub = 2 if TB >= 32 and TB % 32 == 0 else 1
    stb = TB // n_sub

    x_pad = jnp.pad(x, ((0, B_pad - B), (0, g_pad - g))).astype(jnp.bfloat16)

    # VMEM limit: actual need + headroom, capped well below physical capacity.
    vmem_need = weight_bytes + tile_bytes(TB)
    vmem_limit = min(int(vmem_cap * 0.75),
                     max(2 * vmem_need, 32 * 1024 * 1024))

    # Advisory cost estimate (GEMM flops + transcendental count + bytes).
    flops = 2 * B_pad * (g_pad * (p_pad + k_pad) + k_pad * k_pad
                         + k_pad * p_pad + p_pad * k_pad
                         + k_pad * k_pad + k_pad * g_pad)
    transcendentals = B_pad * (p_pad + g_pad + 4 * k_pad)
    bytes_accessed = (x_pad.size * 2 + weight_bytes
                      + B_pad * g_pad * out_itemsize)

    weight_spec = lambda w: pl.BlockSpec(w.shape, lambda i: (0, 0),
                                         pipeline_mode=pl.Buffered(1))

    out_pad = pl.pallas_call(
        functools.partial(chromatin_aware_kernel, p_pad, n_sub, stb),
        out_shape=jax.ShapeDtypeStruct((B_pad, g_pad), out_dtype),
        grid=grid,
        in_specs=[pl.BlockSpec((TB, g_pad), lambda i: (i, 0))]
                 + [weight_spec(w) for w in weights],
        out_specs=pl.BlockSpec((TB, g_pad), lambda i: (i, 0)),
        compiler_params=pltpu.CompilerParams(
            dimension_semantics=("parallel",),
            vmem_limit_bytes=vmem_limit),
        cost_estimate=pl.CostEstimate(flops=flops,
                                      transcendentals=transcendentals,
                                      bytes_accessed=bytes_accessed),
    )(x_pad, *weights)

    return out_pad[:B, :g]


def reference_forward_bf16(x, params):
    """Pure-JAX reference with identical bf16-matmul / f32-accumulate numerics."""
    def mm(a, w):
        return jnp.dot(a.astype(jnp.bfloat16), w.astype(jnp.bfloat16),
                       preferred_element_type=jnp.float32)
    peak = _softplus5(mm(x, params["w_peak"]))
    h = jnp.tanh(mm(x, params["w_c1"]))
    h = _softplus5(mm(h, params["w_c2"]))
    c = jax.nn.sigmoid(mm(h, params["w_c3"]))
    peak_activity = jnp.where(c > 0.5, peak.astype(jnp.bfloat16), 0.0)
    tfa = _softplus5(mm(peak_activity, params["w_tf"]))
    d = _softplus5(mm(tfa, params["w_d1"]))
    return _softplus5(mm(d, params["w_d2"]))


def reference_forward_f32(x, params):
    """Full-precision eval-mode reference (for sanity only)."""
    peak = _softplus5(x @ params["w_peak"])
    h = jnp.tanh(x @ params["w_c1"])
    h = _softplus5(h @ params["w_c2"])
    c = jax.nn.sigmoid(h @ params["w_c3"])
    peak_activity = jnp.where(c > 0.5, peak, 0.0)
    tfa = _softplus5(peak_activity @ params["w_tf"])
    d = _softplus5(tfa @ params["w_d1"])
    return _softplus5(d @ params["w_d2"])


if __name__ == "__main__":
    # Module-consistent small shapes: g genes, p peaks, k TFs / hidden width.
    # Batch chosen so the batch grid has >1 step (TB=128 -> grid=(2,)).
    B, g, p, k = 256, 32, 64, 16

    key = jax.random.PRNGKey(0)
    keys = jax.random.split(key, 10)

    # Structural prior masks (binary), as in the PyTorch module's masked Linears.
    gene_peak_mask = jax.random.bernoulli(keys[0], 0.3, (g, p)).astype(jnp.float32)
    peak_tf_prior = jax.random.bernoulli(keys[1], 0.3, (p, k)).astype(jnp.float32)

    # Deterministic synthetic parameters, pre-transposed to (in, out).
    params = {
        # peak_encoder Linear(g -> p, bias=False), masked by gene_peak_mask
        "w_peak": (jax.random.normal(keys[2], (g, p)) * 0.1) * gene_peak_mask,
        # tf_encoder Linear(p -> k, bias=False), masked by peak_tf_prior_network
        "w_tf": (jax.random.normal(keys[3], (p, k)) * 0.1) * peak_tf_prior,
        # decoder Linear(k -> k), Linear(k -> g) (bias=False)
        "w_d1": jax.random.normal(keys[4], (k, k)) * 0.1,
        "w_d2": jax.random.normal(keys[5], (k, g)) * 0.1,
        # ChromatinModule: Linear(g -> k), Linear(k -> k), Linear(k -> p)
        # (scale 1.0 so chromatin logits sit robustly away from the threshold)
        "w_c1": jax.random.normal(keys[6], (g, k)),
        "w_c2": jax.random.normal(keys[7], (k, k)),
        "w_c3": jax.random.normal(keys[8], (k, p)),
    }

    x = jax.random.normal(keys[9], (B, g), dtype=jnp.float32)

    # One-time weight preparation (hoisted out of the forward path).
    weights, dims = prepare_weights(params)
    weights = jax.block_until_ready(weights)

    out = jax.block_until_ready(
        chromatin_aware_forward(x, weights, dims, block_batch=128))
    ref_bf16 = reference_forward_bf16(x, params)
    ref_f32 = reference_forward_f32(x, params)  # sanity only (bf16 != f32)

    assert out.shape == (B, g), out.shape
    assert bool(jnp.all(jnp.isfinite(out)))
    # Tight check vs the numerically-equivalent bf16/f32-accumulate reference.
    assert jnp.allclose(out, ref_bf16, atol=1e-3, rtol=1e-3), \
        float(jnp.max(jnp.abs(out - ref_bf16)))
    # Loose sanity vs full f32 reference (bf16 weight rounding explains diff).
    _ = float(jnp.max(jnp.abs(out - ref_f32)))

    print("KERNEL_OK")
</pallas_src>

<mosaic_0001>
module attributes {stable_mosaic.version = 11 : i64} {
  func.func @chromatin_aware_kernel(%arg0: i32, %arg1: memref<128x128xbf16, #tpu.memory_space<vmem>>, %arg2: memref<128x256xbf16, #tpu.memory_space<vmem>>, %arg3: memref<128x128xbf16, #tpu.memory_space<vmem>>, %arg4: memref<128x128xbf16, #tpu.memory_space<vmem>>, %arg5: memref<128x128xbf16, #tpu.memory_space<vmem>>, %arg6: memref<128x128xbf16, #tpu.memory_space<vmem>>, %arg7: memref<128x128xbf16, #tpu.memory_space<vmem>>, %arg8: memref<128x128xf32, #tpu.memory_space<vmem>>) attributes {dimension_semantics = [#tpu.dimension_semantics<parallel>], iteration_bounds = array<i64: 2>, scalar_prefetch = 0 : i64, scratch_operands = 0 : i64, tpu.core_type = #tpu.core_type<tc>, window_params = [{transform_indices = @transform_0, window_bounds = array<i64: 128, 128>}, {pipeline_mode = #tpu.pipeline_mode<synchronous>, transform_indices = @transform_1, window_bounds = array<i64: 128, 256>}, {pipeline_mode = #tpu.pipeline_mode<synchronous>, transform_indices = @transform_2, window_bounds = array<i64: 128, 128>}, {pipeline_mode = #tpu.pipeline_mode<synchronous>, transform_indices = @transform_3, window_bounds = array<i64: 128, 128>}, {pipeline_mode = #tpu.pipeline_mode<synchronous>, transform_indices = @transform_4, window_bounds = array<i64: 128, 128>}, {pipeline_mode = #tpu.pipeline_mode<synchronous>, transform_indices = @transform_5, window_bounds = array<i64: 128, 128>}, {pipeline_mode = #tpu.pipeline_mode<synchronous>, transform_indices = @transform_6, window_bounds = array<i64: 128, 128>}, {transform_indices = @transform_7, window_bounds = array<i64: 128, 128>}]} {
    %c0_i32 = arith.constant 0 : i32
    %c64_i32 = arith.constant 64 : i32
    %0 = arith.muli %c0_i32, %c64_i32 : i32
    %1 = tpu.assume_multiple %0, 64 : i32
    %2 = arith.index_cast %1 : i32 to index
    %c0 = arith.constant 0 : index
    %3 = vector.load %arg1[%2, %c0] : memref<128x128xbf16, #tpu.memory_space<vmem>>, vector<64x128xbf16>
    %c0_0 = arith.constant 0 : index
    %c0_1 = arith.constant 0 : index
    %4 = vector.load %arg2[%c0_0, %c0_1] : memref<128x256xbf16, #tpu.memory_space<vmem>>, vector<128x256xbf16>
    %cst = arith.constant dense<0.000000e+00> : vector<64x256xf32>
    %5 = tpu.matmul %3, %4, %cst {dimension_numbers = #tpu.dot_dimension_numbers<[1], [0], [0], [1], [0, 0, 1, 1], [], []>} : vector<64x128xbf16>, vector<128x256xbf16>, vector<64x256xf32> -> vector<64x256xf32>
    %6 = vector.extract_strided_slice %5 {offsets = [0, 0], sizes = [64, 128], strides = [1, 1]} : vector<64x256xf32> to vector<64x128xf32>
    %cst_2 = arith.constant 5.000000e+00 : f32
    %7 = vector.broadcast %cst_2 : f32 to vector<64x128xf32>
    %8 = arith.cmpf ogt, %6, %7 : vector<64x128xf32>
    %cst_3 = arith.constant 5.000000e+00 : f32
    %9 = vector.broadcast %cst_3 : f32 to vector<64x128xf32>
    %10 = arith.minimumf %6, %9 : vector<64x128xf32>
    %11 = math.exp %10 : vector<64x128xf32>
    %12 = math.log1p %11 : vector<64x128xf32>
    %13 = arith.select %8, %6, %12 : vector<64x128xi1>, vector<64x128xf32>
    %14 = arith.truncf %13 : vector<64x128xf32> to vector<64x128xbf16>
    %15 = vector.extract_strided_slice %5 {offsets = [0, 128], sizes = [64, 128], strides = [1, 1]} : vector<64x256xf32> to vector<64x128xf32>
    %16 = math.tanh %15 : vector<64x128xf32>
    %17 = arith.truncf %16 : vector<64x128xf32> to vector<64x128xbf16>
    %c0_4 = arith.constant 0 : index
    %c0_5 = arith.constant 0 : index
    %18 = vector.load %arg6[%c0_4, %c0_5] : memref<128x128xbf16, #tpu.memory_space<vmem>>, vector<128x128xbf16>
    %cst_6 = arith.constant dense<0.000000e+00> : vector<64x128xf32>
    %19 = tpu.matmul %17, %18, %cst_6 {dimension_numbers = #tpu.dot_dimension_numbers<[1], [0], [0], [1], [0, 0, 1, 1], [], []>} : vector<64x128xbf16>, vector<128x128xbf16>, vector<64x128xf32> -> vector<64x128xf32>
    %cst_7 = arith.constant 5.000000e+00 : f32
    %20 = vector.broadcast %cst_7 : f32 to vector<64x128xf32>
    %21 = arith.cmpf ogt, %19, %20 : vector<64x128xf32>
    %cst_8 = arith.constant 5.000000e+00 : f32
    %22 = vector.broadcast %cst_8 : f32 to vector<64x128xf32>
    %23 = arith.minimumf %19, %22 : vector<64x128xf32>
    %24 = math.exp %23 : vector<64x128xf32>
    %25 = math.log1p %24 : vector<64x128xf32>
    %26 = arith.select %21, %19, %25 : vector<64x128xi1>, vector<64x128xf32>
    %27 = arith.truncf %26 : vector<64x128xf32> to vector<64x128xbf16>
    %c0_9 = arith.constant 0 : index
    %c0_10 = arith.constant 0 : index
    %28 = vector.load %arg7[%c0_9, %c0_10] : memref<128x128xbf16, #tpu.memory_space<vmem>>, vector<128x128xbf16>
    %cst_11 = arith.constant dense<0.000000e+00> : vector<64x128xf32>
    %29 = tpu.matmul %27, %28, %cst_11 {dimension_numbers = #tpu.dot_dimension_numbers<[1], [0], [0], [1], [0, 0, 1, 1], [], []>} : vector<64x128xbf16>, vector<128x128xbf16>, vector<64x128xf32> -> vector<64x128xf32>
    %cst_12 = arith.constant 0.000000e+00 : f32
    %30 = vector.broadcast %cst_12 : f32 to vector<64x128xf32>
    %31 = arith.cmpf ogt, %29, %30 : vector<64x128xf32>
    %c0_i32_13 = arith.constant 0 : i32
    %32 = arith.sitofp %c0_i32_13 : i32 to bf16
    %33 = vector.broadcast %32 : bf16 to vector<64x128xbf16>
    %34 = arith.select %31, %14, %33 : vector<64x128xi1>, vector<64x128xbf16>
    %c0_14 = arith.constant 0 : index
    %c0_15 = arith.constant 0 : index
    %35 = vector.load %arg3[%c0_14, %c0_15] : memref<128x128xbf16, #tpu.memory_space<vmem>>, vector<128x128xbf16>
    %cst_16 = arith.constant dense<0.000000e+00> : vector<64x128xf32>
    %36 = tpu.matmul %34, %35, %cst_16 {dimension_numbers = #tpu.dot_dimension_numbers<[1], [0], [0], [1], [0, 0, 1, 1], [], []>} : vector<64x128xbf16>, vector<128x128xbf16>, vector<64x128xf32> -> vector<64x128xf32>
    %cst_17 = arith.constant 5.000000e+00 : f32
    %37 = vector.broadcast %cst_17 : f32 to vector<64x128xf32>
    %38 = arith.cmpf ogt, %36, %37 : vector<64x128xf32>
    %cst_18 = arith.constant 5.000000e+00 : f32
    %39 = vector.broadcast %cst_18 : f32 to vector<64x128xf32>
    %40 = arith.minimumf %36, %39 : vector<64x128xf32>
    %41 = math.exp %40 : vector<64x128xf32>
    %42 = math.log1p %41 : vector<64x128xf32>
    %43 = arith.select %38, %36, %42 : vector<64x128xi1>, vector<64x128xf32>
    %44 = arith.truncf %43 : vector<64x128xf32> to vector<64x128xbf16>
    %c0_19 = arith.constant 0 : index
    %c0_20 = arith.constant 0 : index
    %45 = vector.load %arg4[%c0_19, %c0_20] : memref<128x128xbf16, #tpu.memory_space<vmem>>, vector<128x128xbf16>
    %cst_21 = arith.constant dense<0.000000e+00> : vector<64x128xf32>
    %46 = tpu.matmul %44, %45, %cst_21 {dimension_numbers = #tpu.dot_dimension_numbers<[1], [0], [0], [1], [0, 0, 1, 1], [], []>} : vector<64x128xbf16>, vector<128x128xbf16>, vector<64x128xf32> -> vector<64x128xf32>
    %cst_22 = arith.constant 5.000000e+00 : f32
    %47 = vector.broadcast %cst_22 : f32 to vector<64x128xf32>
    %48 = arith.cmpf ogt, %46, %47 : vector<64x128xf32>
    %cst_23 = arith.constant 5.000000e+00 : f32
    %49 = vector.broadcast %cst_23 : f32 to vector<64x128xf32>
    %50 = arith.minimumf %46, %49 : vector<64x128xf32>
    %51 = math.exp %50 : vector<64x128xf32>
    %52 = math.log1p %51 : vector<64x128xf32>
    %53 = arith.select %48, %46, %52 : vector<64x128xi1>, vector<64x128xf32>
    %54 = arith.truncf %53 : vector<64x128xf32> to vector<64x128xbf16>
    %c0_24 = arith.constant 0 : index
    %c0_25 = arith.constant 0 : index
    %55 = vector.load %arg5[%c0_24, %c0_25] : memref<128x128xbf16, #tpu.memory_space<vmem>>, vector<128x128xbf16>
    %cst_26 = arith.constant dense<0.000000e+00> : vector<64x128xf32>
    %56 = tpu.matmul %54, %55, %cst_26 {dimension_numbers = #tpu.dot_dimension_numbers<[1], [0], [0], [1], [0, 0, 1, 1], [], []>} : vector<64x128xbf16>, vector<128x128xbf16>, vector<64x128xf32> -> vector<64x128xf32>
    %cst_27 = arith.constant 5.000000e+00 : f32
    %57 = vector.broadcast %cst_27 : f32 to vector<64x128xf32>
    %58 = arith.cmpf ogt, %56, %57 : vector<64x128xf32>
    %cst_28 = arith.constant 5.000000e+00 : f32
    %59 = vector.broadcast %cst_28 : f32 to vector<64x128xf32>
    %60 = arith.minimumf %56, %59 : vector<64x128xf32>
    %61 = math.exp %60 : vector<64x128xf32>
    %62 = math.log1p %61 : vector<64x128xf32>
    %63 = arith.select %58, %56, %62 : vector<64x128xi1>, vector<64x128xf32>
    %64 = arith.index_cast %1 : i32 to index
    %c0_29 = arith.constant 0 : index
    %65 = vector.load %arg8[%64, %c0_29] : memref<128x128xf32, #tpu.memory_space<vmem>>, vector<64x128xf32>
    tpu.vector_store %arg8[%64, %c0_29], %63 {strides = array<i32>} : memref<128x128xf32, #tpu.memory_space<vmem>>, vector<64x128xf32>,
    %c1_i32 = arith.constant 1 : i32
    %c64_i32_30 = arith.constant 64 : i32
    %66 = arith.muli %c1_i32, %c64_i32_30 : i32
    %67 = tpu.assume_multiple %66, 64 : i32
    %68 = arith.index_cast %67 : i32 to index
    %c0_31 = arith.constant 0 : index
    %69 = vector.load %arg1[%68, %c0_31] : memref<128x128xbf16, #tpu.memory_space<vmem>>, vector<64x128xbf16>
    %c0_32 = arith.constant 0 : index
    %c0_33 = arith.constant 0 : index
    %70 = vector.load %arg2[%c0_32, %c0_33] : memref<128x256xbf16, #tpu.memory_space<vmem>>, vector<128x256xbf16>
    %cst_34 = arith.constant dense<0.000000e+00> : vector<64x256xf32>
    %71 = tpu.matmul %69, %70, %cst_34 {dimension_numbers = #tpu.dot_dimension_numbers<[1], [0], [0], [1], [0, 0, 1, 1], [], []>} : vector<64x128xbf16>, vector<128x256xbf16>, vector<64x256xf32> -> vector<64x256xf32>
    %72 = vector.extract_strided_slice %71 {offsets = [0, 0], sizes = [64, 128], strides = [1, 1]} : vector<64x256xf32> to vector<64x128xf32>
    %cst_35 = arith.constant 5.000000e+00 : f32
    %73 = vector.broadcast %cst_35 : f32 to vector<64x128xf32>
    %74 = arith.cmpf ogt, %72, %73 : vector<64x128xf32>
    %cst_36 = arith.constant 5.000000e+00 : f32
    %75 = vector.broadcast %cst_36 : f32 to vector<64x128xf32>
    %76 = arith.minimumf %72, %75 : vector<64x128xf32>
    %77 = math.exp %76 : vector<64x128xf32>
    %78 = math.log1p %77 : vector<64x128xf32>
    %79 = arith.select %74, %72, %78 : vector<64x128xi1>, vector<64x128xf32>
    %80 = arith.truncf %79 : vector<64x128xf32> to vector<64x128xbf16>
    %81 = vector.extract_strided_slice %71 {offsets = [0, 128], sizes = [64, 128], strides = [1, 1]} : vector<64x256xf32> to vector<64x128xf32>
    %82 = math.tanh %81 : vector<64x128xf32>
    %83 = arith.truncf %82 : vector<64x128xf32> to vector<64x128xbf16>
    %c0_37 = arith.constant 0 : index
    %c0_38 = arith.constant 0 : index
    %84 = vector.load %arg6[%c0_37, %c0_38] : memref<128x128xbf16, #tpu.memory_space<vmem>>, vector<128x128xbf16>
    %cst_39 = arith.constant dense<0.000000e+00> : vector<64x128xf32>
    %85 = tpu.matmul %83, %84, %cst_39 {dimension_numbers = #tpu.dot_dimension_numbers<[1], [0], [0], [1], [0, 0, 1, 1], [], []>} : vector<64x128xbf16>, vector<128x128xbf16>, vector<64x128xf32> -> vector<64x128xf32>
    %cst_40 = arith.constant 5.000000e+00 : f32
    %86 = vector.broadcast %cst_40 : f32 to vector<64x128xf32>
    %87 = arith.cmpf ogt, %85, %86 : vector<64x128xf32>
    %cst_41 = arith.constant 5.000000e+00 : f32
    %88 = vector.broadcast %cst_41 : f32 to vector<64x128xf32>
    %89 = arith.minimumf %85, %88 : vector<64x128xf32>
    %90 = math.exp %89 : vector<64x128xf32>
    %91 = math.log1p %90 : vector<64x128xf32>
    %92 = arith.select %87, %85, %91 : vector<64x128xi1>, vector<64x128xf32>
    %93 = arith.truncf %92 : vector<64x128xf32> to vector<64x128xbf16>
    %c0_42 = arith.constant 0 : index
    %c0_43 = arith.constant 0 : index
    %94 = vector.load %arg7[%c0_42, %c0_43] : memref<128x128xbf16, #tpu.memory_space<vmem>>, vector<128x128xbf16>
    %cst_44 = arith.constant dense<0.000000e+00> : vector<64x128xf32>
    %95 = tpu.matmul %93, %94, %cst_44 {dimension_numbers = #tpu.dot_dimension_numbers<[1], [0], [0], [1], [0, 0, 1, 1], [], []>} : vector<64x128xbf16>, vector<128x128xbf16>, vector<64x128xf32> -> vector<64x128xf32>
    %cst_45 = arith.constant 0.000000e+00 : f32
    %96 = vector.broadcast %cst_45 : f32 to vector<64x128xf32>
    %97 = arith.cmpf ogt, %95, %96 : vector<64x128xf32>
    %c0_i32_46 = arith.constant 0 : i32
    %98 = arith.sitofp %c0_i32_46 : i32 to bf16
    %99 = vector.broadcast %98 : bf16 to vector<64x128xbf16>
    %100 = arith.select %97, %80, %99 : vector<64x128xi1>, vector<64x128xbf16>
    %c0_47 = arith.constant 0 : index
    %c0_48 = arith.constant 0 : index
    %101 = vector.load %arg3[%c0_47, %c0_48] : memref<128x128xbf16, #tpu.memory_space<vmem>>, vector<128x128xbf16>
    %cst_49 = arith.constant dense<0.000000e+00> : vector<64x128xf32>
    %102 = tpu.matmul %100, %101, %cst_49 {dimension_numbers = #tpu.dot_dimension_numbers<[1], [0], [0], [1], [0, 0, 1, 1], [], []>} : vector<64x128xbf16>, vector<128x128xbf16>, vector<64x128xf32> -> vector<64x128xf32>
    %cst_50 = arith.constant 5.000000e+00 : f32
    %103 = vector.broadcast %cst_50 : f32 to vector<64x128xf32>
    %104 = arith.cmpf ogt, %102, %103 : vector<64x128xf32>
    %cst_51 = arith.constant 5.000000e+00 : f32
    %105 = vector.broadcast %cst_51 : f32 to vector<64x128xf32>
    %106 = arith.minimumf %102, %105 : vector<64x128xf32>
    %107 = math.exp %106 : vector<64x128xf32>
    %108 = math.log1p %107 : vector<64x128xf32>
    %109 = arith.select %104, %102, %108 : vector<64x128xi1>, vector<64x128xf32>
    %110 = arith.truncf %109 : vector<64x128xf32> to vector<64x128xbf16>
    %c0_52 = arith.constant 0 : index
    %c0_53 = arith.constant 0 : index
    %111 = vector.load %arg4[%c0_52, %c0_53] : memref<128x128xbf16, #tpu.memory_space<vmem>>, vector<128x128xbf16>
    %cst_54 = arith.constant dense<0.000000e+00> : vector<64x128xf32>
    %112 = tpu.matmul %110, %111, %cst_54 {dimension_numbers = #tpu.dot_dimension_numbers<[1], [0], [0], [1], [0, 0, 1, 1], [], []>} : vector<64x128xbf16>, vector<128x128xbf16>, vector<64x128xf32> -> vector<64x128xf32>
    %cst_55 = arith.constant 5.000000e+00 : f32
    %113 = vector.broadcast %cst_55 : f32 to vector<64x128xf32>
    %114 = arith.cmpf ogt, %112, %113 : vector<64x128xf32>
    %cst_56 = arith.constant 5.000000e+00 : f32
    %115 = vector.broadcast %cst_56 : f32 to vector<64x128xf32>
    %116 = arith.minimumf %112, %115 : vector<64x128xf32>
    %117 = math.exp %116 : vector<64x128xf32>
    %118 = math.log1p %117 : vector<64x128xf32>
    %119 = arith.select %114, %112, %118 : vector<64x128xi1>, vector<64x128xf32>
    %120 = arith.truncf %119 : vector<64x128xf32> to vector<64x128xbf16>
    %c0_57 = arith.constant 0 : index
    %c0_58 = arith.constant 0 : index
    %121 = vector.load %arg5[%c0_57, %c0_58] : memref<128x128xbf16, #tpu.memory_space<vmem>>, vector<128x128xbf16>
    %cst_59 = arith.constant dense<0.000000e+00> : vector<64x128xf32>
    %122 = tpu.matmul %120, %121, %cst_59 {dimension_numbers = #tpu.dot_dimension_numbers<[1], [0], [0], [1], [0, 0, 1, 1], [], []>} : vector<64x128xbf16>, vector<128x128xbf16>, vector<64x128xf32> -> vector<64x128xf32>
    %cst_60 = arith.constant 5.000000e+00 : f32
    %123 = vector.broadcast %cst_60 : f32 to vector<64x128xf32>
    %124 = arith.cmpf ogt, %122, %123 : vector<64x128xf32>
    %cst_61 = arith.constant 5.000000e+00 : f32
    %125 = vector.broadcast %cst_61 : f32 to vector<64x128xf32>
    %126 = arith.minimumf %122, %125 : vector<64x128xf32>
    %127 = math.exp %126 : vector<64x128xf32>
    %128 = math.log1p %127 : vector<64x128xf32>
    %129 = arith.select %124, %122, %128 : vector<64x128xi1>, vector<64x128xf32>
    %130 = arith.index_cast %67 : i32 to index
    %c0_62 = arith.constant 0 : index
    %131 = vector.load %arg8[%130, %c0_62] : memref<128x128xf32, #tpu.memory_space<vmem>>, vector<64x128xf32>
    tpu.vector_store %arg8[%130, %c0_62], %129 {strides = array<i32>} : memref<128x128xf32, #tpu.memory_space<vmem>>, vector<64x128xf32>,
    %c2_i32 = arith.constant 2 : i32
    return
  }
  func.func @transform_0(%arg0: i32) -> (i32, i32) {
    %c0_i32 = arith.constant 0 : i32
    %c0_i32_0 = arith.constant 0 : i32
    return %arg0, %c0_i32 : i32, i32
  }
  func.func @transform_1(%arg0: i32) -> (i32, i32) {
    %c0_i32 = arith.constant 0 : i32
    %c0_i32_0 = arith.constant 0 : i32
    %c0_i32_1 = arith.constant 0 : i32
    return %c0_i32, %c0_i32_0 : i32, i32
  }
  func.func @transform_2(%arg0: i32) -> (i32, i32) {
    %c0_i32 = arith.constant 0 : i32
    %c0_i32_0 = arith.constant 0 : i32
    %c0_i32_1 = arith.constant 0 : i32
    return %c0_i32, %c0_i32_0 : i32, i32
  }
  func.func @transform_3(%arg0: i32) -> (i32, i32) {
    %c0_i32 = arith.constant 0 : i32
    %c0_i32_0 = arith.constant 0 : i32
    %c0_i32_1 = arith.constant 0 : i32
    return %c0_i32, %c0_i32_0 : i32, i32
  }
  func.func @transform_4(%arg0: i32) -> (i32, i32) {
    %c0_i32 = arith.constant 0 : i32
    %c0_i32_0 = arith.constant 0 : i32
    %c0_i32_1 = arith.constant 0 : i32
    return %c0_i32, %c0_i32_0 : i32, i32
  }
  func.func @transform_5(%arg0: i32) -> (i32, i32) {
    %c0_i32 = arith.constant 0 : i32
    %c0_i32_0 = arith.constant 0 : i32
    %c0_i32_1 = arith.constant 0 : i32
    return %c0_i32, %c0_i32_0 : i32, i32
  }
  func.func @transform_6(%arg0: i32) -> (i32, i32) {
    %c0_i32 = arith.constant 0 : i32
    %c0_i32_0 = arith.constant 0 : i32
    %c0_i32_1 = arith.constant 0 : i32
    return %c0_i32, %c0_i32_0 : i32, i32
  }
  func.func @transform_7(%arg0: i32) -> (i32, i32) {
    %c0_i32 = arith.constant 0 : i32
    %c0_i32_0 = arith.constant 0 : i32
    return %arg0, %c0_i32 : i32, i32
  }
}

</mosaic_0001>

<llo_original>
// kernel: tpu_custom_call.1
$region0: #{tpu_custom_call.1}
  #allocation0 [shape = 'u32[]', space=smem, size = 0x4, offset = 0x4, fixed_abs, tag = 'smem constant byte address 0x4 - core index']
  #allocation1 [shape = 'u32[72,128]{1,0:T(1,128)}', space=vmem, size = 0x9000, scoped, tag = 'internal scratch']
  %s0 = inlined_call_operand.hbm [shape: bf16[256,128], index: 0, kind: input, shape index: {}]
  %s1 = inlined_call_operand.hbm [shape: bf16[128,256], index: 1, kind: input, shape index: {}]
  %s2 = inlined_call_operand.hbm [shape: bf16[128,128], index: 2, kind: input, shape index: {}]
  %s3 = inlined_call_operand.hbm [shape: bf16[128,128], index: 3, kind: input, shape index: {}]
  %s4 = inlined_call_operand.hbm [shape: bf16[128,128], index: 4, kind: input, shape index: {}]
  %s5 = inlined_call_operand.hbm [shape: bf16[128,128], index: 5, kind: input, shape index: {}]
  %s6 = inlined_call_operand.hbm [shape: bf16[128,128], index: 6, kind: input, shape index: {}]
  %s7 = inlined_call_operand.hbm [shape: f32[256,128], index: 7, kind: output, shape index: {}]
  %s8 = sld [smem:[#allocation0]]
  $region89: #{tpu_custom_call.1} parent=0
    _
  %s10 = ssub.s32 1, %s8
  %s11 = scalar_select 0, %s10, %s8
  $region1: #{tpu_custom_call.1} parent=0
    #allocation2 [shape = 'u8[65536]{0}', space=vmem, size = 0x10000, scoped, tag = 'input window, operand 0']
    #allocation3 [shape = 's32[2]{0}', space=sflag, size = 0x8, scoped, tag = 'scoped memory for tpu_custom_call.1']
    #allocation4 [shape = 's32[2]{0}', space=sflag, size = 0x8, scoped, tag = 'scoped memory for tpu_custom_call.1']
    #allocation5 [shape = 'u8[65536]{0}', space=vmem, size = 0x10000, scoped, tag = 'input window, operand 1, single buffered']
    #allocation6 [shape = 's32[1]{0}', space=sflag, size = 0x4, scoped, tag = 'scoped memory for tpu_custom_call.1']
    #allocation7 [shape = 'u8[32768]{0}', space=vmem, size = 0x8000, scoped, tag = 'input window, operand 2, single buffered']
    #allocation8 [shape = 'u8[32768]{0}', space=vmem, size = 0x8000, scoped, tag = 'input window, operand 3, single buffered']
    #allocation9 [shape = 's32[1]{0}', space=sflag, size = 0x4, scoped, tag = 'scoped memory for tpu_custom_call.1']
    #allocation10 [shape = 'u8[32768]{0}', space=vmem, size = 0x8000, scoped, tag = 'input window, operand 4, single buffered']
    #allocation11 [shape = 'u8[32768]{0}', space=vmem, size = 0x8000, scoped, tag = 'input window, operand 5, single buffered']
    #allocation12 [shape = 's32[1]{0}', space=sflag, size = 0x4, scoped, tag = 'scoped memory for tpu_custom_call.1']
    #allocation13 [shape = 'u8[32768]{0}', space=vmem, size = 0x8000, scoped, tag = 'input window, operand 6, single buffered']
    #allocation14 [shape = 'u8[131072]{0}', space=vmem, size = 0x20000, scoped, tag = 'output window, operand 0']
    %12 = vsyncpa [#allocation3], 0
    %s13 = scalar_lea.sflag [#allocation3], 1
    %14 = vsyncpa %s13, 0
    %15 = vsyncpa [#allocation6], 0
    %16 = vsyncpa [#allocation9], 0
    %17 = vsyncpa [#allocation12], 0
    %18 = vsyncpa [#allocation4], 0
    %s19 = scalar_lea.sflag [#allocation4], 1
    %20 = vsyncpa %s19, 0
    loop: start=0, step=1, limit=4
    $region2: #{tpu_custom_call.1} parent=1 // loop_pre_header
      _
    $region3: #{tpu_custom_call.1} parent=1 // loop_header
      %s22 = sphi 0, %s26
      %p23 = scmp.ge.s32.totalorder %s22, 4
      %s32 = sphi 0, %s34
      %s35 = sphi 0, %s32
      %s36 = sphi 0, %s35
      %s52 = sphi 0, %s36
      %s56 = sphi 0, %s56
      %s58 = sphi 0, %s56
      %s59 = sphi 0, %s58
      %s73 = sphi 0, %s59
      %s77 = sphi 0, %s77
      %s79 = sphi 0, %s77
      %s80 = sphi 0, %s79
      %s94 = sphi 0, %s80
      %s98 = sphi 0, %s98
      %s100 = sphi 0, %s98
      %s101 = sphi 0, %s100
      %s115 = sphi 0, %s101
      %s119 = sphi 0, %s119
      %s121 = sphi 0, %s119
      %s122 = sphi 0, %s121
      %s136 = sphi 0, %s122
      %s140 = sphi 0, %s140
      %s142 = sphi 0, %s140
      %s143 = sphi 0, %s142
      %s157 = sphi 0, %s143
      %s161 = sphi 0, %s161
      %s163 = sphi 0, %s161
      %s164 = sphi 0, %s163
      %s178 = sphi 0, %s164
      %s184 = sphi 0, %s186
      %s187 = sphi 0, %s184
      %s188 = sphi 0, %s187
      %s204 = sphi 0, %s188
    $region4: #{tpu_custom_call.1} parent=1 // loop_header_branch
      %25 = sbr.rel (%p23) target = $region8
    $region5: #{tpu_custom_call.1} parent=1 // loop_body
      %s27 = ssub.s32 %s22, 1
      %s28 = ssub.s32 %s22, 2
      %s29 = sadd.s32 %s22, 1
      %s30 = ssub.s32 %s22, %s29
      %p31 = scmp.eq.s32.totalorder %s30, 0
      %s33 = sadd.s32 %s32, 1
      %s34 = scalar_select %p31, %s32, %s33
      %p37 = pneg %p31
      %p38 = scmp.eq.s32.totalorder %s22, 1
      %p39 = por %p37, %p38
      %p40 = scmp.ne.s32.totalorder %s32, %s35
      %p41 = scmp.eq.s32.totalorder %s22, 0
      %p42 = por %p40, %p41
      %p43 = scmp.ne.s32.totalorder %s32, %s35
      %p44 = scmp.eq.s32.totalorder %s27, 1
      %p45 = por %p43, %p44
      %p46 = scmp.ne.s32.totalorder %s35, %s36
      %p47 = scmp.eq.s32.totalorder %s27, 0
      %p48 = por %p46, %p47
      %p49 = scmp.ne.s32.totalorder %s35, %s36
      %p50 = scmp.eq.s32.totalorder %s28, 1
      %p51 = por %p49, %p50
      %p53 = scmp.ne.s32.totalorder %s36, %s52
      %p54 = scmp.eq.s32.totalorder %s28, 0
      %p55 = por %p53, %p54
      %s57 = sadd.s32 %s56, 1
      %p60 = scmp.eq.s32.totalorder %s22, 1
      %p61 = scmp.ne.s32.totalorder %s56, %s58
      %p62 = scmp.eq.s32.totalorder %s22, 0
      %p63 = por %p61, %p62
      %p64 = scmp.ne.s32.totalorder %s56, %s58
      %p65 = scmp.eq.s32.totalorder %s27, 1
      %p66 = por %p64, %p65
      %p67 = scmp.ne.s32.totalorder %s58, %s59
      %p68 = scmp.eq.s32.totalorder %s27, 0
      %p69 = por %p67, %p68
      %p70 = scmp.ne.s32.totalorder %s58, %s59
      %p71 = scmp.eq.s32.totalorder %s28, 1
      %p72 = por %p70, %p71
      %p74 = scmp.ne.s32.totalorder %s59, %s73
      %p75 = scmp.eq.s32.totalorder %s28, 0
      %p76 = por %p74, %p75
      %s78 = sadd.s32 %s77, 1
      %p81 = scmp.eq.s32.totalorder %s22, 1
      %p82 = scmp.ne.s32.totalorder %s77, %s79
      %p83 = scmp.eq.s32.totalorder %s22, 0
      %p84 = por %p82, %p83
      %p85 = scmp.ne.s32.totalorder %s77, %s79
      %p86 = scmp.eq.s32.totalorder %s27, 1
      %p87 = por %p85, %p86
      %p88 = scmp.ne.s32.totalorder %s79, %s80
      %p89 = scmp.eq.s32.totalorder %s27, 0
      %p90 = por %p88, %p89
      %p91 = scmp.ne.s32.totalorder %s79, %s80
      %p92 = scmp.eq.s32.totalorder %s28, 1
      %p93 = por %p91, %p92
      %p95 = scmp.ne.s32.totalorder %s80, %s94
      %p96 = scmp.eq.s32.totalorder %s28, 0
      %p97 = por %p95, %p96
      %s99 = sadd.s32 %s98, 1
      %p102 = scmp.eq.s32.totalorder %s22, 1
      %p103 = scmp.ne.s32.totalorder %s98, %s100
      %p104 = scmp.eq.s32.totalorder %s22, 0
      %p105 = por %p103, %p104
      %p106 = scmp.ne.s32.totalorder %s98, %s100
      %p107 = scmp.eq.s32.totalorder %s27, 1
      %p108 = por %p106, %p107
      %p109 = scmp.ne.s32.totalorder %s100, %s101
      %p110 = scmp.eq.s32.totalorder %s27, 0
      %p111 = por %p109, %p110
      %p112 = scmp.ne.s32.totalorder %s100, %s101
      %p113 = scmp.eq.s32.totalorder %s28, 1
      %p114 = por %p112, %p113
      %p116 = scmp.ne.s32.totalorder %s101, %s115
      %p117 = scmp.eq.s32.totalorder %s28, 0
      %p118 = por %p116, %p117
      %s120 = sadd.s32 %s119, 1
      %p123 = scmp.eq.s32.totalorder %s22, 1
      %p124 = scmp.ne.s32.totalorder %s119, %s121
      %p125 = scmp.eq.s32.totalorder %s22, 0
      %p126 = por %p124, %p125
      %p127 = scmp.ne.s32.totalorder %s119, %s121
      %p128 = scmp.eq.s32.totalorder %s27, 1
      %p129 = por %p127, %p128
      %p130 = scmp.ne.s32.totalorder %s121, %s122
      %p131 = scmp.eq.s32.totalorder %s27, 0
      %p132 = por %p130, %p131
      %p133 = scmp.ne.s32.totalorder %s121, %s122
      %p134 = scmp.eq.s32.totalorder %s28, 1
      %p135 = por %p133, %p134
      %p137 = scmp.ne.s32.totalorder %s122, %s136
      %p138 = scmp.eq.s32.totalorder %s28, 0
      %p139 = por %p137, %p138
      %s141 = sadd.s32 %s140, 1
      %p144 = scmp.eq.s32.totalorder %s22, 1
      %p145 = scmp.ne.s32.totalorder %s140, %s142
      %p146 = scmp.eq.s32.totalorder %s22, 0
      %p147 = por %p145, %p146
      %p148 = scmp.ne.s32.totalorder %s140, %s142
      %p149 = scmp.eq.s32.totalorder %s27, 1
      %p150 = por %p148, %p149
      %p151 = scmp.ne.s32.totalorder %s142, %s143
      %p152 = scmp.eq.s32.totalorder %s27, 0
      %p153 = por %p151, %p152
      %p154 = scmp.ne.s32.totalorder %s142, %s143
      %p155 = scmp.eq.s32.totalorder %s28, 1
      %p156 = por %p154, %p155
      %p158 = scmp.ne.s32.totalorder %s143, %s157
      %p159 = scmp.eq.s32.totalorder %s28, 0
      %p160 = por %p158, %p159
      %s162 = sadd.s32 %s161, 1
      %p165 = scmp.eq.s32.totalorder %s22, 1
      %p166 = scmp.ne.s32.totalorder %s161, %s163
      %p167 = scmp.eq.s32.totalorder %s22, 0
      %p168 = por %p166, %p167
      %p169 = scmp.ne.s32.totalorder %s161, %s163
      %p170 = scmp.eq.s32.totalorder %s27, 1
      %p171 = por %p169, %p170
      %p172 = scmp.ne.s32.totalorder %s163, %s164
      %p173 = scmp.eq.s32.totalorder %s27, 0
      %p174 = por %p172, %p173
      %p175 = scmp.ne.s32.totalorder %s163, %s164
      %p176 = scmp.eq.s32.totalorder %s28, 1
      %p177 = por %p175, %p176
      %p179 = scmp.ne.s32.totalorder %s164, %s178
      %p180 = scmp.eq.s32.totalorder %s28, 0
      %p181 = por %p179, %p180
      %s182 = ssub.s32 %s22, %s29
      %p183 = scmp.eq.s32.totalorder %s182, 0
      %s185 = sadd.s32 %s184, 1
      %s186 = scalar_select %p183, %s184, %s185
      %p189 = pneg %p183
      %p190 = scmp.eq.s32.totalorder %s22, 1
      %p191 = por %p189, %p190
      %p192 = scmp.ne.s32.totalorder %s184, %s187
      %p193 = scmp.eq.s32.totalorder %s22, 0
      %p194 = por %p192, %p193
      %p195 = scmp.ne.s32.totalorder %s184, %s187
      %p196 = scmp.eq.s32.totalorder %s27, 1
      %p197 = por %p195, %p196
      %p198 = scmp.ne.s32.totalorder %s187, %s188
      %p199 = scmp.eq.s32.totalorder %s27, 0
      %p200 = por %p198, %p199
      %p201 = scmp.ne.s32.totalorder %s187, %s188
      %p202 = scmp.eq.s32.totalorder %s28, 1
      %p203 = por %p201, %p202
      %p205 = scmp.ne.s32.totalorder %s188, %s204
      %p206 = scmp.eq.s32.totalorder %s28, 0
      %p207 = por %p205, %p206
      %p208 = scmp.le.s32.totalorder 1, %s22
      %p209 = scmp.lt.s32.totalorder %s22, 3
      %p210 = pnand %p208, %p209
      %p211 = pneg %p210
      // Predicated region
      $region9: #{tpu_custom_call.1} parent=5 // pred_check
        _
      $region10: #{tpu_custom_call.1} parent=5 // pred_check_branch
        %213 = sbr.rel (%p210) target = $region12
      $region11: #{tpu_custom_call.1} parent=5 // pred_region
        %s214 = ssub.s32 %s22, 1
        // Predicated region
        $region13: #{tpu_custom_call.1} parent=11 // pred_check
          %p215 = pneg %p69
        $region14: #{tpu_custom_call.1} parent=11 // pred_check_branch
          %217 = sbr.rel (%p215) target = $region16
        $region15: #{tpu_custom_call.1} parent=11 // pred_region
          %219 = vsyncadd [#allocation6], 0
          %s220 = sshll.u32 %s1, 4
          %s221 = int_to_ptr.hbm [resolvable:$true] %s220
          %s222 = sshll.u32 [#allocation5], 4
          %s223 = int_to_ptr.vmem [resolvable:$true] %s222
          %228 = dma.hbm_to_vmem [thread:$0]  %s221, 2048, %s223, [#allocation6], 128, 128, 8
        $region16: #{tpu_custom_call.1} parent=11 // pred_fallthru
          _
        // Predicated region
        $region17: #{tpu_custom_call.1} parent=11 // pred_check
          %p229 = pneg %p90
        $region18: #{tpu_custom_call.1} parent=11 // pred_check_branch
          %231 = sbr.rel (%p229) target = $region20
        $region19: #{tpu_custom_call.1} parent=11 // pred_region
          %233 = vsyncadd [#allocation6], 0
          %s234 = sshll.u32 %s2, 4
          %s235 = int_to_ptr.hbm [resolvable:$true] %s234
          %s236 = sshll.u32 [#allocation7], 4
          %s237 = int_to_ptr.vmem [resolvable:$true] %s236
          %242 = dma.hbm_to_vmem [thread:$0]  %s235, 1024, %s237, [#allocation6], 64, 64, 4
        $region20: #{tpu_custom_call.1} parent=11 // pred_fallthru
          _
        // Predicated region
        $region21: #{tpu_custom_call.1} parent=11 // pred_check
          %p243 = pneg %p111
        $region22: #{tpu_custom_call.1} parent=11 // pred_check_branch
          %245 = sbr.rel (%p243) target = $region24
        $region23: #{tpu_custom_call.1} parent=11 // pred_region
          %247 = vsyncadd [#allocation9], 0
          %s248 = sshll.u32 %s3, 4
          %s249 = int_to_ptr.hbm [resolvable:$true] %s248
          %s250 = sshll.u32 [#allocation8], 4
          %s251 = int_to_ptr.vmem [resolvable:$true] %s250
          %256 = dma.hbm_to_vmem [thread:$0]  %s249, 1024, %s251, [#allocation9], 64, 64, 4
        $region24: #{tpu_custom_call.1} parent=11 // pred_fallthru
          _
        // Predicated region
        $region25: #{tpu_custom_call.1} parent=11 // pred_check
          %p257 = pneg %p132
        $region26: #{tpu_custom_call.1} parent=11 // pred_check_branch
          %259 = sbr.rel (%p257) target = $region28
        $region27: #{tpu_custom_call.1} parent=11 // pred_region
          %261 = vsyncadd [#allocation9], 0
          %s262 = sshll.u32 %s4, 4
          %s263 = int_to_ptr.hbm [resolvable:$true] %s262
          %s264 = sshll.u32 [#allocation10], 4
          %s265 = int_to_ptr.vmem [resolvable:$true] %s264
          %270 = dma.hbm_to_vmem [thread:$0]  %s263, 1024, %s265, [#allocation9], 64, 64, 4
        $region28: #{tpu_custom_call.1} parent=11 // pred_fallthru
          _
        // Predicated region
        $region29: #{tpu_custom_call.1} parent=11 // pred_check
          %p271 = pneg %p153
        $region30: #{tpu_custom_call.1} parent=11 // pred_check_branch
          %273 = sbr.rel (%p271) target = $region32
        $region31: #{tpu_custom_call.1} parent=11 // pred_region
          %275 = vsyncadd [#allocation12], 0
          %s276 = sshll.u32 %s5, 4
          %s277 = int_to_ptr.hbm [resolvable:$true] %s276
          %s278 = sshll.u32 [#allocation11], 4
          %s279 = int_to_ptr.vmem [resolvable:$true] %s278
          %284 = dma.hbm_to_vmem [thread:$0]  %s277, 1024, %s279, [#allocation12], 64, 64, 4
        $region32: #{tpu_custom_call.1} parent=11 // pred_fallthru
          _
        // Predicated region
        $region33: #{tpu_custom_call.1} parent=11 // pred_check
          %p285 = pneg %p174
        $region34: #{tpu_custom_call.1} parent=11 // pred_check_branch
          %287 = sbr.rel (%p285) target = $region36
        $region35: #{tpu_custom_call.1} parent=11 // pred_region
          %289 = vsyncadd [#allocation12], 0
          %s290 = sshll.u32 %s6, 4
          %s291 = int_to_ptr.hbm [resolvable:$true] %s290
          %s292 = sshll.u32 [#allocation13], 4
          %s293 = int_to_ptr.vmem [resolvable:$true] %s292
          %298 = dma.hbm_to_vmem [thread:$0]  %s291, 1024, %s293, [#allocation12], 64, 64, 4
        $region36: #{tpu_custom_call.1} parent=11 // pred_fallthru
          _
      $region12: #{tpu_custom_call.1} parent=5 // pred_fallthru
        _
      %p299 = scmp.lt.s32.totalorder %s22, 2
      // Predicated region
      $region37: #{tpu_custom_call.1} parent=5 // pred_check
        %p300 = pneg %p299
      $region38: #{tpu_custom_call.1} parent=5 // pred_check_branch
        %302 = sbr.rel (%p300) target = $region40
      $region39: #{tpu_custom_call.1} parent=5 // pred_region
        // Predicated region
        $region41: #{tpu_custom_call.1} parent=39 // pred_check
          %p303 = pneg %p42
        $region42: #{tpu_custom_call.1} parent=39 // pred_check_branch
          %305 = sbr.rel (%p303) target = $region44
        $region43: #{tpu_custom_call.1} parent=39 // pred_region
          %s306 = sand.u32 %s32, 1
          %s307 = scalar_lea.sflag [#allocation3], %s306
          %s308 = sand.u32 %s32, 1
          %s309 = smul.addr %s308, 64
          %s310 = scalar_lea.vmem [#allocation2], %s309
          %s311 = smul.u32 16, %s22
          %313 = vsyncadd %s307, 0
          %s314 = smul.addr %s311, 4
          %s315 = scalar_lea.hbm %s0, %s314
          %s316 = sshll.u32 %s315, 4
          %s317 = int_to_ptr.hbm [resolvable:$true] %s316
          %s318 = sshll.u32 %s310, 4
          %s319 = int_to_ptr.vmem [resolvable:$true] %s318
          %324 = dma.hbm_to_vmem [thread:$0]  %s317, 1024, %s319, %s307, 64, 64, 4
        $region44: #{tpu_custom_call.1} parent=39 // pred_fallthru
          _
      $region40: #{tpu_custom_call.1} parent=5 // pred_fallthru
        _
      %p325 = scmp.le.s32.totalorder 1, %s22
      %p326 = scmp.lt.s32.totalorder %s22, 3
      %p327 = pnand %p325, %p326
      %p328 = pneg %p327
      // Predicated region
      $region45: #{tpu_custom_call.1} parent=5 // pred_check
        _
      $region46: #{tpu_custom_call.1} parent=5 // pred_check_branch
        %330 = sbr.rel (%p327) target = $region48
      $region47: #{tpu_custom_call.1} parent=5 // pred_region
        %s331 = ssub.s32 %s22, 1
        %s332 = sand.u32 %s35, 1
        %s333 = scalar_lea.sflag [#allocation3], %s332
        %s334 = sand.u32 %s35, 1
        %s335 = smul.addr %s334, 64
        %s336 = scalar_lea.vmem [#allocation2], %s335
        // Predicated region
        $region49: #{tpu_custom_call.1} parent=47 // pred_check
          %p337 = pneg %p48
        $region50: #{tpu_custom_call.1} parent=47 // pred_check_branch
          %339 = sbr.rel (%p337) target = $region52
        $region51: #{tpu_custom_call.1} parent=47 // pred_region
          %341 = dma.done %s333, 1024
        $region52: #{tpu_custom_call.1} parent=47 // pred_fallthru
          _
        // Predicated region
        $region53: #{tpu_custom_call.1} parent=47 // pred_check
          %p342 = pneg %p69
        $region54: #{tpu_custom_call.1} parent=47 // pred_check_branch
          %344 = sbr.rel (%p342) target = $region56
        $region55: #{tpu_custom_call.1} parent=47 // pred_region
          %346 = dma.done [#allocation6], 2048
        $region56: #{tpu_custom_call.1} parent=47 // pred_fallthru
          _
        // Predicated region
        $region57: #{tpu_custom_call.1} parent=47 // pred_check
          %p347 = pneg %p90
        $region58: #{tpu_custom_call.1} parent=47 // pred_check_branch
          %349 = sbr.rel (%p347) target = $region60
        $region59: #{tpu_custom_call.1} parent=47 // pred_region
          %351 = dma.done [#allocation6], 1024
        $region60: #{tpu_custom_call.1} parent=47 // pred_fallthru
          _
        // Predicated region
        $region61: #{tpu_custom_call.1} parent=47 // pred_check
          %p352 = pneg %p111
        $region62: #{tpu_custom_call.1} parent=47 // pred_check_branch
          %354 = sbr.rel (%p352) target = $region64
        $region63: #{tpu_custom_call.1} parent=47 // pred_region
          %356 = dma.done [#allocation9], 1024
        $region64: #{tpu_custom_call.1} parent=47 // pred_fallthru
          _
        // Predicated region
        $region65: #{tpu_custom_call.1} parent=47 // pred_check
          %p357 = pneg %p132
        $region66: #{tpu_custom_call.1} parent=47 // pred_check_branch
          %359 = sbr.rel (%p357) target = $region68
        $region67: #{tpu_custom_call.1} parent=47 // pred_region
          %361 = dma.done [#allocation9], 1024
        $region68: #{tpu_custom_call.1} parent=47 // pred_fallthru
          _
        // Predicated region
        $region69: #{tpu_custom_call.1} parent=47 // pred_check
          %p362 = pneg %p153
        $region70: #{tpu_custom_call.1} parent=47 // pred_check_branch
          %364 = sbr.rel (%p362) target = $region72
        $region71: #{tpu_custom_call.1} parent=47 // pred_region
          %366 = dma.done [#allocation12], 1024
        $region72: #{tpu_custom_call.1} parent=47 // pred_fallthru
          _
        // Predicated region
        $region73: #{tpu_custom_call.1} parent=47 // pred_check
          %p367 = pneg %p174
        $region74: #{tpu_custom_call.1} parent=47 // pred_check_branch
          %369 = sbr.rel (%p367) target = $region76
        $region75: #{tpu_custom_call.1} parent=47 // pred_region
          %371 = dma.done [#allocation12], 1024
        $region76: #{tpu_custom_call.1} parent=47 // pred_fallthru
          _
        %s372 = sand.u32 %s35, 1
        %s373 = scalar_lea.sflag [#allocation3], %s372
        %s374 = sand.u32 %s35, 1
        %s375 = smul.addr %s374, 64
        %s376 = scalar_lea.vmem [#allocation2], %s375
        %p377 = pneg %p48
        %p378 = pneg %p45
        %p379 = pneg %p69
        %p380 = pneg %p66
        %p381 = pneg %p90
        %p382 = pneg %p87
        %p383 = pneg %p111
        %p384 = pneg %p108
        %p385 = pneg %p132
        %p386 = pneg %p129
        %p387 = pneg %p153
        %p388 = pneg %p150
        %p389 = pneg %p174
        %p390 = pneg %p171
        %p391 = pneg %p200
        %p392 = pneg %p197
        %s393 = sand.u32 %s187, 1
        %s394 = scalar_lea.sflag [#allocation4], %s393
        %s395 = sand.u32 %s187, 1
        %s396 = smul.addr %s395, 128
        %s397 = scalar_lea.vmem [#allocation14], %s396
        %s398 = smul.u32 16, %s27
        %s399 = smul.u32 16, %s27
        %v401 = vld [vmem:[%s336] sm:$0xf]
        %v402 = vld [vmem:[%s336 + $0x4] sm:$0xf]
        %v403 = vld [vmem:[%s336 + $0x8] sm:$0xf]
        %v404 = vld [vmem:[%s336 + $0xc] sm:$0xf]
        %v405 = vld [vmem:[%s336 + $0x10] sm:$0xf]
        %v406 = vld [vmem:[%s336 + $0x14] sm:$0xf]
        %v407 = vld [vmem:[%s336 + $0x18] sm:$0xf]
        %v408 = vld [vmem:[%s336 + $0x1c] sm:$0xf]
        %v409 = vld [vmem:[#allocation5] sm:$0xff]
        %v410 = vld [vmem:[#allocation5 + $0x8] sm:$0xff]
        %v411 = vld [vmem:[#allocation5 + $0x10] sm:$0xff]
        %v412 = vld [vmem:[#allocation5 + $0x18] sm:$0xff]
        %v413 = vld [vmem:[#allocation5 + $0x20] sm:$0xff]
        %v414 = vld [vmem:[#allocation5 + $0x28] sm:$0xff]
        %v415 = vld [vmem:[#allocation5 + $0x30] sm:$0xff]
        %v416 = vld [vmem:[#allocation5 + $0x38] sm:$0xff]
        %v417 = vld [vmem:[#allocation5 + $0x40] sm:$0xff]
        %v418 = vld [vmem:[#allocation5 + $0x48] sm:$0xff]
        %v419 = vld [vmem:[#allocation5 + $0x50] sm:$0xff]
        %v420 = vld [vmem:[#allocation5 + $0x58] sm:$0xff]
        %v421 = vld [vmem:[#allocation5 + $0x60] sm:$0xff]
        %v422 = vld [vmem:[#allocation5 + $0x68] sm:$0xff]
        %v423 = vld [vmem:[#allocation5 + $0x70] sm:$0xff]
        %v424 = vld [vmem:[#allocation5 + $0x78] sm:$0xff]
        %v433 = vunpack.c.l.b16 %v401
        %v434 = vunpack.c.l.b16 %v402
        %v435 = vunpack.c.l.b16 %v403
        %v436 = vunpack.c.l.b16 %v404
        %v437 = vunpack.c.l.b16 %v405
        %v438 = vunpack.c.l.b16 %v406
        %v439 = vunpack.c.l.b16 %v407
        %v440 = vunpack.c.l.b16 %v408
        %v441 = vpack.c.b16 %v434, %v433
        %v442 = vpack.c.b16 %v436, %v435
        %v443 = vpack.c.b16 %v438, %v437
        %v444 = vpack.c.b16 %v440, %v439
        %v465 = vunpack.c.l.b16 %v409
        %v466 = vunpack.c.h.b16 %v409
        %v467 = vunpack.c.l.b16 %v410
        %v468 = vunpack.c.h.b16 %v410
        %v469 = vunpack.c.l.b16 %v411
        %v470 = vunpack.c.h.b16 %v411
        %v471 = vunpack.c.l.b16 %v412
        %v472 = vunpack.c.h.b16 %v412
        %v473 = vunpack.c.l.b16 %v413
        %v474 = vunpack.c.h.b16 %v413
        %v475 = vunpack.c.l.b16 %v414
        %v476 = vunpack.c.h.b16 %v414
        %v477 = vunpack.c.l.b16 %v415
        %v478 = vunpack.c.h.b16 %v415
        %v479 = vunpack.c.l.b16 %v416
        %v480 = vunpack.c.h.b16 %v416
        %v481 = vunpack.c.l.b16 %v417
        %v482 = vunpack.c.h.b16 %v417
        %v483 = vunpack.c.l.b16 %v418
        %v484 = vunpack.c.h.b16 %v418
        %v485 = vunpack.c.l.b16 %v419
        %v486 = vunpack.c.h.b16 %v419
        %v487 = vunpack.c.l.b16 %v420
        %v488 = vunpack.c.h.b16 %v420
        %v489 = vunpack.c.l.b16 %v421
        %v490 = vunpack.c.h.b16 %v421
        %v491 = vunpack.c.l.b16 %v422
        %v492 = vunpack.c.h.b16 %v422
        %v493 = vunpack.c.l.b16 %v423
        %v494 = vunpack.c.h.b16 %v423
        %v495 = vunpack.c.l.b16 %v424
        %v496 = vunpack.c.h.b16 %v424
        %v497 = vpack.c.b16 %v467, %v465
        %v498 = vpack.c.b16 %v468, %v466
        %v499 = vpack.c.b16 %v471, %v469
        %v500 = vpack.c.b16 %v472, %v470
        %v501 = vpack.c.b16 %v475, %v473
        %v502 = vpack.c.b16 %v476, %v474
        %v503 = vpack.c.b16 %v479, %v477
        %v504 = vpack.c.b16 %v480, %v478
        %v505 = vpack.c.b16 %v483, %v481
        %v506 = vpack.c.b16 %v484, %v482
        %v507 = vpack.c.b16 %v487, %v485
        %v508 = vpack.c.b16 %v488, %v486
        %v509 = vpack.c.b16 %v491, %v489
        %v510 = vpack.c.b16 %v492, %v490
        %v511 = vpack.c.b16 %v495, %v493
        %v512 = vpack.c.b16 %v496, %v494
        %529 = vmatpush.bf16.msra.mxu0 %v511
        %530 = vmatpush.bf16.msra.mxu0 %v509
        %531 = vmatpush.bf16.msra.mxu0 %v507
        %532 = vmatpush.bf16.msra.mxu0 %v505
        %533 = vmatpush.bf16.msra.mxu0 %v503
        %534 = vmatpush.bf16.msra.mxu0 %v501
        %535 = vmatpush.bf16.msra.mxu0 %v499
        %536 = vmatpush.bf16.msra.mxu0 %v497
        %537 = vmatmul.bf16.gmra.mxu0 %v441
        %v538 = vpop.f32.mrf.mxu0
        %v539 = vadd.f32 0.0, %v538
        %v540 = vpop.f32.mrf.mxu0
        %v541 = vadd.f32 0.0, %v540
        %542 = vmatmul.bf16.gmra.mxu0 %v442
        %v543 = vpop.f32.mrf.mxu0
        %v544 = vadd.f32 0.0, %v543
        %v545 = vpop.f32.mrf.mxu0
        %v546 = vadd.f32 0.0, %v545
        %547 = vmatmul.bf16.gmra.mxu0 %v443
        %v548 = vpop.f32.mrf.mxu0
        %v549 = vadd.f32 0.0, %v548
        %v550 = vpop.f32.mrf.mxu0
        %v551 = vadd.f32 0.0, %v550
        %552 = vmatmul.bf16.gmra.mxu0 %v444
        %v553 = vpop.f32.mrf.mxu0
        %v554 = vadd.f32 0.0, %v553
        %v555 = vpop.f32.mrf.mxu0
        %v556 = vadd.f32 0.0, %v555
        %557 = vdwg.mxu0
        %558 = vmatpush.bf16.msra.mxu0 %v512
        %559 = vmatpush.bf16.msra.mxu0 %v510
        %560 = vmatpush.bf16.msra.mxu0 %v508
        %561 = vmatpush.bf16.msra.mxu0 %v506
        %562 = vmatpush.bf16.msra.mxu0 %v504
        %563 = vmatpush.bf16.msra.mxu0 %v502
        %564 = vmatpush.bf16.msra.mxu0 %v500
        %565 = vmatpush.bf16.msra.mxu0 %v498
        %566 = vmatmul.bf16.gmra.mxu0 %v441
        %v567 = vpop.f32.mrf.mxu0
        %v568 = vadd.f32 0.0, %v567
        %v569 = vpop.f32.mrf.mxu0
        %v570 = vadd.f32 0.0, %v569
        %571 = vmatmul.bf16.gmra.mxu0 %v442
        %v572 = vpop.f32.mrf.mxu0
        %v573 = vadd.f32 0.0, %v572
        %v574 = vpop.f32.mrf.mxu0
        %v575 = vadd.f32 0.0, %v574
        %576 = vmatmul.bf16.gmra.mxu0 %v443
        %v577 = vpop.f32.mrf.mxu0
        %v578 = vadd.f32 0.0, %v577
        %v579 = vpop.f32.mrf.mxu0
        %v580 = vadd.f32 0.0, %v579
        %581 = vmatmul.bf16.gmra.mxu0 %v444
        %v582 = vpop.f32.mrf.mxu0
        %v583 = vadd.f32 0.0, %v582
        %v584 = vpop.f32.mrf.mxu0
        %v585 = vadd.f32 0.0, %v584
        %586 = vdwg.mxu0
        %vm587 = vcmp.gt.f32.partialorder %v539, 5.0
        %vm588 = vcmp.gt.f32.partialorder %v541, 5.0
        %vm589 = vcmp.gt.f32.partialorder %v544, 5.0
        %vm590 = vcmp.gt.f32.partialorder %v546, 5.0
        %vm591 = vcmp.gt.f32.partialorder %v549, 5.0
        %vm592 = vcmp.gt.f32.partialorder %v551, 5.0
        %vm593 = vcmp.gt.f32.partialorder %v554, 5.0
        %vm594 = vcmp.gt.f32.partialorder %v556, 5.0
        %v595 = vmin.f32 %v539, 5.0
        %v596 = vmin.f32 %v541, 5.0
        %v597 = vmin.f32 %v544, 5.0
        %v598 = vmin.f32 %v546, 5.0
        %v599 = vmin.f32 %v549, 5.0
        %v600 = vmin.f32 %v551, 5.0
        %v601 = vmin.f32 %v554, 5.0
        %v602 = vmin.f32 %v556, 5.0
        %v603 = vmul.f32 %v595, 1.442695
        %v604 = vpow.pop %v603
        %v605 = vmul.f32 %v596, 1.442695
        %v606 = vpow.pop %v605
        %v607 = vmul.f32 %v597, 1.442695
        %v608 = vpow.pop %v607
        %v609 = vmul.f32 %v598, 1.442695
        %v610 = vpow.pop %v609
        %v611 = vmul.f32 %v599, 1.442695
        %v612 = vpow.pop %v611
        %v613 = vmul.f32 %v600, 1.442695
        %v614 = vpow.pop %v613
        %v615 = vmul.f32 %v601, 1.442695
        %v616 = vpow.pop %v615
        %v617 = vmul.f32 %v602, 1.442695
        %v618 = vpow.pop %v617
        %v619 = vadd.f32 %v604, 1.0
        %v620 = vlog2.pop %v619
        %v621 = vmul.f32 %v620, 0.6931472
        %v622 = vmul.f32 -0.5, %v604
        %v623 = vadd.f32 %v622, 1.0
        %v624 = vmul.f32 %v623, %v604
        %v625 = vand.u32 2147483647, %v604
        %vm626 = vcmp.lt.f32.partialorder %v625, 0.0004427343
        %v627 = vsel %vm626, %v624, %v621
        %v628 = vadd.f32 %v606, 1.0
        %v629 = vlog2.pop %v628
        %v630 = vmul.f32 %v629, 0.6931472
        %v631 = vmul.f32 -0.5, %v606
        %v632 = vadd.f32 %v631, 1.0
        %v633 = vmul.f32 %v632, %v606
        %v634 = vand.u32 2147483647, %v606
        %vm635 = vcmp.lt.f32.partialorder %v634, 0.0004427343
        %v636 = vsel %vm635, %v633, %v630
        %v637 = vadd.f32 %v608, 1.0
        %v638 = vlog2.pop %v637
        %v639 = vmul.f32 %v638, 0.6931472
        %v640 = vmul.f32 -0.5, %v608
        %v641 = vadd.f32 %v640, 1.0
        %v642 = vmul.f32 %v641, %v608
        %v643 = vand.u32 2147483647, %v608
        %vm644 = vcmp.lt.f32.partialorder %v643, 0.0004427343
        %v645 = vsel %vm644, %v642, %v639
        %v646 = vadd.f32 %v610, 1.0
        %v647 = vlog2.pop %v646
        %v648 = vmul.f32 %v647, 0.6931472
        %v649 = vmul.f32 -0.5, %v610
        %v650 = vadd.f32 %v649, 1.0
        %v651 = vmul.f32 %v650, %v610
        %v652 = vand.u32 2147483647, %v610
        %vm653 = vcmp.lt.f32.partialorder %v652, 0.0004427343
        %v654 = vsel %vm653, %v651, %v648
        %v655 = vadd.f32 %v612, 1.0
        %v656 = vlog2.pop %v655
        %v657 = vmul.f32 %v656, 0.6931472
        %v658 = vmul.f32 -0.5, %v612
        %v659 = vadd.f32 %v658, 1.0
        %v660 = vmul.f32 %v659, %v612
        %v661 = vand.u32 2147483647, %v612
        %vm662 = vcmp.lt.f32.partialorder %v661, 0.0004427343
        %v663 = vsel %vm662, %v660, %v657
        %v664 = vadd.f32 %v614, 1.0
        %v665 = vlog2.pop %v664
        %v666 = vmul.f32 %v665, 0.6931472
        %v667 = vmul.f32 -0.5, %v614
        %v668 = vadd.f32 %v667, 1.0
        %v669 = vmul.f32 %v668, %v614
        %v670 = vand.u32 2147483647, %v614
        %vm671 = vcmp.lt.f32.partialorder %v670, 0.0004427343
        %v672 = vsel %vm671, %v669, %v666
        %v673 = vadd.f32 %v616, 1.0
        %v674 = vlog2.pop %v673
        %v675 = vmul.f32 %v674, 0.6931472
        %v676 = vmul.f32 -0.5, %v616
        %v677 = vadd.f32 %v676, 1.0
        %v678 = vmul.f32 %v677, %v616
        %v679 = vand.u32 2147483647, %v616
        %vm680 = vcmp.lt.f32.partialorder %v679, 0.0004427343
        %v681 = vsel %vm680, %v678, %v675
        %v682 = vadd.f32 %v618, 1.0
        %v683 = vlog2.pop %v682
        %v684 = vmul.f32 %v683, 0.6931472
        %v685 = vmul.f32 -0.5, %v618
        %v686 = vadd.f32 %v685, 1.0
        %v687 = vmul.f32 %v686, %v618
        %v688 = vand.u32 2147483647, %v618
        %vm689 = vcmp.lt.f32.partialorder %v688, 0.0004427343
        %v690 = vsel %vm689, %v687, %v684
        %v691 = vsel %vm587, %v539, %v627
        %v692 = vsel %vm588, %v541, %v636
        %v693 = vsel %vm589, %v544, %v645
        %v694 = vsel %vm590, %v546, %v654
        %v695 = vsel %vm591, %v549, %v663
        %v696 = vsel %vm592, %v551, %v672
        %v697 = vsel %vm593, %v554, %v681
        %v698 = vsel %vm594, %v556, %v690
        %v699 = vpack.c.bf16 %v691, %v691
        %v700 = vpack.c.bf16 %v692, %v692
        %v701 = vpack.c.bf16 %v693, %v693
        %v702 = vpack.c.bf16 %v694, %v694
        %v703 = vpack.c.bf16 %v695, %v695
        %v704 = vpack.c.bf16 %v696, %v696
        %v705 = vpack.c.bf16 %v697, %v697
        %v706 = vpack.c.bf16 %v698, %v698
        %v707 = vtanh.pop %v568
        %v708 = vtanh.pop %v570
        %v709 = vtanh.pop %v573
        %v710 = vtanh.pop %v575
        %v711 = vtanh.pop %v578
        %v712 = vtanh.pop %v580
        %v713 = vtanh.pop %v583
        %v714 = vtanh.pop %v585
        %v715 = vpack.c.bf16 %v708, %v707
        %v716 = vpack.c.bf16 %v710, %v709
        %v717 = vpack.c.bf16 %v712, %v711
        %v718 = vpack.c.bf16 %v714, %v713
        %v719 = vld [vmem:[#allocation11] sm:$0xf]
        %v720 = vld [vmem:[#allocation11 + $0x4] sm:$0xf]
        %v721 = vld [vmem:[#allocation11 + $0x8] sm:$0xf]
        %v722 = vld [vmem:[#allocation11 + $0xc] sm:$0xf]
        %v723 = vld [vmem:[#allocation11 + $0x10] sm:$0xf]
        %v724 = vld [vmem:[#allocation11 + $0x14] sm:$0xf]
        %v725 = vld [vmem:[#allocation11 + $0x18] sm:$0xf]
        %v726 = vld [vmem:[#allocation11 + $0x1c] sm:$0xf]
        %v727 = vld [vmem:[#allocation11 + $0x20] sm:$0xf]
        %v728 = vld [vmem:[#allocation11 + $0x24] sm:$0xf]
        %v729 = vld [vmem:[#allocation11 + $0x28] sm:$0xf]
        %v730 = vld [vmem:[#allocation11 + $0x2c] sm:$0xf]
        %v731 = vld [vmem:[#allocation11 + $0x30] sm:$0xf]
        %v732 = vld [vmem:[#allocation11 + $0x34] sm:$0xf]
        %v733 = vld [vmem:[#allocation11 + $0x38] sm:$0xf]
        %v734 = vld [vmem:[#allocation11 + $0x3c] sm:$0xf]
        %v751 = vunpack.c.l.b16 %v719
        %v752 = vunpack.c.l.b16 %v720
        %v753 = vunpack.c.l.b16 %v721
        %v754 = vunpack.c.l.b16 %v722
        %v755 = vunpack.c.l.b16 %v723
        %v756 = vunpack.c.l.b16 %v724
        %v757 = vunpack.c.l.b16 %v725
        %v758 = vunpack.c.l.b16 %v726
        %v759 = vunpack.c.l.b16 %v727
        %v760 = vunpack.c.l.b16 %v728
        %v761 = vunpack.c.l.b16 %v729
        %v762 = vunpack.c.l.b16 %v730
        %v763 = vunpack.c.l.b16 %v731
        %v764 = vunpack.c.l.b16 %v732
        %v765 = vunpack.c.l.b16 %v733
        %v766 = vunpack.c.l.b16 %v734
        %v767 = vpack.c.b16 %v752, %v751
        %v768 = vpack.c.b16 %v754, %v753
        %v769 = vpack.c.b16 %v756, %v755
        %v770 = vpack.c.b16 %v758, %v757
        %v771 = vpack.c.b16 %v760, %v759
        %v772 = vpack.c.b16 %v762, %v761
        %v773 = vpack.c.b16 %v764, %v763
        %v774 = vpack.c.b16 %v766, %v765
        %783 = vmatpush.bf16.msra.mxu0 %v774
        %784 = vmatpush.bf16.msra.mxu0 %v773
        %785 = vmatpush.bf16.msra.mxu0 %v772
        %786 = vmatpush.bf16.msra.mxu0 %v771
        %787 = vmatpush.bf16.msra.mxu0 %v770
        %788 = vmatpush.bf16.msra.mxu0 %v769
        %789 = vmatpush.bf16.msra.mxu0 %v768
        %790 = vmatpush.bf16.msra.mxu0 %v767
        %791 = vmatmul.bf16.gmra.mxu0 %v715
        %v792 = vpop.f32.mrf.mxu0
        %v793 = vadd.f32 0.0, %v792
        %v794 = vpop.f32.mrf.mxu0
        %v795 = vadd.f32 0.0, %v794
        %796 = vmatmul.bf16.gmra.mxu0 %v716
        %v797 = vpop.f32.mrf.mxu0
        %v798 = vadd.f32 0.0, %v797
        %v799 = vpop.f32.mrf.mxu0
        %v800 = vadd.f32 0.0, %v799
        %801 = vmatmul.bf16.gmra.mxu0 %v717
        %v802 = vpop.f32.mrf.mxu0
        %v803 = vadd.f32 0.0, %v802
        %v804 = vpop.f32.mrf.mxu0
        %v805 = vadd.f32 0.0, %v804
        %806 = vmatmul.bf16.gmra.mxu0 %v718
        %v807 = vpop.f32.mrf.mxu0
        %v808 = vadd.f32 0.0, %v807
        %v809 = vpop.f32.mrf.mxu0
        %v810 = vadd.f32 0.0, %v809
        %811 = vdwg.mxu0
        %vm812 = vcmp.gt.f32.partialorder %v793, 5.0
        %vm813 = vcmp.gt.f32.partialorder %v795, 5.0
        %vm814 = vcmp.gt.f32.partialorder %v798, 5.0
        %vm815 = vcmp.gt.f32.partialorder %v800, 5.0
        %vm816 = vcmp.gt.f32.partialorder %v803, 5.0
        %vm817 = vcmp.gt.f32.partialorder %v805, 5.0
        %vm818 = vcmp.gt.f32.partialorder %v808, 5.0
        %vm819 = vcmp.gt.f32.partialorder %v810, 5.0
        %v820 = vmin.f32 %v793, 5.0
        %v821 = vmin.f32 %v795, 5.0
        %v822 = vmin.f32 %v798, 5.0
        %v823 = vmin.f32 %v800, 5.0
        %v824 = vmin.f32 %v803, 5.0
        %v825 = vmin.f32 %v805, 5.0
        %v826 = vmin.f32 %v808, 5.0
        %v827 = vmin.f32 %v810, 5.0
        %v828 = vmul.f32 %v820, 1.442695
        %v829 = vpow.pop %v828
        %v830 = vmul.f32 %v821, 1.442695
        %v831 = vpow.pop %v830
        %v832 = vmul.f32 %v822, 1.442695
        %v833 = vpow.pop %v832
        %v834 = vmul.f32 %v823, 1.442695
        %v835 = vpow.pop %v834
        %v836 = vmul.f32 %v824, 1.442695
        %v837 = vpow.pop %v836
        %v838 = vmul.f32 %v825, 1.442695
        %v839 = vpow.pop %v838
        %v840 = vmul.f32 %v826, 1.442695
        %v841 = vpow.pop %v840
        %v842 = vmul.f32 %v827, 1.442695
        %v843 = vpow.pop %v842
        %v844 = vadd.f32 %v829, 1.0
        %v845 = vlog2.pop %v844
        %v846 = vmul.f32 %v845, 0.6931472
        %v847 = vmul.f32 -0.5, %v829
        %v848 = vadd.f32 %v847, 1.0
        %v849 = vmul.f32 %v848, %v829
        %v850 = vand.u32 2147483647, %v829
        %vm851 = vcmp.lt.f32.partialorder %v850, 0.0004427343
        %v852 = vsel %vm851, %v849, %v846
        %v853 = vadd.f32 %v831, 1.0
        %v854 = vlog2.pop %v853
        %v855 = vmul.f32 %v854, 0.6931472
        %v856 = vmul.f32 -0.5, %v831
        %v857 = vadd.f32 %v856, 1.0
        %v858 = vmul.f32 %v857, %v831
        %v859 = vand.u32 2147483647, %v831
        %vm860 = vcmp.lt.f32.partialorder %v859, 0.0004427343
        %v861 = vsel %vm860, %v858, %v855
        %v862 = vadd.f32 %v833, 1.0
        %v863 = vlog2.pop %v862
        %v864 = vmul.f32 %v863, 0.6931472
        %v865 = vmul.f32 -0.5, %v833
        %v866 = vadd.f32 %v865, 1.0
        %v867 = vmul.f32 %v866, %v833
        %v868 = vand.u32 2147483647, %v833
        %vm869 = vcmp.lt.f32.partialorder %v868, 0.0004427343
        %v870 = vsel %vm869, %v867, %v864
        %v871 = vadd.f32 %v835, 1.0
        %v872 = vlog2.pop %v871
        %v873 = vmul.f32 %v872, 0.6931472
        %v874 = vmul.f32 -0.5, %v835
        %v875 = vadd.f32 %v874, 1.0
        %v876 = vmul.f32 %v875, %v835
        %v877 = vand.u32 2147483647, %v835
        %vm878 = vcmp.lt.f32.partialorder %v877, 0.0004427343
        %v879 = vsel %vm878, %v876, %v873
        %v880 = vadd.f32 %v837, 1.0
        %v881 = vlog2.pop %v880
        %v882 = vmul.f32 %v881, 0.6931472
        %v883 = vmul.f32 -0.5, %v837
        %v884 = vadd.f32 %v883, 1.0
        %v885 = vmul.f32 %v884, %v837
        %v886 = vand.u32 2147483647, %v837
        %vm887 = vcmp.lt.f32.partialorder %v886, 0.0004427343
        %v888 = vsel %vm887, %v885, %v882
        %v889 = vadd.f32 %v839, 1.0
        %v890 = vlog2.pop %v889
        %v891 = vmul.f32 %v890, 0.6931472
        %v892 = vmul.f32 -0.5, %v839
        %v893 = vadd.f32 %v892, 1.0
        %v894 = vmul.f32 %v893, %v839
        %v895 = vand.u32 2147483647, %v839
        %vm896 = vcmp.lt.f32.partialorder %v895, 0.0004427343
        %v897 = vsel %vm896, %v894, %v891
        %v898 = vadd.f32 %v841, 1.0
        %v899 = vlog2.pop %v898
        %v900 = vmul.f32 %v899, 0.6931472
        %v901 = vmul.f32 -0.5, %v841
        %v902 = vadd.f32 %v901, 1.0
        %v903 = vmul.f32 %v902, %v841
        %v904 = vand.u32 2147483647, %v841
        %vm905 = vcmp.lt.f32.partialorder %v904, 0.0004427343
        %v906 = vsel %vm905, %v903, %v900
        %v907 = vadd.f32 %v843, 1.0
        %v908 = vlog2.pop %v907
        %v909 = vmul.f32 %v908, 0.6931472
        %v910 = vmul.f32 -0.5, %v843
        %v911 = vadd.f32 %v910, 1.0
        %v912 = vmul.f32 %v911, %v843
        %v913 = vand.u32 2147483647, %v843
        %vm914 = vcmp.lt.f32.partialorder %v913, 0.0004427343
        %v915 = vsel %vm914, %v912, %v909
        %v916 = vsel %vm812, %v793, %v852
        %v917 = vsel %vm813, %v795, %v861
        %v918 = vsel %vm814, %v798, %v870
        %v919 = vsel %vm815, %v800, %v879
        %v920 = vsel %vm816, %v803, %v888
        %v921 = vsel %vm817, %v805, %v897
        %v922 = vsel %vm818, %v808, %v906
        %v923 = vsel %vm819, %v810, %v915
        %v924 = vpack.c.bf16 %v917, %v916
        %v925 = vpack.c.bf16 %v919, %v918
        %v926 = vpack.c.bf16 %v921, %v920
        %v927 = vpack.c.bf16 %v923, %v922
        %v928 = vld [vmem:[#allocation13] sm:$0xf]
        %v929 = vld [vmem:[#allocation13 + $0x4] sm:$0xf]
        %v930 = vld [vmem:[#allocation13 + $0x8] sm:$0xf]
        %v931 = vld [vmem:[#allocation13 + $0xc] sm:$0xf]
        %v932 = vld [vmem:[#allocation13 + $0x10] sm:$0xf]
        %v933 = vld [vmem:[#allocation13 + $0x14] sm:$0xf]
        %v934 = vld [vmem:[#allocation13 + $0x18] sm:$0xf]
        %v935 = vld [vmem:[#allocation13 + $0x1c] sm:$0xf]
        %v936 = vld [vmem:[#allocation13 + $0x20] sm:$0xf]
        %v937 = vld [vmem:[#allocation13 + $0x24] sm:$0xf]
        %v938 = vld [vmem:[#allocation13 + $0x28] sm:$0xf]
        %v939 = vld [vmem:[#allocation13 + $0x2c] sm:$0xf]
        %v940 = vld [vmem:[#allocation13 + $0x30] sm:$0xf]
        %v941 = vld [vmem:[#allocation13 + $0x34] sm:$0xf]
        %v942 = vld [vmem:[#allocation13 + $0x38] sm:$0xf]
        %v943 = vld [vmem:[#allocation13 + $0x3c] sm:$0xf]
        %v960 = vunpack.c.l.b16 %v928
        %v961 = vunpack.c.l.b16 %v929
        %v962 = vunpack.c.l.b16 %v930
        %v963 = vunpack.c.l.b16 %v931
        %v964 = vunpack.c.l.b16 %v932
        %v965 = vunpack.c.l.b16 %v933
        %v966 = vunpack.c.l.b16 %v934
        %v967 = vunpack.c.l.b16 %v935
        %v968 = vunpack.c.l.b16 %v936
        %v969 = vunpack.c.l.b16 %v937
        %v970 = vunpack.c.l.b16 %v938
        %v971 = vunpack.c.l.b16 %v939
        %v972 = vunpack.c.l.b16 %v940
        %v973 = vunpack.c.l.b16 %v941
        %v974 = vunpack.c.l.b16 %v942
        %v975 = vunpack.c.l.b16 %v943
        %v976 = vpack.c.b16 %v961, %v960
        %v977 = vpack.c.b16 %v963, %v962
        %v978 = vpack.c.b16 %v965, %v964
        %v979 = vpack.c.b16 %v967, %v966
        %v980 = vpack.c.b16 %v969, %v968
        %v981 = vpack.c.b16 %v971, %v970
        %v982 = vpack.c.b16 %v973, %v972
        %v983 = vpack.c.b16 %v975, %v974
        %992 = vmatpush.bf16.msra.mxu0 %v983
        %993 = vmatpush.bf16.msra.mxu0 %v982
        %994 = vmatpush.bf16.msra.mxu0 %v981
        %995 = vmatpush.bf16.msra.mxu0 %v980
        %996 = vmatpush.bf16.msra.mxu0 %v979
        %997 = vmatpush.bf16.msra.mxu0 %v978
        %998 = vmatpush.bf16.msra.mxu0 %v977
        %999 = vmatpush.bf16.msra.mxu0 %v976
        %1000 = vmatmul.bf16.gmra.mxu0 %v924
        %v1001 = vpop.f32.mrf.mxu0
        %v1002 = vadd.f32 0.0, %v1001
        %v1003 = vpop.f32.mrf.mxu0
        %v1004 = vadd.f32 0.0, %v1003
        %1005 = vmatmul.bf16.gmra.mxu0 %v925
        %v1006 = vpop.f32.mrf.mxu0
        %v1007 = vadd.f32 0.0, %v1006
        %v1008 = vpop.f32.mrf.mxu0
        %v1009 = vadd.f32 0.0, %v1008
        %1010 = vmatmul.bf16.gmra.mxu0 %v926
        %v1011 = vpop.f32.mrf.mxu0
        %v1012 = vadd.f32 0.0, %v1011
        %v1013 = vpop.f32.mrf.mxu0
        %v1014 = vadd.f32 0.0, %v1013
        %1015 = vmatmul.bf16.gmra.mxu0 %v927
        %v1016 = vpop.f32.mrf.mxu0
        %v1017 = vadd.f32 0.0, %v1016
        %v1018 = vpop.f32.mrf.mxu0
        %v1019 = vadd.f32 0.0, %v1018
        %1020 = vdwg.mxu0
        %vm1021 = vcmp.gt.f32.partialorder %v1002, 0.0
        %vm1022 = vcmp.gt.f32.partialorder %v1004, 0.0
        %vm1023 = vcmp.gt.f32.partialorder %v1007, 0.0
        %vm1024 = vcmp.gt.f32.partialorder %v1009, 0.0
        %vm1025 = vcmp.gt.f32.partialorder %v1012, 0.0
        %vm1026 = vcmp.gt.f32.partialorder %v1014, 0.0
        %vm1027 = vcmp.gt.f32.partialorder %v1017, 0.0
        %vm1028 = vcmp.gt.f32.partialorder %v1019, 0.0
        %vm1029 = vmpackc.low %vm1021, %vm1021
        %vm1030 = vmpackc.low %vm1022, %vm1022
        %vm1031 = vmpackc.low %vm1023, %vm1023
        %vm1032 = vmpackc.low %vm1024, %vm1024
        %vm1033 = vmpackc.low %vm1025, %vm1025
        %vm1034 = vmpackc.low %vm1026, %vm1026
        %vm1035 = vmpackc.low %vm1027, %vm1027
        %vm1036 = vmpackc.low %vm1028, %vm1028
        %v1037 = vsel %vm1029, %v699, 0
        %v1038 = vsel %vm1030, %v700, 0
        %v1039 = vsel %vm1031, %v701, 0
        %v1040 = vsel %vm1032, %v702, 0
        %v1041 = vsel %vm1033, %v703, 0
        %v1042 = vsel %vm1034, %v704, 0
        %v1043 = vsel %vm1035, %v705, 0
        %v1044 = vsel %vm1036, %v706, 0
        %v1045 = vld [vmem:[#allocation7] sm:$0xf]
        %v1046 = vld [vmem:[#allocation7 + $0x4] sm:$0xf]
        %v1047 = vld [vmem:[#allocation7 + $0x8] sm:$0xf]
        %v1048 = vld [vmem:[#allocation7 + $0xc] sm:$0xf]
        %v1049 = vld [vmem:[#allocation7 + $0x10] sm:$0xf]
        %v1050 = vld [vmem:[#allocation7 + $0x14] sm:$0xf]
        %v1051 = vld [vmem:[#allocation7 + $0x18] sm:$0xf]
        %v1052 = vld [vmem:[#allocation7 + $0x1c] sm:$0xf]
        %v1053 = vld [vmem:[#allocation7 + $0x20] sm:$0xf]
        %v1054 = vld [vmem:[#allocation7 + $0x24] sm:$0xf]
        %v1055 = vld [vmem:[#allocation7 + $0x28] sm:$0xf]
        %v1056 = vld [vmem:[#allocation7 + $0x2c] sm:$0xf]
        %v1057 = vld [vmem:[#allocation7 + $0x30] sm:$0xf]
        %v1058 = vld [vmem:[#allocation7 + $0x34] sm:$0xf]
        %v1059 = vld [vmem:[#allocation7 + $0x38] sm:$0xf]
        %v1060 = vld [vmem:[#allocation7 + $0x3c] sm:$0xf]
        %v1069 = vunpack.c.l.b16 %v1037
        %v1070 = vunpack.c.l.b16 %v1038
        %v1071 = vunpack.c.l.b16 %v1039
        %v1072 = vunpack.c.l.b16 %v1040
        %v1073 = vunpack.c.l.b16 %v1041
        %v1074 = vunpack.c.l.b16 %v1042
        %v1075 = vunpack.c.l.b16 %v1043
        %v1076 = vunpack.c.l.b16 %v1044
        %v1077 = vpack.c.b16 %v1070, %v1069
        %v1078 = vpack.c.b16 %v1072, %v1071
        %v1079 = vpack.c.b16 %v1074, %v1073
        %v1080 = vpack.c.b16 %v1076, %v1075
        %v1101 = vunpack.c.l.b16 %v1045
        %v1102 = vunpack.c.l.b16 %v1046
        %v1103 = vunpack.c.l.b16 %v1047
        %v1104 = vunpack.c.l.b16 %v1048
        %v1105 = vunpack.c.l.b16 %v1049
        %v1106 = vunpack.c.l.b16 %v1050
        %v1107 = vunpack.c.l.b16 %v1051
        %v1108 = vunpack.c.l.b16 %v1052
        %v1109 = vunpack.c.l.b16 %v1053
        %v1110 = vunpack.c.l.b16 %v1054
        %v1111 = vunpack.c.l.b16 %v1055
        %v1112 = vunpack.c.l.b16 %v1056
        %v1113 = vunpack.c.l.b16 %v1057
        %v1114 = vunpack.c.l.b16 %v1058
        %v1115 = vunpack.c.l.b16 %v1059
        %v1116 = vunpack.c.l.b16 %v1060
        %v1117 = vpack.c.b16 %v1102, %v1101
        %v1118 = vpack.c.b16 %v1104, %v1103
        %v1119 = vpack.c.b16 %v1106, %v1105
        %v1120 = vpack.c.b16 %v1108, %v1107
        %v1121 = vpack.c.b16 %v1110, %v1109
        %v1122 = vpack.c.b16 %v1112, %v1111
        %v1123 = vpack.c.b16 %v1114, %v1113
        %v1124 = vpack.c.b16 %v1116, %v1115
        %1133 = vmatpush.bf16.msra.mxu0 %v1124
        %1134 = vmatpush.bf16.msra.mxu0 %v1123
        %1135 = vmatpush.bf16.msra.mxu0 %v1122
        %1136 = vmatpush.bf16.msra.mxu0 %v1121
        %1137 = vmatpush.bf16.msra.mxu0 %v1120
        %1138 = vmatpush.bf16.msra.mxu0 %v1119
        %1139 = vmatpush.bf16.msra.mxu0 %v1118
        %1140 = vmatpush.bf16.msra.mxu0 %v1117
        %1141 = vmatmul.bf16.gmra.mxu0 %v1077
        %v1142 = vpop.f32.mrf.mxu0
        %v1143 = vadd.f32 0.0, %v1142
        %v1144 = vpop.f32.mrf.mxu0
        %v1145 = vadd.f32 0.0, %v1144
        %1146 = vmatmul.bf16.gmra.mxu0 %v1078
        %v1147 = vpop.f32.mrf.mxu0
        %v1148 = vadd.f32 0.0, %v1147
        %v1149 = vpop.f32.mrf.mxu0
        %v1150 = vadd.f32 0.0, %v1149
        %1151 = vmatmul.bf16.gmra.mxu0 %v1079
        %v1152 = vpop.f32.mrf.mxu0
        %v1153 = vadd.f32 0.0, %v1152
        %v1154 = vpop.f32.mrf.mxu0
        %v1155 = vadd.f32 0.0, %v1154
        %1156 = vmatmul.bf16.gmra.mxu0 %v1080
        %v1157 = vpop.f32.mrf.mxu0
        %v1158 = vadd.f32 0.0, %v1157
        %v1159 = vpop.f32.mrf.mxu0
        %v1160 = vadd.f32 0.0, %v1159
        %1161 = vdwg.mxu0
        %vm1162 = vcmp.gt.f32.partialorder %v1143, 5.0
        %vm1163 = vcmp.gt.f32.partialorder %v1145, 5.0
        %vm1164 = vcmp.gt.f32.partialorder %v1148, 5.0
        %vm1165 = vcmp.gt.f32.partialorder %v1150, 5.0
        %vm1166 = vcmp.gt.f32.partialorder %v1153, 5.0
        %vm1167 = vcmp.gt.f32.partialorder %v1155, 5.0
        %vm1168 = vcmp.gt.f32.partialorder %v1158, 5.0
        %vm1169 = vcmp.gt.f32.partialorder %v1160, 5.0
        %v1170 = vmin.f32 %v1143, 5.0
        %v1171 = vmin.f32 %v1145, 5.0
        %v1172 = vmin.f32 %v1148, 5.0
        %v1173 = vmin.f32 %v1150, 5.0
        %v1174 = vmin.f32 %v1153, 5.0
        %v1175 = vmin.f32 %v1155, 5.0
        %v1176 = vmin.f32 %v1158, 5.0
        %v1177 = vmin.f32 %v1160, 5.0
        %v1178 = vmul.f32 %v1170, 1.442695
        %v1179 = vpow.pop %v1178
        %v1180 = vmul.f32 %v1171, 1.442695
        %v1181 = vpow.pop %v1180
        %v1182 = vmul.f32 %v1172, 1.442695
        %v1183 = vpow.pop %v1182
        %v1184 = vmul.f32 %v1173, 1.442695
        %v1185 = vpow.pop %v1184
        %v1186 = vmul.f32 %v1174, 1.442695
        %v1187 = vpow.pop %v1186
        %v1188 = vmul.f32 %v1175, 1.442695
        %v1189 = vpow.pop %v1188
        %v1190 = vmul.f32 %v1176, 1.442695
        %v1191 = vpow.pop %v1190
        %v1192 = vmul.f32 %v1177, 1.442695
        %v1193 = vpow.pop %v1192
        %v1194 = vadd.f32 %v1179, 1.0
        %v1195 = vlog2.pop %v1194
        %v1196 = vmul.f32 %v1195, 0.6931472
        %v1197 = vmul.f32 -0.5, %v1179
        %v1198 = vadd.f32 %v1197, 1.0
        %v1199 = vmul.f32 %v1198, %v1179
        %v1200 = vand.u32 2147483647, %v1179
        %vm1201 = vcmp.lt.f32.partialorder %v1200, 0.0004427343
        %v1202 = vsel %vm1201, %v1199, %v1196
        %v1203 = vadd.f32 %v1181, 1.0
        %v1204 = vlog2.pop %v1203
        %v1205 = vmul.f32 %v1204, 0.6931472
        %v1206 = vmul.f32 -0.5, %v1181
        %v1207 = vadd.f32 %v1206, 1.0
        %v1208 = vmul.f32 %v1207, %v1181
        %v1209 = vand.u32 2147483647, %v1181
        %vm1210 = vcmp.lt.f32.partialorder %v1209, 0.0004427343
        %v1211 = vsel %vm1210, %v1208, %v1205
        %v1212 = vadd.f32 %v1183, 1.0
        %v1213 = vlog2.pop %v1212
        %v1214 = vmul.f32 %v1213, 0.6931472
        %v1215 = vmul.f32 -0.5, %v1183
        %v1216 = vadd.f32 %v1215, 1.0
        %v1217 = vmul.f32 %v1216, %v1183
        %v1218 = vand.u32 2147483647, %v1183
        %vm1219 = vcmp.lt.f32.partialorder %v1218, 0.0004427343
        %v1220 = vsel %vm1219, %v1217, %v1214
        %v1221 = vadd.f32 %v1185, 1.0
        %v1222 = vlog2.pop %v1221
        %v1223 = vmul.f32 %v1222, 0.6931472
        %v1224 = vmul.f32 -0.5, %v1185
        %v1225 = vadd.f32 %v1224, 1.0
        %v1226 = vmul.f32 %v1225, %v1185
        %v1227 = vand.u32 2147483647, %v1185
        %vm1228 = vcmp.lt.f32.partialorder %v1227, 0.0004427343
        %v1229 = vsel %vm1228, %v1226, %v1223
        %v1230 = vadd.f32 %v1187, 1.0
        %v1231 = vlog2.pop %v1230
        %v1232 = vmul.f32 %v1231, 0.6931472
        %v1233 = vmul.f32 -0.5, %v1187
        %v1234 = vadd.f32 %v1233, 1.0
        %v1235 = vmul.f32 %v1234, %v1187
        %v1236 = vand.u32 2147483647, %v1187
        %vm1237 = vcmp.lt.f32.partialorder %v1236, 0.0004427343
        %v1238 = vsel %vm1237, %v1235, %v1232
        %v1239 = vadd.f32 %v1189, 1.0
        %v1240 = vlog2.pop %v1239
        %v1241 = vmul.f32 %v1240, 0.6931472
        %v1242 = vmul.f32 -0.5, %v1189
        %v1243 = vadd.f32 %v1242, 1.0
        %v1244 = vmul.f32 %v1243, %v1189
        %v1245 = vand.u32 2147483647, %v1189
        %vm1246 = vcmp.lt.f32.partialorder %v1245, 0.0004427343
        %v1247 = vsel %vm1246, %v1244, %v1241
        %v1248 = vadd.f32 %v1191, 1.0
        %v1249 = vlog2.pop %v1248
        %v1250 = vmul.f32 %v1249, 0.6931472
        %v1251 = vmul.f32 -0.5, %v1191
        %v1252 = vadd.f32 %v1251, 1.0
        %v1253 = vmul.f32 %v1252, %v1191
        %v1254 = vand.u32 2147483647, %v1191
        %vm1255 = vcmp.lt.f32.partialorder %v1254, 0.0004427343
        %v1256 = vsel %vm1255, %v1253, %v1250
        %v1257 = vadd.f32 %v1193, 1.0
        %v1258 = vlog2.pop %v1257
        %v1259 = vmul.f32 %v1258, 0.6931472
        %v1260 = vmul.f32 -0.5, %v1193
        %v1261 = vadd.f32 %v1260, 1.0
        %v1262 = vmul.f32 %v1261, %v1193
        %v1263 = vand.u32 2147483647, %v1193
        %vm1264 = vcmp.lt.f32.partialorder %v1263, 0.0004427343
        %v1265 = vsel %vm1264, %v1262, %v1259
        %v1266 = vsel %vm1162, %v1143, %v1202
        %v1267 = vsel %vm1163, %v1145, %v1211
        %v1268 = vsel %vm1164, %v1148, %v1220
        %v1269 = vsel %vm1165, %v1150, %v1229
        %v1270 = vsel %vm1166, %v1153, %v1238
        %v1271 = vsel %vm1167, %v1155, %v1247
        %v1272 = vsel %vm1168, %v1158, %v1256
        %v1273 = vsel %vm1169, %v1160, %v1265
        %v1274 = vpack.c.bf16 %v1267, %v1266
        %v1275 = vpack.c.bf16 %v1269, %v1268
        %v1276 = vpack.c.bf16 %v1271, %v1270
        %v1277 = vpack.c.bf16 %v1273, %v1272
        %v1278 = vld [vmem:[#allocation8] sm:$0xf]
        %v1279 = vld [vmem:[#allocation8 + $0x4] sm:$0xf]
        %v1280 = vld [vmem:[#allocation8 + $0x8] sm:$0xf]
        %v1281 = vld [vmem:[#allocation8 + $0xc] sm:$0xf]
        %v1282 = vld [vmem:[#allocation8 + $0x10] sm:$0xf]
        %v1283 = vld [vmem:[#allocation8 + $0x14] sm:$0xf]
        %v1284 = vld [vmem:[#allocation8 + $0x18] sm:$0xf]
        %v1285 = vld [vmem:[#allocation8 + $0x1c] sm:$0xf]
        %v1286 = vld [vmem:[#allocation8 + $0x20] sm:$0xf]
        %v1287 = vld [vmem:[#allocation8 + $0x24] sm:$0xf]
        %v1288 = vld [vmem:[#allocation8 + $0x28] sm:$0xf]
        %v1289 = vld [vmem:[#allocation8 + $0x2c] sm:$0xf]
        %v1290 = vld [vmem:[#allocation8 + $0x30] sm:$0xf]
        %v1291 = vld [vmem:[#allocation8 + $0x34] sm:$0xf]
        %v1292 = vld [vmem:[#allocation8 + $0x38] sm:$0xf]
        %v1293 = vld [vmem:[#allocation8 + $0x3c] sm:$0xf]
        %v1310 = vunpack.c.l.b16 %v1278
        %v1311 = vunpack.c.l.b16 %v1279
        %v1312 = vunpack.c.l.b16 %v1280
        %v1313 = vunpack.c.l.b16 %v1281
        %v1314 = vunpack.c.l.b16 %v1282
        %v1315 = vunpack.c.l.b16 %v1283
        %v1316 = vunpack.c.l.b16 %v1284
        %v1317 = vunpack.c.l.b16 %v1285
        %v1318 = vunpack.c.l.b16 %v1286
        %v1319 = vunpack.c.l.b16 %v1287
        %v1320 = vunpack.c.l.b16 %v1288
        %v1321 = vunpack.c.l.b16 %v1289
        %v1322 = vunpack.c.l.b16 %v1290
        %v1323 = vunpack.c.l.b16 %v1291
        %v1324 = vunpack.c.l.b16 %v1292
        %v1325 = vunpack.c.l.b16 %v1293
        %v1326 = vpack.c.b16 %v1311, %v1310
        %v1327 = vpack.c.b16 %v1313, %v1312
        %v1328 = vpack.c.b16 %v1315, %v1314
        %v1329 = vpack.c.b16 %v1317, %v1316
        %v1330 = vpack.c.b16 %v1319, %v1318
        %v1331 = vpack.c.b16 %v1321, %v1320
        %v1332 = vpack.c.b16 %v1323, %v1322
        %v1333 = vpack.c.b16 %v1325, %v1324
        %1342 = vmatpush.bf16.msra.mxu0 %v1333
        %1343 = vmatpush.bf16.msra.mxu0 %v1332
        %1344 = vmatpush.bf16.msra.mxu0 %v1331
        %1345 = vmatpush.bf16.msra.mxu0 %v1330
        %1346 = vmatpush.bf16.msra.mxu0 %v1329
        %1347 = vmatpush.bf16.msra.mxu0 %v1328
        %1348 = vmatpush.bf16.msra.mxu0 %v1327
        %1349 = vmatpush.bf16.msra.mxu0 %v1326
        %1350 = vmatmul.bf16.gmra.mxu0 %v1274
        %v1351 = vpop.f32.mrf.mxu0
        %v1352 = vadd.f32 0.0, %v1351
        %v1353 = vpop.f32.mrf.mxu0
        %v1354 = vadd.f32 0.0, %v1353
        %1355 = vmatmul.bf16.gmra.mxu0 %v1275
        %v1356 = vpop.f32.mrf.mxu0
        %v1357 = vadd.f32 0.0, %v1356
        %v1358 = vpop.f32.mrf.mxu0
        %v1359 = vadd.f32 0.0, %v1358
        %1360 = vmatmul.bf16.gmra.mxu0 %v1276
        %v1361 = vpop.f32.mrf.mxu0
        %v1362 = vadd.f32 0.0, %v1361
        %v1363 = vpop.f32.mrf.mxu0
        %v1364 = vadd.f32 0.0, %v1363
        %1365 = vmatmul.bf16.gmra.mxu0 %v1277
        %v1366 = vpop.f32.mrf.mxu0
        %v1367 = vadd.f32 0.0, %v1366
        %v1368 = vpop.f32.mrf.mxu0
        %v1369 = vadd.f32 0.0, %v1368
        %1370 = vdwg.mxu0
        %vm1371 = vcmp.gt.f32.partialorder %v1352, 5.0
        %vm1372 = vcmp.gt.f32.partialorder %v1354, 5.0
        %vm1373 = vcmp.gt.f32.partialorder %v1357, 5.0
        %vm1374 = vcmp.gt.f32.partialorder %v1359, 5.0
        %vm1375 = vcmp.gt.f32.partialorder %v1362, 5.0
        %vm1376 = vcmp.gt.f32.partialorder %v1364, 5.0
        %vm1377 = vcmp.gt.f32.partialorder %v1367, 5.0
        %vm1378 = vcmp.gt.f32.partialorder %v1369, 5.0
        %v1379 = vmin.f32 %v1352, 5.0
        %v1380 = vmin.f32 %v1354, 5.0
        %v1381 = vmin.f32 %v1357, 5.0
        %v1382 = vmin.f32 %v1359, 5.0
        %v1383 = vmin.f32 %v1362, 5.0
        %v1384 = vmin.f32 %v1364, 5.0
        %v1385 = vmin.f32 %v1367, 5.0
        %v1386 = vmin.f32 %v1369, 5.0
        %v1387 = vmul.f32 %v1379, 1.442695
        %v1388 = vpow.pop %v1387
        %v1389 = vmul.f32 %v1380, 1.442695
        %v1390 = vpow.pop %v1389
        %v1391 = vmul.f32 %v1381, 1.442695
        %v1392 = vpow.pop %v1391
        %v1393 = vmul.f32 %v1382, 1.442695
        %v1394 = vpow.pop %v1393
        %v1395 = vmul.f32 %v1383, 1.442695
        %v1396 = vpow.pop %v1395
        %v1397 = vmul.f32 %v1384, 1.442695
        %v1398 = vpow.pop %v1397
        %v1399 = vmul.f32 %v1385, 1.442695
        %v1400 = vpow.pop %v1399
        %v1401 = vmul.f32 %v1386, 1.442695
        %v1402 = vpow.pop %v1401
        %v1403 = vadd.f32 %v1388, 1.0
        %v1404 = vlog2.pop %v1403
        %v1405 = vmul.f32 %v1404, 0.6931472
        %v1406 = vmul.f32 -0.5, %v1388
        %v1407 = vadd.f32 %v1406, 1.0
        %v1408 = vmul.f32 %v1407, %v1388
        %v1409 = vand.u32 2147483647, %v1388
        %vm1410 = vcmp.lt.f32.partialorder %v1409, 0.0004427343
        %v1411 = vsel %vm1410, %v1408, %v1405
        %v1412 = vadd.f32 %v1390, 1.0
        %v1413 = vlog2.pop %v1412
        %v1414 = vmul.f32 %v1413, 0.6931472
        %v1415 = vmul.f32 -0.5, %v1390
        %v1416 = vadd.f32 %v1415, 1.0
        %v1417 = vmul.f32 %v1416, %v1390
        %v1418 = vand.u32 2147483647, %v1390
        %vm1419 = vcmp.lt.f32.partialorder %v1418, 0.0004427343
        %v1420 = vsel %vm1419, %v1417, %v1414
        %v1421 = vadd.f32 %v1392, 1.0
        %v1422 = vlog2.pop %v1421
        %v1423 = vmul.f32 %v1422, 0.6931472
        %v1424 = vmul.f32 -0.5, %v1392
        %v1425 = vadd.f32 %v1424, 1.0
        %v1426 = vmul.f32 %v1425, %v1392
        %v1427 = vand.u32 2147483647, %v1392
        %vm1428 = vcmp.lt.f32.partialorder %v1427, 0.0004427343
        %v1429 = vsel %vm1428, %v1426, %v1423
        %v1430 = vadd.f32 %v1394, 1.0
        %v1431 = vlog2.pop %v1430
        %v1432 = vmul.f32 %v1431, 0.6931472
        %v1433 = vmul.f32 -0.5, %v1394
        %v1434 = vadd.f32 %v1433, 1.0
        %v1435 = vmul.f32 %v1434, %v1394
        %v1436 = vand.u32 2147483647, %v1394
        %vm1437 = vcmp.lt.f32.partialorder %v1436, 0.0004427343
        %v1438 = vsel %vm1437, %v1435, %v1432
        %v1439 = vadd.f32 %v1396, 1.0
        %v1440 = vlog2.pop %v1439
        %v1441 = vmul.f32 %v1440, 0.6931472
        %v1442 = vmul.f32 -0.5, %v1396
        %v1443 = vadd.f32 %v1442, 1.0
        %v1444 = vmul.f32 %v1443, %v1396
        %v1445 = vand.u32 2147483647, %v1396
        %vm1446 = vcmp.lt.f32.partialorder %v1445, 0.0004427343
        %v1447 = vsel %vm1446, %v1444, %v1441
        %v1448 = vadd.f32 %v1398, 1.0
        %v1449 = vlog2.pop %v1448
        %v1450 = vmul.f32 %v1449, 0.6931472
        %v1451 = vmul.f32 -0.5, %v1398
        %v1452 = vadd.f32 %v1451, 1.0
        %v1453 = vmul.f32 %v1452, %v1398
        %v1454 = vand.u32 2147483647, %v1398
        %vm1455 = vcmp.lt.f32.partialorder %v1454, 0.0004427343
        %v1456 = vsel %vm1455, %v1453, %v1450
        %v1457 = vadd.f32 %v1400, 1.0
        %v1458 = vlog2.pop %v1457
        %v1459 = vmul.f32 %v1458, 0.6931472
        %v1460 = vmul.f32 -0.5, %v1400
        %v1461 = vadd.f32 %v1460, 1.0
        %v1462 = vmul.f32 %v1461, %v1400
        %v1463 = vand.u32 2147483647, %v1400
        %vm1464 = vcmp.lt.f32.partialorder %v1463, 0.0004427343
        %v1465 = vsel %vm1464, %v1462, %v1459
        %v1466 = vadd.f32 %v1402, 1.0
        %v1467 = vlog2.pop %v1466
        %v1468 = vmul.f32 %v1467, 0.6931472
        %v1469 = vmul.f32 -0.5, %v1402
        %v1470 = vadd.f32 %v1469, 1.0
        %v1471 = vmul.f32 %v1470, %v1402
        %v1472 = vand.u32 2147483647, %v1402
        %vm1473 = vcmp.lt.f32.partialorder %v1472, 0.0004427343
        %v1474 = vsel %vm1473, %v1471, %v1468
        %v1475 = vsel %vm1371, %v1352, %v1411
        %v1476 = vsel %vm1372, %v1354, %v1420
        %v1477 = vsel %vm1373, %v1357, %v1429
        %v1478 = vsel %vm1374, %v1359, %v1438
        %v1479 = vsel %vm1375, %v1362, %v1447
        %v1480 = vsel %vm1376, %v1364, %v1456
        %v1481 = vsel %vm1377, %v1367, %v1465
        %v1482 = vsel %vm1378, %v1369, %v1474
        %v1483 = vpack.c.bf16 %v1476, %v1475
        %v1484 = vpack.c.bf16 %v1478, %v1477
        %v1485 = vpack.c.bf16 %v1480, %v1479
        %v1486 = vpack.c.bf16 %v1482, %v1481
        %v1487 = vld [vmem:[#allocation10] sm:$0xf]
        %v1488 = vld [vmem:[#allocation10 + $0x4] sm:$0xf]
        %v1489 = vld [vmem:[#allocation10 + $0x8] sm:$0xf]
        %v1490 = vld [vmem:[#allocation10 + $0xc] sm:$0xf]
        %v1491 = vld [vmem:[#allocation10 + $0x10] sm:$0xf]
        %v1492 = vld [vmem:[#allocation10 + $0x14] sm:$0xf]
        %v1493 = vld [vmem:[#allocation10 + $0x18] sm:$0xf]
        %v1494 = vld [vmem:[#allocation10 + $0x1c] sm:$0xf]
        %v1495 = vld [vmem:[#allocation10 + $0x20] sm:$0xf]
        %v1496 = vld [vmem:[#allocation10 + $0x24] sm:$0xf]
        %v1497 = vld [vmem:[#allocation10 + $0x28] sm:$0xf]
        %v1498 = vld [vmem:[#allocation10 + $0x2c] sm:$0xf]
        %v1499 = vld [vmem:[#allocation10 + $0x30] sm:$0xf]
        %v1500 = vld [vmem:[#allocation10 + $0x34] sm:$0xf]
        %v1501 = vld [vmem:[#allocation10 + $0x38] sm:$0xf]
        %v1502 = vld [vmem:[#allocation10 + $0x3c] sm:$0xf]
        %v1519 = vunpack.c.l.b16 %v1487
        %v1520 = vunpack.c.l.b16 %v1488
        %v1521 = vunpack.c.l.b16 %v1489
        %v1522 = vunpack.c.l.b16 %v1490
        %v1523 = vunpack.c.l.b16 %v1491
        %v1524 = vunpack.c.l.b16 %v1492
        %v1525 = vunpack.c.l.b16 %v1493
        %v1526 = vunpack.c.l.b16 %v1494
        %v1527 = vunpack.c.l.b16 %v1495
        %v1528 = vunpack.c.l.b16 %v1496
        %v1529 = vunpack.c.l.b16 %v1497
        %v1530 = vunpack.c.l.b16 %v1498
        %v1531 = vunpack.c.l.b16 %v1499
        %v1532 = vunpack.c.l.b16 %v1500
        %v1533 = vunpack.c.l.b16 %v1501
        %v1534 = vunpack.c.l.b16 %v1502
        %v1535 = vpack.c.b16 %v1520, %v1519
        %v1536 = vpack.c.b16 %v1522, %v1521
        %v1537 = vpack.c.b16 %v1524, %v1523
        %v1538 = vpack.c.b16 %v1526, %v1525
        %v1539 = vpack.c.b16 %v1528, %v1527
        %v1540 = vpack.c.b16 %v1530, %v1529
        %v1541 = vpack.c.b16 %v1532, %v1531
        %v1542 = vpack.c.b16 %v1534, %v1533
        %1551 = vmatpush.bf16.msra.mxu0 %v1542
        %1552 = vmatpush.bf16.msra.mxu0 %v1541
        %1553 = vmatpush.bf16.msra.mxu0 %v1540
        %1554 = vmatpush.bf16.msra.mxu0 %v1539
        %1555 = vmatpush.bf16.msra.mxu0 %v1538
        %1556 = vmatpush.bf16.msra.mxu0 %v1537
        %1557 = vmatpush.bf16.msra.mxu0 %v1536
        %1558 = vmatpush.bf16.msra.mxu0 %v1535
        %1559 = vmatmul.bf16.gmra.mxu0 %v1483
        %v1560 = vpop.f32.mrf.mxu0
        %v1561 = vadd.f32 0.0, %v1560
        %v1562 = vpop.f32.mrf.mxu0
        %v1563 = vadd.f32 0.0, %v1562
        %1564 = vmatmul.bf16.gmra.mxu0 %v1484
        %v1565 = vpop.f32.mrf.mxu0
        %v1566 = vadd.f32 0.0, %v1565
        %v1567 = vpop.f32.mrf.mxu0
        %v1568 = vadd.f32 0.0, %v1567
        %1569 = vmatmul.bf16.gmra.mxu0 %v1485
        %v1570 = vpop.f32.mrf.mxu0
        %v1571 = vadd.f32 0.0, %v1570
        %v1572 = vpop.f32.mrf.mxu0
        %v1573 = vadd.f32 0.0, %v1572
        %1574 = vmatmul.bf16.gmra.mxu0 %v1486
        %v1575 = vpop.f32.mrf.mxu0
        %v1576 = vadd.f32 0.0, %v1575
        %v1577 = vpop.f32.mrf.mxu0
        %v1578 = vadd.f32 0.0, %v1577
        %1579 = vdwg.mxu0
        %vm1580 = vcmp.gt.f32.partialorder %v1561, 5.0
        %vm1581 = vcmp.gt.f32.partialorder %v1563, 5.0
        %vm1582 = vcmp.gt.f32.partialorder %v1566, 5.0
        %vm1583 = vcmp.gt.f32.partialorder %v1568, 5.0
        %vm1584 = vcmp.gt.f32.partialorder %v1571, 5.0
        %vm1585 = vcmp.gt.f32.partialorder %v1573, 5.0
        %vm1586 = vcmp.gt.f32.partialorder %v1576, 5.0
        %vm1587 = vcmp.gt.f32.partialorder %v1578, 5.0
        %v1588 = vmin.f32 %v1561, 5.0
        %v1589 = vmin.f32 %v1563, 5.0
        %v1590 = vmin.f32 %v1566, 5.0
        %v1591 = vmin.f32 %v1568, 5.0
        %v1592 = vmin.f32 %v1571, 5.0
        %v1593 = vmin.f32 %v1573, 5.0
        %v1594 = vmin.f32 %v1576, 5.0
        %v1595 = vmin.f32 %v1578, 5.0
        %v1596 = vmul.f32 %v1588, 1.442695
        %v1597 = vpow.pop %v1596
        %v1598 = vmul.f32 %v1589, 1.442695
        %v1599 = vpow.pop %v1598
        %v1600 = vmul.f32 %v1590, 1.442695
        %v1601 = vpow.pop %v1600
        %v1602 = vmul.f32 %v1591, 1.442695
        %v1603 = vpow.pop %v1602
        %v1604 = vmul.f32 %v1592, 1.442695
        %v1605 = vpow.pop %v1604
        %v1606 = vmul.f32 %v1593, 1.442695
        %v1607 = vpow.pop %v1606
        %v1608 = vmul.f32 %v1594, 1.442695
        %v1609 = vpow.pop %v1608
        %v1610 = vmul.f32 %v1595, 1.442695
        %v1611 = vpow.pop %v1610
        %v1612 = vadd.f32 %v1597, 1.0
        %v1613 = vlog2.pop %v1612
        %v1614 = vmul.f32 %v1613, 0.6931472
        %v1615 = vmul.f32 -0.5, %v1597
        %v1616 = vadd.f32 %v1615, 1.0
        %v1617 = vmul.f32 %v1616, %v1597
        %v1618 = vand.u32 2147483647, %v1597
        %vm1619 = vcmp.lt.f32.partialorder %v1618, 0.0004427343
        %v1620 = vsel %vm1619, %v1617, %v1614
        %v1621 = vadd.f32 %v1599, 1.0
        %v1622 = vlog2.pop %v1621
        %v1623 = vmul.f32 %v1622, 0.6931472
        %v1624 = vmul.f32 -0.5, %v1599
        %v1625 = vadd.f32 %v1624, 1.0
        %v1626 = vmul.f32 %v1625, %v1599
        %v1627 = vand.u32 2147483647, %v1599
        %vm1628 = vcmp.lt.f32.partialorder %v1627, 0.0004427343
        %v1629 = vsel %vm1628, %v1626, %v1623
        %v1630 = vadd.f32 %v1601, 1.0
        %v1631 = vlog2.pop %v1630
        %v1632 = vmul.f32 %v1631, 0.6931472
        %v1633 = vmul.f32 -0.5, %v1601
        %v1634 = vadd.f32 %v1633, 1.0
        %v1635 = vmul.f32 %v1634, %v1601
        %v1636 = vand.u32 2147483647, %v1601
        %vm1637 = vcmp.lt.f32.partialorder %v1636, 0.0004427343
        %v1638 = vsel %vm1637, %v1635, %v1632
        %v1639 = vadd.f32 %v1603, 1.0
        %v1640 = vlog2.pop %v1639
        %v1641 = vmul.f32 %v1640, 0.6931472
        %v1642 = vmul.f32 -0.5, %v1603
        %v1643 = vadd.f32 %v1642, 1.0
        %v1644 = vmul.f32 %v1643, %v1603
        %v1645 = vand.u32 2147483647, %v1603
        %vm1646 = vcmp.lt.f32.partialorder %v1645, 0.0004427343
        %v1647 = vsel %vm1646, %v1644, %v1641
        %v1648 = vadd.f32 %v1605, 1.0
        %v1649 = vlog2.pop %v1648
        %v1650 = vmul.f32 %v1649, 0.6931472
        %v1651 = vmul.f32 -0.5, %v1605
        %v1652 = vadd.f32 %v1651, 1.0
        %v1653 = vmul.f32 %v1652, %v1605
        %v1654 = vand.u32 2147483647, %v1605
        %vm1655 = vcmp.lt.f32.partialorder %v1654, 0.0004427343
        %v1656 = vsel %vm1655, %v1653, %v1650
        %v1657 = vadd.f32 %v1607, 1.0
        %v1658 = vlog2.pop %v1657
        %v1659 = vmul.f32 %v1658, 0.6931472
        %v1660 = vmul.f32 -0.5, %v1607
        %v1661 = vadd.f32 %v1660, 1.0
        %v1662 = vmul.f32 %v1661, %v1607
        %v1663 = vand.u32 2147483647, %v1607
        %vm1664 = vcmp.lt.f32.partialorder %v1663, 0.0004427343
        %v1665 = vsel %vm1664, %v1662, %v1659
        %v1666 = vadd.f32 %v1609, 1.0
        %v1667 = vlog2.pop %v1666
        %v1668 = vmul.f32 %v1667, 0.6931472
        %v1669 = vmul.f32 -0.5, %v1609
        %v1670 = vadd.f32 %v1669, 1.0
        %v1671 = vmul.f32 %v1670, %v1609
        %v1672 = vand.u32 2147483647, %v1609
        %vm1673 = vcmp.lt.f32.partialorder %v1672, 0.0004427343
        %v1674 = vsel %vm1673, %v1671, %v1668
        %v1675 = vadd.f32 %v1611, 1.0
        %v1676 = vlog2.pop %v1675
        %v1677 = vmul.f32 %v1676, 0.6931472
        %v1678 = vmul.f32 -0.5, %v1611
        %v1679 = vadd.f32 %v1678, 1.0
        %v1680 = vmul.f32 %v1679, %v1611
        %v1681 = vand.u32 2147483647, %v1611
        %vm1682 = vcmp.lt.f32.partialorder %v1681, 0.0004427343
        %v1683 = vsel %vm1682, %v1680, %v1677
        %v1684 = vsel %vm1580, %v1561, %v1620
        %v1685 = vsel %vm1581, %v1563, %v1629
        %v1686 = vsel %vm1582, %v1566, %v1638
        %v1687 = vsel %vm1583, %v1568, %v1647
        %v1688 = vsel %vm1584, %v1571, %v1656
        %v1689 = vsel %vm1585, %v1573, %v1665
        %v1690 = vsel %vm1586, %v1576, %v1674
        %v1691 = vsel %vm1587, %v1578, %v1683
        %1692 = vst [vmem:[%s397] sm:$0xff] %v1684
        %1693 = vst [vmem:[%s397 + $0x8] sm:$0xff] %v1685
        %1694 = vst [vmem:[%s397 + $0x10] sm:$0xff] %v1686
        %1695 = vst [vmem:[%s397 + $0x18] sm:$0xff] %v1687
        %1696 = vst [vmem:[%s397 + $0x20] sm:$0xff] %v1688
        %1697 = vst [vmem:[%s397 + $0x28] sm:$0xff] %v1689
        %1698 = vst [vmem:[%s397 + $0x30] sm:$0xff] %v1690
        %1699 = vst [vmem:[%s397 + $0x38] sm:$0xff] %v1691
        %s1700 = scalar_lea.vmem %s336, 32 [#allocation2]
        %v1701 = vld [vmem:[%s1700] sm:$0xf]
        %v1702 = vld [vmem:[%s1700 + $0x4] sm:$0xf]
        %v1703 = vld [vmem:[%s1700 + $0x8] sm:$0xf]
        %v1704 = vld [vmem:[%s1700 + $0xc] sm:$0xf]
        %v1705 = vld [vmem:[%s1700 + $0x10] sm:$0xf]
        %v1706 = vld [vmem:[%s1700 + $0x14] sm:$0xf]
        %v1707 = vld [vmem:[%s1700 + $0x18] sm:$0xf]
        %v1708 = vld [vmem:[%s1700 + $0x1c] sm:$0xf]
        %v1709 = vld [vmem:[#allocation5] sm:$0xff]
        %v1710 = vld [vmem:[#allocation5 + $0x8] sm:$0xff]
        %v1711 = vld [vmem:[#allocation5 + $0x10] sm:$0xff]
        %v1712 = vld [vmem:[#allocation5 + $0x18] sm:$0xff]
        %v1713 = vld [vmem:[#allocation5 + $0x20] sm:$0xff]
        %v1714 = vld [vmem:[#allocation5 + $0x28] sm:$0xff]
        %v1715 = vld [vmem:[#allocation5 + $0x30] sm:$0xff]
        %v1716 = vld [vmem:[#allocation5 + $0x38] sm:$0xff]
        %v1717 = vld [vmem:[#allocation5 + $0x40] sm:$0xff]
        %v1718 = vld [vmem:[#allocation5 + $0x48] sm:$0xff]
        %v1719 = vld [vmem:[#allocation5 + $0x50] sm:$0xff]
        %v1720 = vld [vmem:[#allocation5 + $0x58] sm:$0xff]
        %v1721 = vld [vmem:[#allocation5 + $0x60] sm:$0xff]
        %v1722 = vld [vmem:[#allocation5 + $0x68] sm:$0xff]
        %v1723 = vld [vmem:[#allocation5 + $0x70] sm:$0xff]
        %v1724 = vld [vmem:[#allocation5 + $0x78] sm:$0xff]
        %v1733 = vunpack.c.l.b16 %v1701
        %v1734 = vunpack.c.l.b16 %v1702
        %v1735 = vunpack.c.l.b16 %v1703
        %v1736 = vunpack.c.l.b16 %v1704
        %v1737 = vunpack.c.l.b16 %v1705
        %v1738 = vunpack.c.l.b16 %v1706
        %v1739 = vunpack.c.l.b16 %v1707
        %v1740 = vunpack.c.l.b16 %v1708
        %v1741 = vpack.c.b16 %v1734, %v1733
        %v1742 = vpack.c.b16 %v1736, %v1735
        %v1743 = vpack.c.b16 %v1738, %v1737
        %v1744 = vpack.c.b16 %v1740, %v1739
        %v1765 = vunpack.c.l.b16 %v1709
        %v1766 = vunpack.c.h.b16 %v1709
        %v1767 = vunpack.c.l.b16 %v1710
        %v1768 = vunpack.c.h.b16 %v1710
        %v1769 = vunpack.c.l.b16 %v1711
        %v1770 = vunpack.c.h.b16 %v1711
        %v1771 = vunpack.c.l.b16 %v1712
        %v1772 = vunpack.c.h.b16 %v1712
        %v1773 = vunpack.c.l.b16 %v1713
        %v1774 = vunpack.c.h.b16 %v1713
        %v1775 = vunpack.c.l.b16 %v1714
        %v1776 = vunpack.c.h.b16 %v1714
        %v1777 = vunpack.c.l.b16 %v1715
        %v1778 = vunpack.c.h.b16 %v1715
        %v1779 = vunpack.c.l.b16 %v1716
        %v1780 = vunpack.c.h.b16 %v1716
        %v1781 = vunpack.c.l.b16 %v1717
        %v1782 = vunpack.c.h.b16 %v1717
        %v1783 = vunpack.c.l.b16 %v1718
        %v1784 = vunpack.c.h.b16 %v1718
        %v1785 = vunpack.c.l.b16 %v1719
        %v1786 = vunpack.c.h.b16 %v1719
        %v1787 = vunpack.c.l.b16 %v1720
        %v1788 = vunpack.c.h.b16 %v1720
        %v1789 = vunpack.c.l.b16 %v1721
        %v1790 = vunpack.c.h.b16 %v1721
        %v1791 = vunpack.c.l.b16 %v1722
        %v1792 = vunpack.c.h.b16 %v1722
        %v1793 = vunpack.c.l.b16 %v1723
        %v1794 = vunpack.c.h.b16 %v1723
        %v1795 = vunpack.c.l.b16 %v1724
        %v1796 = vunpack.c.h.b16 %v1724
        %v1797 = vpack.c.b16 %v1767, %v1765
        %v1798 = vpack.c.b16 %v1768, %v1766
        %v1799 = vpack.c.b16 %v1771, %v1769
        %v1800 = vpack.c.b16 %v1772, %v1770
        %v1801 = vpack.c.b16 %v1775, %v1773
        %v1802 = vpack.c.b16 %v1776, %v1774
        %v1803 = vpack.c.b16 %v1779, %v1777
        %v1804 = vpack.c.b16 %v1780, %v1778
        %v1805 = vpack.c.b16 %v1783, %v1781
        %v1806 = vpack.c.b16 %v1784, %v1782
        %v1807 = vpack.c.b16 %v1787, %v1785
        %v1808 = vpack.c.b16 %v1788, %v1786
        %v1809 = vpack.c.b16 %v1791, %v1789
        %v1810 = vpack.c.b16 %v1792, %v1790
        %v1811 = vpack.c.b16 %v1795, %v1793
        %v1812 = vpack.c.b16 %v1796, %v1794
        %1829 = vmatpush.bf16.msra.mxu0 %v1811
        %1830 = vmatpush.bf16.msra.mxu0 %v1809
        %1831 = vmatpush.bf16.msra.mxu0 %v1807
        %1832 = vmatpush.bf16.msra.mxu0 %v1805
        %1833 = vmatpush.bf16.msra.mxu0 %v1803
        %1834 = vmatpush.bf16.msra.mxu0 %v1801
        %1835 = vmatpush.bf16.msra.mxu0 %v1799
        %1836 = vmatpush.bf16.msra.mxu0 %v1797
        %1837 = vmatmul.bf16.gmra.mxu0 %v1741
        %v1838 = vpop.f32.mrf.mxu0
        %v1839 = vadd.f32 0.0, %v1838
        %v1840 = vpop.f32.mrf.mxu0
        %v1841 = vadd.f32 0.0, %v1840
        %1842 = vmatmul.bf16.gmra.mxu0 %v1742
        %v1843 = vpop.f32.mrf.mxu0
        %v1844 = vadd.f32 0.0, %v1843
        %v1845 = vpop.f32.mrf.mxu0
        %v1846 = vadd.f32 0.0, %v1845
        %1847 = vmatmul.bf16.gmra.mxu0 %v1743
        %v1848 = vpop.f32.mrf.mxu0
        %v1849 = vadd.f32 0.0, %v1848
        %v1850 = vpop.f32.mrf.mxu0
        %v1851 = vadd.f32 0.0, %v1850
        %1852 = vmatmul.bf16.gmra.mxu0 %v1744
        %v1853 = vpop.f32.mrf.mxu0
        %v1854 = vadd.f32 0.0, %v1853
        %v1855 = vpop.f32.mrf.mxu0
        %v1856 = vadd.f32 0.0, %v1855
        %1857 = vdwg.mxu0
        %1858 = vmatpush.bf16.msra.mxu0 %v1812
        %1859 = vmatpush.bf16.msra.mxu0 %v1810
        %1860 = vmatpush.bf16.msra.mxu0 %v1808
        %1861 = vmatpush.bf16.msra.mxu0 %v1806
        %1862 = vmatpush.bf16.msra.mxu0 %v1804
        %1863 = vmatpush.bf16.msra.mxu0 %v1802
        %1864 = vmatpush.bf16.msra.mxu0 %v1800
        %1865 = vmatpush.bf16.msra.mxu0 %v1798
        %1866 = vmatmul.bf16.gmra.mxu0 %v1741
        %v1867 = vpop.f32.mrf.mxu0
        %v1868 = vadd.f32 0.0, %v1867
        %v1869 = vpop.f32.mrf.mxu0
        %v1870 = vadd.f32 0.0, %v1869
        %1871 = vmatmul.bf16.gmra.mxu0 %v1742
        %v1872 = vpop.f32.mrf.mxu0
        %v1873 = vadd.f32 0.0, %v1872
        %v1874 = vpop.f32.mrf.mxu0
        %v1875 = vadd.f32 0.0, %v1874
        %1876 = vmatmul.bf16.gmra.mxu0 %v1743
        %v1877 = vpop.f32.mrf.mxu0
        %v1878 = vadd.f32 0.0, %v1877
        %v1879 = vpop.f32.mrf.mxu0
        %v1880 = vadd.f32 0.0, %v1879
        %1881 = vmatmul.bf16.gmra.mxu0 %v1744
        %v1882 = vpop.f32.mrf.mxu0
        %v1883 = vadd.f32 0.0, %v1882
        %v1884 = vpop.f32.mrf.mxu0
        %v1885 = vadd.f32 0.0, %v1884
        %1886 = vdwg.mxu0
        %vm1887 = vcmp.gt.f32.partialorder %v1839, 5.0
        %vm1888 = vcmp.gt.f32.partialorder %v1841, 5.0
        %vm1889 = vcmp.gt.f32.partialorder %v1844, 5.0
        %vm1890 = vcmp.gt.f32.partialorder %v1846, 5.0
        %vm1891 = vcmp.gt.f32.partialorder %v1849, 5.0
        %vm1892 = vcmp.gt.f32.partialorder %v1851, 5.0
        %vm1893 = vcmp.gt.f32.partialorder %v1854, 5.0
        %vm1894 = vcmp.gt.f32.partialorder %v1856, 5.0
        %v1895 = vmin.f32 %v1839, 5.0
        %v1896 = vmin.f32 %v1841, 5.0
        %v1897 = vmin.f32 %v1844, 5.0
        %v1898 = vmin.f32 %v1846, 5.0
        %v1899 = vmin.f32 %v1849, 5.0
        %v1900 = vmin.f32 %v1851, 5.0
        %v1901 = vmin.f32 %v1854, 5.0
        %v1902 = vmin.f32 %v1856, 5.0
        %v1903 = vmul.f32 %v1895, 1.442695
        %v1904 = vpow.pop %v1903
        %v1905 = vmul.f32 %v1896, 1.442695
        %v1906 = vpow.pop %v1905
        %v1907 = vmul.f32 %v1897, 1.442695
        %v1908 = vpow.pop %v1907
        %v1909 = vmul.f32 %v1898, 1.442695
        %v1910 = vpow.pop %v1909
        %v1911 = vmul.f32 %v1899, 1.442695
        %v1912 = vpow.pop %v1911
        %v1913 = vmul.f32 %v1900, 1.442695
        %v1914 = vpow.pop %v1913
        %v1915 = vmul.f32 %v1901, 1.442695
        %v1916 = vpow.pop %v1915
        %v1917 = vmul.f32 %v1902, 1.442695
        %v1918 = vpow.pop %v1917
        %v1919 = vadd.f32 %v1904, 1.0
        %v1920 = vlog2.pop %v1919
        %v1921 = vmul.f32 %v1920, 0.6931472
        %v1922 = vmul.f32 -0.5, %v1904
        %v1923 = vadd.f32 %v1922, 1.0
        %v1924 = vmul.f32 %v1923, %v1904
        %v1925 = vand.u32 2147483647, %v1904
        %vm1926 = vcmp.lt.f32.partialorder %v1925, 0.0004427343
        %v1927 = vsel %vm1926, %v1924, %v1921
        %v1928 = vadd.f32 %v1906, 1.0
        %v1929 = vlog2.pop %v1928
        %v1930 = vmul.f32 %v1929, 0.6931472
        %v1931 = vmul.f32 -0.5, %v1906
        %v1932 = vadd.f32 %v1931, 1.0
        %v1933 = vmul.f32 %v1932, %v1906
        %v1934 = vand.u32 2147483647, %v1906
        %vm1935 = vcmp.lt.f32.partialorder %v1934, 0.0004427343
        %v1936 = vsel %vm1935, %v1933, %v1930
        %v1937 = vadd.f32 %v1908, 1.0
        %v1938 = vlog2.pop %v1937
        %v1939 = vmul.f32 %v1938, 0.6931472
        %v1940 = vmul.f32 -0.5, %v1908
        %v1941 = vadd.f32 %v1940, 1.0
        %v1942 = vmul.f32 %v1941, %v1908
        %v1943 = vand.u32 2147483647, %v1908
        %vm1944 = vcmp.lt.f32.partialorder %v1943, 0.0004427343
        %v1945 = vsel %vm1944, %v1942, %v1939
        %v1946 = vadd.f32 %v1910, 1.0
        %v1947 = vlog2.pop %v1946
        %v1948 = vmul.f32 %v1947, 0.6931472
        %v1949 = vmul.f32 -0.5, %v1910
        %v1950 = vadd.f32 %v1949, 1.0
        %v1951 = vmul.f32 %v1950, %v1910
        %v1952 = vand.u32 2147483647, %v1910
        %vm1953 = vcmp.lt.f32.partialorder %v1952, 0.0004427343
        %v1954 = vsel %vm1953, %v1951, %v1948
        %v1955 = vadd.f32 %v1912, 1.0
        %v1956 = vlog2.pop %v1955
        %v1957 = vmul.f32 %v1956, 0.6931472
        %v1958 = vmul.f32 -0.5, %v1912
        %v1959 = vadd.f32 %v1958, 1.0
        %v1960 = vmul.f32 %v1959, %v1912
        %v1961 = vand.u32 2147483647, %v1912
        %vm1962 = vcmp.lt.f32.partialorder %v1961, 0.0004427343
        %v1963 = vsel %vm1962, %v1960, %v1957
        %v1964 = vadd.f32 %v1914, 1.0
        %v1965 = vlog2.pop %v1964
        %v1966 = vmul.f32 %v1965, 0.6931472
        %v1967 = vmul.f32 -0.5, %v1914
        %v1968 = vadd.f32 %v1967, 1.0
        %v1969 = vmul.f32 %v1968, %v1914
        %v1970 = vand.u32 2147483647, %v1914
        %vm1971 = vcmp.lt.f32.partialorder %v1970, 0.0004427343
        %v1972 = vsel %vm1971, %v1969, %v1966
        %v1973 = vadd.f32 %v1916, 1.0
        %v1974 = vlog2.pop %v1973
        %v1975 = vmul.f32 %v1974, 0.6931472
        %v1976 = vmul.f32 -0.5, %v1916
        %v1977 = vadd.f32 %v1976, 1.0
        %v1978 = vmul.f32 %v1977, %v1916
        %v1979 = vand.u32 2147483647, %v1916
        %vm1980 = vcmp.lt.f32.partialorder %v1979, 0.0004427343
        %v1981 = vsel %vm1980, %v1978, %v1975
        %v1982 = vadd.f32 %v1918, 1.0
        %v1983 = vlog2.pop %v1982
        %v1984 = vmul.f32 %v1983, 0.6931472
        %v1985 = vmul.f32 -0.5, %v1918
        %v1986 = vadd.f32 %v1985, 1.0
        %v1987 = vmul.f32 %v1986, %v1918
        %v1988 = vand.u32 2147483647, %v1918
        %vm1989 = vcmp.lt.f32.partialorder %v1988, 0.0004427343
        %v1990 = vsel %vm1989, %v1987, %v1984
        %v1991 = vsel %vm1887, %v1839, %v1927
        %v1992 = vsel %vm1888, %v1841, %v1936
        %v1993 = vsel %vm1889, %v1844, %v1945
        %v1994 = vsel %vm1890, %v1846, %v1954
        %v1995 = vsel %vm1891, %v1849, %v1963
        %v1996 = vsel %vm1892, %v1851, %v1972
        %v1997 = vsel %vm1893, %v1854, %v1981
        %v1998 = vsel %vm1894, %v1856, %v1990
        %v1999 = vpack.c.bf16 %v1991, %v1991
        %v2000 = vpack.c.bf16 %v1992, %v1992
        %v2001 = vpack.c.bf16 %v1993, %v1993
        %v2002 = vpack.c.bf16 %v1994, %v1994
        %v2003 = vpack.c.bf16 %v1995, %v1995
        %v2004 = vpack.c.bf16 %v1996, %v1996
        %v2005 = vpack.c.bf16 %v1997, %v1997
        %v2006 = vpack.c.bf16 %v1998, %v1998
        %v2007 = vtanh.pop %v1868
        %v2008 = vtanh.pop %v1870
        %v2009 = vtanh.pop %v1873
        %v2010 = vtanh.pop %v1875
        %v2011 = vtanh.pop %v1878
        %v2012 = vtanh.pop %v1880
        %v2013 = vtanh.pop %v1883
        %v2014 = vtanh.pop %v1885
        %v2015 = vpack.c.bf16 %v2008, %v2007
        %v2016 = vpack.c.bf16 %v2010, %v2009
        %v2017 = vpack.c.bf16 %v2012, %v2011
        %v2018 = vpack.c.bf16 %v2014, %v2013
        %v2019 = vld [vmem:[#allocation11] sm:$0xf]
        %v2020 = vld [vmem:[#allocation11 + $0x4] sm:$0xf]
        %v2021 = vld [vmem:[#allocation11 + $0x8] sm:$0xf]
        %v2022 = vld [vmem:[#allocation11 + $0xc] sm:$0xf]
        %v2023 = vld [vmem:[#allocation11 + $0x10] sm:$0xf]
        %v2024 = vld [vmem:[#allocation11 + $0x14] sm:$0xf]
        %v2025 = vld [vmem:[#allocation11 + $0x18] sm:$0xf]
        %v2026 = vld [vmem:[#allocation11 + $0x1c] sm:$0xf]
        %v2027 = vld [vmem:[#allocation11 + $0x20] sm:$0xf]
        %v2028 = vld [vmem:[#allocation11 + $0x24] sm:$0xf]
        %v2029 = vld [vmem:[#allocation11 + $0x28] sm:$0xf]
        %v2030 = vld [vmem:[#allocation11 + $0x2c] sm:$0xf]
        %v2031 = vld [vmem:[#allocation11 + $0x30] sm:$0xf]
        %v2032 = vld [vmem:[#allocation11 + $0x34] sm:$0xf]
        %v2033 = vld [vmem:[#allocation11 + $0x38] sm:$0xf]
        %v2034 = vld [vmem:[#allocation11 + $0x3c] sm:$0xf]
        %v2051 = vunpack.c.l.b16 %v2019
        %v2052 = vunpack.c.l.b16 %v2020
        %v2053 = vunpack.c.l.b16 %v2021
        %v2054 = vunpack.c.l.b16 %v2022
        %v2055 = vunpack.c.l.b16 %v2023
        %v2056 = vunpack.c.l.b16 %v2024
        %v2057 = vunpack.c.l.b16 %v2025
        %v2058 = vunpack.c.l.b16 %v2026
        %v2059 = vunpack.c.l.b16 %v2027
        %v2060 = vunpack.c.l.b16 %v2028
        %v2061 = vunpack.c.l.b16 %v2029
        %v2062 = vunpack.c.l.b16 %v2030
        %v2063 = vunpack.c.l.b16 %v2031
        %v2064 = vunpack.c.l.b16 %v2032
        %v2065 = vunpack.c.l.b16 %v2033
        %v2066 = vunpack.c.l.b16 %v2034
        %v2067 = vpack.c.b16 %v2052, %v2051
        %v2068 = vpack.c.b16 %v2054, %v2053
        %v2069 = vpack.c.b16 %v2056, %v2055
        %v2070 = vpack.c.b16 %v2058, %v2057
        %v2071 = vpack.c.b16 %v2060, %v2059
        %v2072 = vpack.c.b16 %v2062, %v2061
        %v2073 = vpack.c.b16 %v2064, %v2063
        %v2074 = vpack.c.b16 %v2066, %v2065
        %2083 = vmatpush.bf16.msra.mxu0 %v2074
        %2084 = vmatpush.bf16.msra.mxu0 %v2073
        %2085 = vmatpush.bf16.msra.mxu0 %v2072
        %2086 = vmatpush.bf16.msra.mxu0 %v2071
        %2087 = vmatpush.bf16.msra.mxu0 %v2070
        %2088 = vmatpush.bf16.msra.mxu0 %v2069
        %2089 = vmatpush.bf16.msra.mxu0 %v2068
        %2090 = vmatpush.bf16.msra.mxu0 %v2067
        %2091 = vmatmul.bf16.gmra.mxu0 %v2015
        %v2092 = vpop.f32.mrf.mxu0
        %v2093 = vadd.f32 0.0, %v2092
        %v2094 = vpop.f32.mrf.mxu0
        %v2095 = vadd.f32 0.0, %v2094
        %2096 = vmatmul.bf16.gmra.mxu0 %v2016
        %v2097 = vpop.f32.mrf.mxu0
        %v2098 = vadd.f32 0.0, %v2097
        %v2099 = vpop.f32.mrf.mxu0
        %v2100 = vadd.f32 0.0, %v2099
        %2101 = vmatmul.bf16.gmra.mxu0 %v2017
        %v2102 = vpop.f32.mrf.mxu0
        %v2103 = vadd.f32 0.0, %v2102
        %v2104 = vpop.f32.mrf.mxu0
        %v2105 = vadd.f32 0.0, %v2104
        %2106 = vmatmul.bf16.gmra.mxu0 %v2018
        %v2107 = vpop.f32.mrf.mxu0
        %v2108 = vadd.f32 0.0, %v2107
        %v2109 = vpop.f32.mrf.mxu0
        %v2110 = vadd.f32 0.0, %v2109
        %2111 = vdwg.mxu0
        %vm2112 = vcmp.gt.f32.partialorder %v2093, 5.0
        %vm2113 = vcmp.gt.f32.partialorder %v2095, 5.0
        %vm2114 = vcmp.gt.f32.partialorder %v2098, 5.0
        %vm2115 = vcmp.gt.f32.partialorder %v2100, 5.0
        %vm2116 = vcmp.gt.f32.partialorder %v2103, 5.0
        %vm2117 = vcmp.gt.f32.partialorder %v2105, 5.0
        %vm2118 = vcmp.gt.f32.partialorder %v2108, 5.0
        %vm2119 = vcmp.gt.f32.partialorder %v2110, 5.0
        %v2120 = vmin.f32 %v2093, 5.0
        %v2121 = vmin.f32 %v2095, 5.0
        %v2122 = vmin.f32 %v2098, 5.0
        %v2123 = vmin.f32 %v2100, 5.0
        %v2124 = vmin.f32 %v2103, 5.0
        %v2125 = vmin.f32 %v2105, 5.0
        %v2126 = vmin.f32 %v2108, 5.0
        %v2127 = vmin.f32 %v2110, 5.0
        %v2128 = vmul.f32 %v2120, 1.442695
        %v2129 = vpow.pop %v2128
        %v2130 = vmul.f32 %v2121, 1.442695
        %v2131 = vpow.pop %v2130
        %v2132 = vmul.f32 %v2122, 1.442695
        %v2133 = vpow.pop %v2132
        %v2134 = vmul.f32 %v2123, 1.442695
        %v2135 = vpow.pop %v2134
        %v2136 = vmul.f32 %v2124, 1.442695
        %v2137 = vpow.pop %v2136
        %v2138 = vmul.f32 %v2125, 1.442695
        %v2139 = vpow.pop %v2138
        %v2140 = vmul.f32 %v2126, 1.442695
        %v2141 = vpow.pop %v2140
        %v2142 = vmul.f32 %v2127, 1.442695
        %v2143 = vpow.pop %v2142
        %v2144 = vadd.f32 %v2129, 1.0
        %v2145 = vlog2.pop %v2144
        %v2146 = vmul.f32 %v2145, 0.6931472
        %v2147 = vmul.f32 -0.5, %v2129
        %v2148 = vadd.f32 %v2147, 1.0
        %v2149 = vmul.f32 %v2148, %v2129
        %v2150 = vand.u32 2147483647, %v2129
        %vm2151 = vcmp.lt.f32.partialorder %v2150, 0.0004427343
        %v2152 = vsel %vm2151, %v2149, %v2146
        %v2153 = vadd.f32 %v2131, 1.0
        %v2154 = vlog2.pop %v2153
        %v2155 = vmul.f32 %v2154, 0.6931472
        %v2156 = vmul.f32 -0.5, %v2131
        %v2157 = vadd.f32 %v2156, 1.0
        %v2158 = vmul.f32 %v2157, %v2131
        %v2159 = vand.u32 2147483647, %v2131
        %vm2160 = vcmp.lt.f32.partialorder %v2159, 0.0004427343
        %v2161 = vsel %vm2160, %v2158, %v2155
        %v2162 = vadd.f32 %v2133, 1.0
        %v2163 = vlog2.pop %v2162
        %v2164 = vmul.f32 %v2163, 0.6931472
        %v2165 = vmul.f32 -0.5, %v2133
        %v2166 = vadd.f32 %v2165, 1.0
        %v2167 = vmul.f32 %v2166, %v2133
        %v2168 = vand.u32 2147483647, %v2133
        %vm2169 = vcmp.lt.f32.partialorder %v2168, 0.0004427343
        %v2170 = vsel %vm2169, %v2167, %v2164
        %v2171 = vadd.f32 %v2135, 1.0
        %v2172 = vlog2.pop %v2171
        %v2173 = vmul.f32 %v2172, 0.6931472
        %v2174 = vmul.f32 -0.5, %v2135
        %v2175 = vadd.f32 %v2174, 1.0
        %v2176 = vmul.f32 %v2175, %v2135
        %v2177 = vand.u32 2147483647, %v2135
        %vm2178 = vcmp.lt.f32.partialorder %v2177, 0.0004427343
        %v2179 = vsel %vm2178, %v2176, %v2173
        %v2180 = vadd.f32 %v2137, 1.0
        %v2181 = vlog2.pop %v2180
        %v2182 = vmul.f32 %v2181, 0.6931472
        %v2183 = vmul.f32 -0.5, %v2137
        %v2184 = vadd.f32 %v2183, 1.0
        %v2185 = vmul.f32 %v2184, %v2137
        %v2186 = vand.u32 2147483647, %v2137
        %vm2187 = vcmp.lt.f32.partialorder %v2186, 0.0004427343
        %v2188 = vsel %vm2187, %v2185, %v2182
        %v2189 = vadd.f32 %v2139, 1.0
        %v2190 = vlog2.pop %v2189
        %v2191 = vmul.f32 %v2190, 0.6931472
        %v2192 = vmul.f32 -0.5, %v2139
        %v2193 = vadd.f32 %v2192, 1.0
        %v2194 = vmul.f32 %v2193, %v2139
        %v2195 = vand.u32 2147483647, %v2139
        %vm2196 = vcmp.lt.f32.partialorder %v2195, 0.0004427343
        %v2197 = vsel %vm2196, %v2194, %v2191
        %v2198 = vadd.f32 %v2141, 1.0
        %v2199 = vlog2.pop %v2198
        %v2200 = vmul.f32 %v2199, 0.6931472
        %v2201 = vmul.f32 -0.5, %v2141
        %v2202 = vadd.f32 %v2201, 1.0
        %v2203 = vmul.f32 %v2202, %v2141
        %v2204 = vand.u32 2147483647, %v2141
        %vm2205 = vcmp.lt.f32.partialorder %v2204, 0.0004427343
        %v2206 = vsel %vm2205, %v2203, %v2200
        %v2207 = vadd.f32 %v2143, 1.0
        %v2208 = vlog2.pop %v2207
        %v2209 = vmul.f32 %v2208, 0.6931472
        %v2210 = vmul.f32 -0.5, %v2143
        %v2211 = vadd.f32 %v2210, 1.0
        %v2212 = vmul.f32 %v2211, %v2143
        %v2213 = vand.u32 2147483647, %v2143
        %vm2214 = vcmp.lt.f32.partialorder %v2213, 0.0004427343
        %v2215 = vsel %vm2214, %v2212, %v2209
        %v2216 = vsel %vm2112, %v2093, %v2152
        %v2217 = vsel %vm2113, %v2095, %v2161
        %v2218 = vsel %vm2114, %v2098, %v2170
        %v2219 = vsel %vm2115, %v2100, %v2179
        %v2220 = vsel %vm2116, %v2103, %v2188
        %v2221 = vsel %vm2117, %v2105, %v2197
        %v2222 = vsel %vm2118, %v2108, %v2206
        %v2223 = vsel %vm2119, %v2110, %v2215
        %v2224 = vpack.c.bf16 %v2217, %v2216
        %v2225 = vpack.c.bf16 %v2219, %v2218
        %v2226 = vpack.c.bf16 %v2221, %v2220
        %v2227 = vpack.c.bf16 %v2223, %v2222
        %v2228 = vld [vmem:[#allocation13] sm:$0xf]
        %v2229 = vld [vmem:[#allocation13 + $0x4] sm:$0xf]
        %v2230 = vld [vmem:[#allocation13 + $0x8] sm:$0xf]
        %v2231 = vld [vmem:[#allocation13 + $0xc] sm:$0xf]
        %v2232 = vld [vmem:[#allocation13 + $0x10] sm:$0xf]
        %v2233 = vld [vmem:[#allocation13 + $0x14] sm:$0xf]
        %v2234 = vld [vmem:[#allocation13 + $0x18] sm:$0xf]
        %v2235 = vld [vmem:[#allocation13 + $0x1c] sm:$0xf]
        %v2236 = vld [vmem:[#allocation13 + $0x20] sm:$0xf]
        %v2237 = vld [vmem:[#allocation13 + $0x24] sm:$0xf]
        %v2238 = vld [vmem:[#allocation13 + $0x28] sm:$0xf]
        %v2239 = vld [vmem:[#allocation13 + $0x2c] sm:$0xf]
        %v2240 = vld [vmem:[#allocation13 + $0x30] sm:$0xf]
        %v2241 = vld [vmem:[#allocation13 + $0x34] sm:$0xf]
        %v2242 = vld [vmem:[#allocation13 + $0x38] sm:$0xf]
        %v2243 = vld [vmem:[#allocation13 + $0x3c] sm:$0xf]
        %v2260 = vunpack.c.l.b16 %v2228
        %v2261 = vunpack.c.l.b16 %v2229
        %v2262 = vunpack.c.l.b16 %v2230
        %v2263 = vunpack.c.l.b16 %v2231
        %v2264 = vunpack.c.l.b16 %v2232
        %v2265 = vunpack.c.l.b16 %v2233
        %v2266 = vunpack.c.l.b16 %v2234
        %v2267 = vunpack.c.l.b16 %v2235
        %v2268 = vunpack.c.l.b16 %v2236
        %v2269 = vunpack.c.l.b16 %v2237
        %v2270 = vunpack.c.l.b16 %v2238
        %v2271 = vunpack.c.l.b16 %v2239
        %v2272 = vunpack.c.l.b16 %v2240
        %v2273 = vunpack.c.l.b16 %v2241
        %v2274 = vunpack.c.l.b16 %v2242
        %v2275 = vunpack.c.l.b16 %v2243
        %v2276 = vpack.c.b16 %v2261, %v2260
        %v2277 = vpack.c.b16 %v2263, %v2262
        %v2278 = vpack.c.b16 %v2265, %v2264
        %v2279 = vpack.c.b16 %v2267, %v2266
        %v2280 = vpack.c.b16 %v2269, %v2268
        %v2281 = vpack.c.b16 %v2271, %v2270
        %v2282 = vpack.c.b16 %v2273, %v2272
        %v2283 = vpack.c.b16 %v2275, %v2274
        %2292 = vmatpush.bf16.msra.mxu0 %v2283
        %2293 = vmatpush.bf16.msra.mxu0 %v2282
        %2294 = vmatpush.bf16.msra.mxu0 %v2281
        %2295 = vmatpush.bf16.msra.mxu0 %v2280
        %2296 = vmatpush.bf16.msra.mxu0 %v2279
        %2297 = vmatpush.bf16.msra.mxu0 %v2278
        %2298 = vmatpush.bf16.msra.mxu0 %v2277
        %2299 = vmatpush.bf16.msra.mxu0 %v2276
        %2300 = vmatmul.bf16.gmra.mxu0 %v2224
        %v2301 = vpop.f32.mrf.mxu0
        %v2302 = vadd.f32 0.0, %v2301
        %v2303 = vpop.f32.mrf.mxu0
        %v2304 = vadd.f32 0.0, %v2303
        %2305 = vmatmul.bf16.gmra.mxu0 %v2225
        %v2306 = vpop.f32.mrf.mxu0
        %v2307 = vadd.f32 0.0, %v2306
        %v2308 = vpop.f32.mrf.mxu0
        %v2309 = vadd.f32 0.0, %v2308
        %2310 = vmatmul.bf16.gmra.mxu0 %v2226
        %v2311 = vpop.f32.mrf.mxu0
        %v2312 = vadd.f32 0.0, %v2311
        %v2313 = vpop.f32.mrf.mxu0
        %v2314 = vadd.f32 0.0, %v2313
        %2315 = vmatmul.bf16.gmra.mxu0 %v2227
        %v2316 = vpop.f32.mrf.mxu0
        %v2317 = vadd.f32 0.0, %v2316
        %v2318 = vpop.f32.mrf.mxu0
        %v2319 = vadd.f32 0.0, %v2318
        %2320 = vdwg.mxu0
        %vm2321 = vcmp.gt.f32.partialorder %v2302, 0.0
        %vm2322 = vcmp.gt.f32.partialorder %v2304, 0.0
        %vm2323 = vcmp.gt.f32.partialorder %v2307, 0.0
        %vm2324 = vcmp.gt.f32.partialorder %v2309, 0.0
        %vm2325 = vcmp.gt.f32.partialorder %v2312, 0.0
        %vm2326 = vcmp.gt.f32.partialorder %v2314, 0.0
        %vm2327 = vcmp.gt.f32.partialorder %v2317, 0.0
        %vm2328 = vcmp.gt.f32.partialorder %v2319, 0.0
        %vm2329 = vmpackc.low %vm2321, %vm2321
        %vm2330 = vmpackc.low %vm2322, %vm2322
        %vm2331 = vmpackc.low %vm2323, %vm2323
        %vm2332 = vmpackc.low %vm2324, %vm2324
        %vm2333 = vmpackc.low %vm2325, %vm2325
        %vm2334 = vmpackc.low %vm2326, %vm2326
        %vm2335 = vmpackc.low %vm2327, %vm2327
        %vm2336 = vmpackc.low %vm2328, %vm2328
        %v2337 = vsel %vm2329, %v1999, 0
        %v2338 = vsel %vm2330, %v2000, 0
        %v2339 = vsel %vm2331, %v2001, 0
        %v2340 = vsel %vm2332, %v2002, 0
        %v2341 = vsel %vm2333, %v2003, 0
        %v2342 = vsel %vm2334, %v2004, 0
        %v2343 = vsel %vm2335, %v2005, 0
        %v2344 = vsel %vm2336, %v2006, 0
        %v2345 = vld [vmem:[#allocation7] sm:$0xf]
        %v2346 = vld [vmem:[#allocation7 + $0x4] sm:$0xf]
        %v2347 = vld [vmem:[#allocation7 + $0x8] sm:$0xf]
        %v2348 = vld [vmem:[#allocation7 + $0xc] sm:$0xf]
        %v2349 = vld [vmem:[#allocation7 + $0x10] sm:$0xf]
        %v2350 = vld [vmem:[#allocation7 + $0x14] sm:$0xf]
        %v2351 = vld [vmem:[#allocation7 + $0x18] sm:$0xf]
        %v2352 = vld [vmem:[#allocation7 + $0x1c] sm:$0xf]
        %v2353 = vld [vmem:[#allocation7 + $0x20] sm:$0xf]
        %v2354 = vld [vmem:[#allocation7 + $0x24] sm:$0xf]
        %v2355 = vld [vmem:[#allocation7 + $0x28] sm:$0xf]
        %v2356 = vld [vmem:[#allocation7 + $0x2c] sm:$0xf]
        %v2357 = vld [vmem:[#allocation7 + $0x30] sm:$0xf]
        %v2358 = vld [vmem:[#allocation7 + $0x34] sm:$0xf]
        %v2359 = vld [vmem:[#allocation7 + $0x38] sm:$0xf]
        %v2360 = vld [vmem:[#allocation7 + $0x3c] sm:$0xf]
        %v2369 = vunpack.c.l.b16 %v2337
        %v2370 = vunpack.c.l.b16 %v2338
        %v2371 = vunpack.c.l.b16 %v2339
        %v2372 = vunpack.c.l.b16 %v2340
        %v2373 = vunpack.c.l.b16 %v2341
        %v2374 = vunpack.c.l.b16 %v2342
        %v2375 = vunpack.c.l.b16 %v2343
        %v2376 = vunpack.c.l.b16 %v2344
        %v2377 = vpack.c.b16 %v2370, %v2369
        %v2378 = vpack.c.b16 %v2372, %v2371
        %v2379 = vpack.c.b16 %v2374, %v2373
        %v2380 = vpack.c.b16 %v2376, %v2375
        %v2401 = vunpack.c.l.b16 %v2345
        %v2402 = vunpack.c.l.b16 %v2346
        %v2403 = vunpack.c.l.b16 %v2347
        %v2404 = vunpack.c.l.b16 %v2348
        %v2405 = vunpack.c.l.b16 %v2349
        %v2406 = vunpack.c.l.b16 %v2350
        %v2407 = vunpack.c.l.b16 %v2351
        %v2408 = vunpack.c.l.b16 %v2352
        %v2409 = vunpack.c.l.b16 %v2353
        %v2410 = vunpack.c.l.b16 %v2354
        %v2411 = vunpack.c.l.b16 %v2355
        %v2412 = vunpack.c.l.b16 %v2356
        %v2413 = vunpack.c.l.b16 %v2357
        %v2414 = vunpack.c.l.b16 %v2358
        %v2415 = vunpack.c.l.b16 %v2359
        %v2416 = vunpack.c.l.b16 %v2360
        %v2417 = vpack.c.b16 %v2402, %v2401
        %v2418 = vpack.c.b16 %v2404, %v2403
        %v2419 = vpack.c.b16 %v2406, %v2405
        %v2420 = vpack.c.b16 %v2408, %v2407
        %v2421 = vpack.c.b16 %v2410, %v2409
        %v2422 = vpack.c.b16 %v2412, %v2411
        %v2423 = vpack.c.b16 %v2414, %v2413
        %v2424 = vpack.c.b16 %v2416, %v2415
        %2433 = vmatpush.bf16.msra.mxu0 %v2424
        %2434 = vmatpush.bf16.msra.mxu0 %v2423
        %2435 = vmatpush.bf16.msra.mxu0 %v2422
        %2436 = vmatpush.bf16.msra.mxu0 %v2421
        %2437 = vmatpush.bf16.msra.mxu0 %v2420
        %2438 = vmatpush.bf16.msra.mxu0 %v2419
        %2439 = vmatpush.bf16.msra.mxu0 %v2418
        %2440 = vmatpush.bf16.msra.mxu0 %v2417
        %2441 = vmatmul.bf16.gmra.mxu0 %v2377
        %v2442 = vpop.f32.mrf.mxu0
        %v2443 = vadd.f32 0.0, %v2442
        %v2444 = vpop.f32.mrf.mxu0
        %v2445 = vadd.f32 0.0, %v2444
        %2446 = vmatmul.bf16.gmra.mxu0 %v2378
        %v2447 = vpop.f32.mrf.mxu0
        %v2448 = vadd.f32 0.0, %v2447
        %v2449 = vpop.f32.mrf.mxu0
        %v2450 = vadd.f32 0.0, %v2449
        %2451 = vmatmul.bf16.gmra.mxu0 %v2379
        %v2452 = vpop.f32.mrf.mxu0
        %v2453 = vadd.f32 0.0, %v2452
        %v2454 = vpop.f32.mrf.mxu0
        %v2455 = vadd.f32 0.0, %v2454
        %2456 = vmatmul.bf16.gmra.mxu0 %v2380
        %v2457 = vpop.f32.mrf.mxu0
        %v2458 = vadd.f32 0.0, %v2457
        %v2459 = vpop.f32.mrf.mxu0
        %v2460 = vadd.f32 0.0, %v2459
        %2461 = vdwg.mxu0
        %vm2462 = vcmp.gt.f32.partialorder %v2443, 5.0
        %vm2463 = vcmp.gt.f32.partialorder %v2445, 5.0
        %vm2464 = vcmp.gt.f32.partialorder %v2448, 5.0
        %vm2465 = vcmp.gt.f32.partialorder %v2450, 5.0
        %vm2466 = vcmp.gt.f32.partialorder %v2453, 5.0
        %vm2467 = vcmp.gt.f32.partialorder %v2455, 5.0
        %vm2468 = vcmp.gt.f32.partialorder %v2458, 5.0
        %vm2469 = vcmp.gt.f32.partialorder %v2460, 5.0
        %v2470 = vmin.f32 %v2443, 5.0
        %v2471 = vmin.f32 %v2445, 5.0
        %v2472 = vmin.f32 %v2448, 5.0
        %v2473 = vmin.f32 %v2450, 5.0
        %v2474 = vmin.f32 %v2453, 5.0
        %v2475 = vmin.f32 %v2455, 5.0
        %v2476 = vmin.f32 %v2458, 5.0
        %v2477 = vmin.f32 %v2460, 5.0
        %v2478 = vmul.f32 %v2470, 1.442695
        %v2479 = vpow.pop %v2478
        %v2480 = vmul.f32 %v2471, 1.442695
        %v2481 = vpow.pop %v2480
        %v2482 = vmul.f32 %v2472, 1.442695
        %v2483 = vpow.pop %v2482
        %v2484 = vmul.f32 %v2473, 1.442695
        %v2485 = vpow.pop %v2484
        %v2486 = vmul.f32 %v2474, 1.442695
        %v2487 = vpow.pop %v2486
        %v2488 = vmul.f32 %v2475, 1.442695
        %v2489 = vpow.pop %v2488
        %v2490 = vmul.f32 %v2476, 1.442695
        %v2491 = vpow.pop %v2490
        %v2492 = vmul.f32 %v2477, 1.442695
        %v2493 = vpow.pop %v2492
        %v2494 = vadd.f32 %v2479, 1.0
        %v2495 = vlog2.pop %v2494
        %v2496 = vmul.f32 %v2495, 0.6931472
        %v2497 = vmul.f32 -0.5, %v2479
        %v2498 = vadd.f32 %v2497, 1.0
        %v2499 = vmul.f32 %v2498, %v2479
        %v2500 = vand.u32 2147483647, %v2479
        %vm2501 = vcmp.lt.f32.partialorder %v2500, 0.0004427343
        %v2502 = vsel %vm2501, %v2499, %v2496
        %v2503 = vadd.f32 %v2481, 1.0
        %v2504 = vlog2.pop %v2503
        %v2505 = vmul.f32 %v2504, 0.6931472
        %v2506 = vmul.f32 -0.5, %v2481
        %v2507 = vadd.f32 %v2506, 1.0
        %v2508 = vmul.f32 %v2507, %v2481
        %v2509 = vand.u32 2147483647, %v2481
        %vm2510 = vcmp.lt.f32.partialorder %v2509, 0.0004427343
        %v2511 = vsel %vm2510, %v2508, %v2505
        %v2512 = vadd.f32 %v2483, 1.0
        %v2513 = vlog2.pop %v2512
        %v2514 = vmul.f32 %v2513, 0.6931472
        %v2515 = vmul.f32 -0.5, %v2483
        %v2516 = vadd.f32 %v2515, 1.0
        %v2517 = vmul.f32 %v2516, %v2483
        %v2518 = vand.u32 2147483647, %v2483
        %vm2519 = vcmp.lt.f32.partialorder %v2518, 0.0004427343
        %v2520 = vsel %vm2519, %v2517, %v2514
        %v2521 = vadd.f32 %v2485, 1.0
        %v2522 = vlog2.pop %v2521
        %v2523 = vmul.f32 %v2522, 0.6931472
        %v2524 = vmul.f32 -0.5, %v2485
        %v2525 = vadd.f32 %v2524, 1.0
        %v2526 = vmul.f32 %v2525, %v2485
        %v2527 = vand.u32 2147483647, %v2485
        %vm2528 = vcmp.lt.f32.partialorder %v2527, 0.0004427343
        %v2529 = vsel %vm2528, %v2526, %v2523
        %v2530 = vadd.f32 %v2487, 1.0
        %v2531 = vlog2.pop %v2530
        %v2532 = vmul.f32 %v2531, 0.6931472
        %v2533 = vmul.f32 -0.5, %v2487
        %v2534 = vadd.f32 %v2533, 1.0
        %v2535 = vmul.f32 %v2534, %v2487
        %v2536 = vand.u32 2147483647, %v2487
        %vm2537 = vcmp.lt.f32.partialorder %v2536, 0.0004427343
        %v2538 = vsel %vm2537, %v2535, %v2532
        %v2539 = vadd.f32 %v2489, 1.0
        %v2540 = vlog2.pop %v2539
        %v2541 = vmul.f32 %v2540, 0.6931472
        %v2542 = vmul.f32 -0.5, %v2489
        %v2543 = vadd.f32 %v2542, 1.0
        %v2544 = vmul.f32 %v2543, %v2489
        %v2545 = vand.u32 2147483647, %v2489
        %vm2546 = vcmp.lt.f32.partialorder %v2545, 0.0004427343
        %v2547 = vsel %vm2546, %v2544, %v2541
        %v2548 = vadd.f32 %v2491, 1.0
        %v2549 = vlog2.pop %v2548
        %v2550 = vmul.f32 %v2549, 0.6931472
        %v2551 = vmul.f32 -0.5, %v2491
        %v2552 = vadd.f32 %v2551, 1.0
        %v2553 = vmul.f32 %v2552, %v2491
        %v2554 = vand.u32 2147483647, %v2491
        %vm2555 = vcmp.lt.f32.partialorder %v2554, 0.0004427343
        %v2556 = vsel %vm2555, %v2553, %v2550
        %v2557 = vadd.f32 %v2493, 1.0
        %v2558 = vlog2.pop %v2557
        %v2559 = vmul.f32 %v2558, 0.6931472
        %v2560 = vmul.f32 -0.5, %v2493
        %v2561 = vadd.f32 %v2560, 1.0
        %v2562 = vmul.f32 %v2561, %v2493
        %v2563 = vand.u32 2147483647, %v2493
        %vm2564 = vcmp.lt.f32.partialorder %v2563, 0.0004427343
        %v2565 = vsel %vm2564, %v2562, %v2559
        %v2566 = vsel %vm2462, %v2443, %v2502
        %v2567 = vsel %vm2463, %v2445, %v2511
        %v2568 = vsel %vm2464, %v2448, %v2520
        %v2569 = vsel %vm2465, %v2450, %v2529
        %v2570 = vsel %vm2466, %v2453, %v2538
        %v2571 = vsel %vm2467, %v2455, %v2547
        %v2572 = vsel %vm2468, %v2458, %v2556
        %v2573 = vsel %vm2469, %v2460, %v2565
        %v2574 = vpack.c.bf16 %v2567, %v2566
        %v2575 = vpack.c.bf16 %v2569, %v2568
        %v2576 = vpack.c.bf16 %v2571, %v2570
        %v2577 = vpack.c.bf16 %v2573, %v2572
        %v2578 = vld [vmem:[#allocation8] sm:$0xf]
        %v2579 = vld [vmem:[#allocation8 + $0x4] sm:$0xf]
        %v2580 = vld [vmem:[#allocation8 + $0x8] sm:$0xf]
        %v2581 = vld [vmem:[#allocation8 + $0xc] sm:$0xf]
        %v2582 = vld [vmem:[#allocation8 + $0x10] sm:$0xf]
        %v2583 = vld [vmem:[#allocation8 + $0x14] sm:$0xf]
        %v2584 = vld [vmem:[#allocation8 + $0x18] sm:$0xf]
        %v2585 = vld [vmem:[#allocation8 + $0x1c] sm:$0xf]
        %v2586 = vld [vmem:[#allocation8 + $0x20] sm:$0xf]
        %v2587 = vld [vmem:[#allocation8 + $0x24] sm:$0xf]
        %v2588 = vld [vmem:[#allocation8 + $0x28] sm:$0xf]
        %v2589 = vld [vmem:[#allocation8 + $0x2c] sm:$0xf]
        %v2590 = vld [vmem:[#allocation8 + $0x30] sm:$0xf]
        %v2591 = vld [vmem:[#allocation8 + $0x34] sm:$0xf]
        %v2592 = vld [vmem:[#allocation8 + $0x38] sm:$0xf]
        %v2593 = vld [vmem:[#allocation8 + $0x3c] sm:$0xf]
        %v2610 = vunpack.c.l.b16 %v2578
        %v2611 = vunpack.c.l.b16 %v2579
        %v2612 = vunpack.c.l.b16 %v2580
        %v2613 = vunpack.c.l.b16 %v2581
        %v2614 = vunpack.c.l.b16 %v2582
        %v2615 = vunpack.c.l.b16 %v2583
        %v2616 = vunpack.c.l.b16 %v2584
        %v2617 = vunpack.c.l.b16 %v2585
        %v2618 = vunpack.c.l.b16 %v2586
        %v2619 = vunpack.c.l.b16 %v2587
        %v2620 = vunpack.c.l.b16 %v2588
        %v2621 = vunpack.c.l.b16 %v2589
        %v2622 = vunpack.c.l.b16 %v2590
        %v2623 = vunpack.c.l.b16 %v2591
        %v2624 = vunpack.c.l.b16 %v2592
        %v2625 = vunpack.c.l.b16 %v2593
        %v2626 = vpack.c.b16 %v2611, %v2610
        %v2627 = vpack.c.b16 %v2613, %v2612
        %v2628 = vpack.c.b16 %v2615, %v2614
        %v2629 = vpack.c.b16 %v2617, %v2616
        %v2630 = vpack.c.b16 %v2619, %v2618
        %v2631 = vpack.c.b16 %v2621, %v2620
        %v2632 = vpack.c.b16 %v2623, %v2622
        %v2633 = vpack.c.b16 %v2625, %v2624
        %2642 = vmatpush.bf16.msra.mxu0 %v2633
        %2643 = vmatpush.bf16.msra.mxu0 %v2632
        %2644 = vmatpush.bf16.msra.mxu0 %v2631
        %2645 = vmatpush.bf16.msra.mxu0 %v2630
        %2646 = vmatpush.bf16.msra.mxu0 %v2629
        %2647 = vmatpush.bf16.msra.mxu0 %v2628
        %2648 = vmatpush.bf16.msra.mxu0 %v2627
        %2649 = vmatpush.bf16.msra.mxu0 %v2626
        %2650 = vmatmul.bf16.gmra.mxu0 %v2574
        %v2651 = vpop.f32.mrf.mxu0
        %v2652 = vadd.f32 0.0, %v2651
        %v2653 = vpop.f32.mrf.mxu0
        %v2654 = vadd.f32 0.0, %v2653
        %2655 = vmatmul.bf16.gmra.mxu0 %v2575
        %v2656 = vpop.f32.mrf.mxu0
        %v2657 = vadd.f32 0.0, %v2656
        %v2658 = vpop.f32.mrf.mxu0
        %v2659 = vadd.f32 0.0, %v2658
        %2660 = vmatmul.bf16.gmra.mxu0 %v2576
        %v2661 = vpop.f32.mrf.mxu0
        %v2662 = vadd.f32 0.0, %v2661
        %v2663 = vpop.f32.mrf.mxu0
        %v2664 = vadd.f32 0.0, %v2663
        %2665 = vmatmul.bf16.gmra.mxu0 %v2577
        %v2666 = vpop.f32.mrf.mxu0
        %v2667 = vadd.f32 0.0, %v2666
        %v2668 = vpop.f32.mrf.mxu0
        %v2669 = vadd.f32 0.0, %v2668
        %2670 = vdwg.mxu0
        %vm2671 = vcmp.gt.f32.partialorder %v2652, 5.0
        %vm2672 = vcmp.gt.f32.partialorder %v2654, 5.0
        %vm2673 = vcmp.gt.f32.partialorder %v2657, 5.0
        %vm2674 = vcmp.gt.f32.partialorder %v2659, 5.0
        %vm2675 = vcmp.gt.f32.partialorder %v2662, 5.0
        %vm2676 = vcmp.gt.f32.partialorder %v2664, 5.0
        %vm2677 = vcmp.gt.f32.partialorder %v2667, 5.0
        %vm2678 = vcmp.gt.f32.partialorder %v2669, 5.0
        %v2679 = vmin.f32 %v2652, 5.0
        %v2680 = vmin.f32 %v2654, 5.0
        %v2681 = vmin.f32 %v2657, 5.0
        %v2682 = vmin.f32 %v2659, 5.0
        %v2683 = vmin.f32 %v2662, 5.0
        %v2684 = vmin.f32 %v2664, 5.0
        %v2685 = vmin.f32 %v2667, 5.0
        %v2686 = vmin.f32 %v2669, 5.0
        %v2687 = vmul.f32 %v2679, 1.442695
        %v2688 = vpow.pop %v2687
        %v2689 = vmul.f32 %v2680, 1.442695
        %v2690 = vpow.pop %v2689
        %v2691 = vmul.f32 %v2681, 1.442695
        %v2692 = vpow.pop %v2691
        %v2693 = vmul.f32 %v2682, 1.442695
        %v2694 = vpow.pop %v2693
        %v2695 = vmul.f32 %v2683, 1.442695
        %v2696 = vpow.pop %v2695
        %v2697 = vmul.f32 %v2684, 1.442695
        %v2698 = vpow.pop %v2697
        %v2699 = vmul.f32 %v2685, 1.442695
        %v2700 = vpow.pop %v2699
        %v2701 = vmul.f32 %v2686, 1.442695
        %v2702 = vpow.pop %v2701
        %v2703 = vadd.f32 %v2688, 1.0
        %v2704 = vlog2.pop %v2703
        %v2705 = vmul.f32 %v2704, 0.6931472
        %v2706 = vmul.f32 -0.5, %v2688
        %v2707 = vadd.f32 %v2706, 1.0
        %v2708 = vmul.f32 %v2707, %v2688
        %v2709 = vand.u32 2147483647, %v2688
        %vm2710 = vcmp.lt.f32.partialorder %v2709, 0.0004427343
        %v2711 = vsel %vm2710, %v2708, %v2705
        %v2712 = vadd.f32 %v2690, 1.0
        %v2713 = vlog2.pop %v2712
        %v2714 = vmul.f32 %v2713, 0.6931472
        %v2715 = vmul.f32 -0.5, %v2690
        %v2716 = vadd.f32 %v2715, 1.0
        %v2717 = vmul.f32 %v2716, %v2690
        %v2718 = vand.u32 2147483647, %v2690
        %vm2719 = vcmp.lt.f32.partialorder %v2718, 0.0004427343
        %v2720 = vsel %vm2719, %v2717, %v2714
        %v2721 = vadd.f32 %v2692, 1.0
        %v2722 = vlog2.pop %v2721
        %v2723 = vmul.f32 %v2722, 0.6931472
        %v2724 = vmul.f32 -0.5, %v2692
        %v2725 = vadd.f32 %v2724, 1.0
        %v2726 = vmul.f32 %v2725, %v2692
        %v2727 = vand.u32 2147483647, %v2692
        %vm2728 = vcmp.lt.f32.partialorder %v2727, 0.0004427343
        %v2729 = vsel %vm2728, %v2726, %v2723
        %v2730 = vadd.f32 %v2694, 1.0
        %v2731 = vlog2.pop %v2730
        %v2732 = vmul.f32 %v2731, 0.6931472
        %v2733 = vmul.f32 -0.5, %v2694
        %v2734 = vadd.f32 %v2733, 1.0
        %v2735 = vmul.f32 %v2734, %v2694
        %v2736 = vand.u32 2147483647, %v2694
        %vm2737 = vcmp.lt.f32.partialorder %v2736, 0.0004427343
        %v2738 = vsel %vm2737, %v2735, %v2732
        %v2739 = vadd.f32 %v2696, 1.0
        %v2740 = vlog2.pop %v2739
        %v2741 = vmul.f32 %v2740, 0.6931472
        %v2742 = vmul.f32 -0.5, %v2696
        %v2743 = vadd.f32 %v2742, 1.0
        %v2744 = vmul.f32 %v2743, %v2696
        %v2745 = vand.u32 2147483647, %v2696
        %vm2746 = vcmp.lt.f32.partialorder %v2745, 0.0004427343
        %v2747 = vsel %vm2746, %v2744, %v2741
        %v2748 = vadd.f32 %v2698, 1.0
        %v2749 = vlog2.pop %v2748
        %v2750 = vmul.f32 %v2749, 0.6931472
        %v2751 = vmul.f32 -0.5, %v2698
        %v2752 = vadd.f32 %v2751, 1.0
        %v2753 = vmul.f32 %v2752, %v2698
        %v2754 = vand.u32 2147483647, %v2698
        %vm2755 = vcmp.lt.f32.partialorder %v2754, 0.0004427343
        %v2756 = vsel %vm2755, %v2753, %v2750
        %v2757 = vadd.f32 %v2700, 1.0
        %v2758 = vlog2.pop %v2757
        %v2759 = vmul.f32 %v2758, 0.6931472
        %v2760 = vmul.f32 -0.5, %v2700
        %v2761 = vadd.f32 %v2760, 1.0
        %v2762 = vmul.f32 %v2761, %v2700
        %v2763 = vand.u32 2147483647, %v2700
        %vm2764 = vcmp.lt.f32.partialorder %v2763, 0.0004427343
        %v2765 = vsel %vm2764, %v2762, %v2759
        %v2766 = vadd.f32 %v2702, 1.0
        %v2767 = vlog2.pop %v2766
        %v2768 = vmul.f32 %v2767, 0.6931472
        %v2769 = vmul.f32 -0.5, %v2702
        %v2770 = vadd.f32 %v2769, 1.0
        %v2771 = vmul.f32 %v2770, %v2702
        %v2772 = vand.u32 2147483647, %v2702
        %vm2773 = vcmp.lt.f32.partialorder %v2772, 0.0004427343
        %v2774 = vsel %vm2773, %v2771, %v2768
        %v2775 = vsel %vm2671, %v2652, %v2711
        %v2776 = vsel %vm2672, %v2654, %v2720
        %v2777 = vsel %vm2673, %v2657, %v2729
        %v2778 = vsel %vm2674, %v2659, %v2738
        %v2779 = vsel %vm2675, %v2662, %v2747
        %v2780 = vsel %vm2676, %v2664, %v2756
        %v2781 = vsel %vm2677, %v2667, %v2765
        %v2782 = vsel %vm2678, %v2669, %v2774
        %v2783 = vpack.c.bf16 %v2776, %v2775
        %v2784 = vpack.c.bf16 %v2778, %v2777
        %v2785 = vpack.c.bf16 %v2780, %v2779
        %v2786 = vpack.c.bf16 %v2782, %v2781
        %v2787 = vld [vmem:[#allocation10] sm:$0xf]
        %v2788 = vld [vmem:[#allocation10 + $0x4] sm:$0xf]
        %v2789 = vld [vmem:[#allocation10 + $0x8] sm:$0xf]
        %v2790 = vld [vmem:[#allocation10 + $0xc] sm:$0xf]
        %v2791 = vld [vmem:[#allocation10 + $0x10] sm:$0xf]
        %v2792 = vld [vmem:[#allocation10 + $0x14] sm:$0xf]
        %v2793 = vld [vmem:[#allocation10 + $0x18] sm:$0xf]
        %v2794 = vld [vmem:[#allocation10 + $0x1c] sm:$0xf]
        %v2795 = vld [vmem:[#allocation10 + $0x20] sm:$0xf]
        %v2796 = vld [vmem:[#allocation10 + $0x24] sm:$0xf]
        %v2797 = vld [vmem:[#allocation10 + $0x28] sm:$0xf]
        %v2798 = vld [vmem:[#allocation10 + $0x2c] sm:$0xf]
        %v2799 = vld [vmem:[#allocation10 + $0x30] sm:$0xf]
        %v2800 = vld [vmem:[#allocation10 + $0x34] sm:$0xf]
        %v2801 = vld [vmem:[#allocation10 + $0x38] sm:$0xf]
        %v2802 = vld [vmem:[#allocation10 + $0x3c] sm:$0xf]
        %v2819 = vunpack.c.l.b16 %v2787
        %v2820 = vunpack.c.l.b16 %v2788
        %v2821 = vunpack.c.l.b16 %v2789
        %v2822 = vunpack.c.l.b16 %v2790
        %v2823 = vunpack.c.l.b16 %v2791
        %v2824 = vunpack.c.l.b16 %v2792
        %v2825 = vunpack.c.l.b16 %v2793
        %v2826 = vunpack.c.l.b16 %v2794
        %v2827 = vunpack.c.l.b16 %v2795
        %v2828 = vunpack.c.l.b16 %v2796
        %v2829 = vunpack.c.l.b16 %v2797
        %v2830 = vunpack.c.l.b16 %v2798
        %v2831 = vunpack.c.l.b16 %v2799
        %v2832 = vunpack.c.l.b16 %v2800
        %v2833 = vunpack.c.l.b16 %v2801
        %v2834 = vunpack.c.l.b16 %v2802
        %v2835 = vpack.c.b16 %v2820, %v2819
        %v2836 = vpack.c.b16 %v2822, %v2821
        %v2837 = vpack.c.b16 %v2824, %v2823
        %v2838 = vpack.c.b16 %v2826, %v2825
        %v2839 = vpack.c.b16 %v2828, %v2827
        %v2840 = vpack.c.b16 %v2830, %v2829
        %v2841 = vpack.c.b16 %v2832, %v2831
        %v2842 = vpack.c.b16 %v2834, %v2833
        %2851 = vmatpush.bf16.msra.mxu0 %v2842
        %2852 = vmatpush.bf16.msra.mxu0 %v2841
        %2853 = vmatpush.bf16.msra.mxu0 %v2840
        %2854 = vmatpush.bf16.msra.mxu0 %v2839
        %2855 = vmatpush.bf16.msra.mxu0 %v2838
        %2856 = vmatpush.bf16.msra.mxu0 %v2837
        %2857 = vmatpush.bf16.msra.mxu0 %v2836
        %2858 = vmatpush.bf16.msra.mxu0 %v2835
        %2859 = vmatmul.bf16.gmra.mxu0 %v2783
        %v2860 = vpop.f32.mrf.mxu0
        %v2861 = vadd.f32 0.0, %v2860
        %v2862 = vpop.f32.mrf.mxu0
        %v2863 = vadd.f32 0.0, %v2862
        %2864 = vmatmul.bf16.gmra.mxu0 %v2784
        %v2865 = vpop.f32.mrf.mxu0
        %v2866 = vadd.f32 0.0, %v2865
        %v2867 = vpop.f32.mrf.mxu0
        %v2868 = vadd.f32 0.0, %v2867
        %2869 = vmatmul.bf16.gmra.mxu0 %v2785
        %v2870 = vpop.f32.mrf.mxu0
        %v2871 = vadd.f32 0.0, %v2870
        %v2872 = vpop.f32.mrf.mxu0
        %v2873 = vadd.f32 0.0, %v2872
        %2874 = vmatmul.bf16.gmra.mxu0 %v2786
        %v2875 = vpop.f32.mrf.mxu0
        %v2876 = vadd.f32 0.0, %v2875
        %v2877 = vpop.f32.mrf.mxu0
        %v2878 = vadd.f32 0.0, %v2877
        %2879 = vdwg.mxu0
        %vm2880 = vcmp.gt.f32.partialorder %v2861, 5.0
        %vm2881 = vcmp.gt.f32.partialorder %v2863, 5.0
        %vm2882 = vcmp.gt.f32.partialorder %v2866, 5.0
        %vm2883 = vcmp.gt.f32.partialorder %v2868, 5.0
        %vm2884 = vcmp.gt.f32.partialorder %v2871, 5.0
        %vm2885 = vcmp.gt.f32.partialorder %v2873, 5.0
        %vm2886 = vcmp.gt.f32.partialorder %v2876, 5.0
        %vm2887 = vcmp.gt.f32.partialorder %v2878, 5.0
        %v2888 = vmin.f32 %v2861, 5.0
        %v2889 = vmin.f32 %v2863, 5.0
        %v2890 = vmin.f32 %v2866, 5.0
        %v2891 = vmin.f32 %v2868, 5.0
        %v2892 = vmin.f32 %v2871, 5.0
        %v2893 = vmin.f32 %v2873, 5.0
        %v2894 = vmin.f32 %v2876, 5.0
        %v2895 = vmin.f32 %v2878, 5.0
        %v2896 = vmul.f32 %v2888, 1.442695
        %v2897 = vpow.pop %v2896
        %v2898 = vmul.f32 %v2889, 1.442695
        %v2899 = vpow.pop %v2898
        %v2900 = vmul.f32 %v2890, 1.442695
        %v2901 = vpow.pop %v2900
        %v2902 = vmul.f32 %v2891, 1.442695
        %v2903 = vpow.pop %v2902
        %v2904 = vmul.f32 %v2892, 1.442695
        %v2905 = vpow.pop %v2904
        %v2906 = vmul.f32 %v2893, 1.442695
        %v2907 = vpow.pop %v2906
        %v2908 = vmul.f32 %v2894, 1.442695
        %v2909 = vpow.pop %v2908
        %v2910 = vmul.f32 %v2895, 1.442695
        %v2911 = vpow.pop %v2910
        %v2912 = vadd.f32 %v2897, 1.0
        %v2913 = vlog2.pop %v2912
        %v2914 = vmul.f32 %v2913, 0.6931472
        %v2915 = vmul.f32 -0.5, %v2897
        %v2916 = vadd.f32 %v2915, 1.0
        %v2917 = vmul.f32 %v2916, %v2897
        %v2918 = vand.u32 2147483647, %v2897
        %vm2919 = vcmp.lt.f32.partialorder %v2918, 0.0004427343
        %v2920 = vsel %vm2919, %v2917, %v2914
        %v2921 = vadd.f32 %v2899, 1.0
        %v2922 = vlog2.pop %v2921
        %v2923 = vmul.f32 %v2922, 0.6931472
        %v2924 = vmul.f32 -0.5, %v2899
        %v2925 = vadd.f32 %v2924, 1.0
        %v2926 = vmul.f32 %v2925, %v2899
        %v2927 = vand.u32 2147483647, %v2899
        %vm2928 = vcmp.lt.f32.partialorder %v2927, 0.0004427343
        %v2929 = vsel %vm2928, %v2926, %v2923
        %v2930 = vadd.f32 %v2901, 1.0
        %v2931 = vlog2.pop %v2930
        %v2932 = vmul.f32 %v2931, 0.6931472
        %v2933 = vmul.f32 -0.5, %v2901
        %v2934 = vadd.f32 %v2933, 1.0
        %v2935 = vmul.f32 %v2934, %v2901
        %v2936 = vand.u32 2147483647, %v2901
        %vm2937 = vcmp.lt.f32.partialorder %v2936, 0.0004427343
        %v2938 = vsel %vm2937, %v2935, %v2932
        %v2939 = vadd.f32 %v2903, 1.0
        %v2940 = vlog2.pop %v2939
        %v2941 = vmul.f32 %v2940, 0.6931472
        %v2942 = vmul.f32 -0.5, %v2903
        %v2943 = vadd.f32 %v2942, 1.0
        %v2944 = vmul.f32 %v2943, %v2903
        %v2945 = vand.u32 2147483647, %v2903
        %vm2946 = vcmp.lt.f32.partialorder %v2945, 0.0004427343
        %v2947 = vsel %vm2946, %v2944, %v2941
        %v2948 = vadd.f32 %v2905, 1.0
        %v2949 = vlog2.pop %v2948
        %v2950 = vmul.f32 %v2949, 0.6931472
        %v2951 = vmul.f32 -0.5, %v2905
        %v2952 = vadd.f32 %v2951, 1.0
        %v2953 = vmul.f32 %v2952, %v2905
        %v2954 = vand.u32 2147483647, %v2905
        %vm2955 = vcmp.lt.f32.partialorder %v2954, 0.0004427343
        %v2956 = vsel %vm2955, %v2953, %v2950
        %v2957 = vadd.f32 %v2907, 1.0
        %v2958 = vlog2.pop %v2957
        %v2959 = vmul.f32 %v2958, 0.6931472
        %v2960 = vmul.f32 -0.5, %v2907
        %v2961 = vadd.f32 %v2960, 1.0
        %v2962 = vmul.f32 %v2961, %v2907
        %v2963 = vand.u32 2147483647, %v2907
        %vm2964 = vcmp.lt.f32.partialorder %v2963, 0.0004427343
        %v2965 = vsel %vm2964, %v2962, %v2959
        %v2966 = vadd.f32 %v2909, 1.0
        %v2967 = vlog2.pop %v2966
        %v2968 = vmul.f32 %v2967, 0.6931472
        %v2969 = vmul.f32 -0.5, %v2909
        %v2970 = vadd.f32 %v2969, 1.0
        %v2971 = vmul.f32 %v2970, %v2909
        %v2972 = vand.u32 2147483647, %v2909
        %vm2973 = vcmp.lt.f32.partialorder %v2972, 0.0004427343
        %v2974 = vsel %vm2973, %v2971, %v2968
        %v2975 = vadd.f32 %v2911, 1.0
        %v2976 = vlog2.pop %v2975
        %v2977 = vmul.f32 %v2976, 0.6931472
        %v2978 = vmul.f32 -0.5, %v2911
        %v2979 = vadd.f32 %v2978, 1.0
        %v2980 = vmul.f32 %v2979, %v2911
        %v2981 = vand.u32 2147483647, %v2911
        %vm2982 = vcmp.lt.f32.partialorder %v2981, 0.0004427343
        %v2983 = vsel %vm2982, %v2980, %v2977
        %v2984 = vsel %vm2880, %v2861, %v2920
        %v2985 = vsel %vm2881, %v2863, %v2929
        %v2986 = vsel %vm2882, %v2866, %v2938
        %v2987 = vsel %vm2883, %v2868, %v2947
        %v2988 = vsel %vm2884, %v2871, %v2956
        %v2989 = vsel %vm2885, %v2873, %v2965
        %v2990 = vsel %vm2886, %v2876, %v2974
        %v2991 = vsel %vm2887, %v2878, %v2983
        %s2992 = scalar_lea.vmem %s397, 64 [#allocation14]
        %2993 = vst [vmem:[%s2992] sm:$0xff] %v2984
        %2994 = vst [vmem:[%s2992 + $0x8] sm:$0xff] %v2985
        %2995 = vst [vmem:[%s2992 + $0x10] sm:$0xff] %v2986
        %2996 = vst [vmem:[%s2992 + $0x18] sm:$0xff] %v2987
        %2997 = vst [vmem:[%s2992 + $0x20] sm:$0xff] %v2988
        %2998 = vst [vmem:[%s2992 + $0x28] sm:$0xff] %v2989
        %2999 = vst [vmem:[%s2992 + $0x30] sm:$0xff] %v2990
        %3000 = vst [vmem:[%s2992 + $0x38] sm:$0xff] %v2991
        %s3001 = sand.u32 %s187, 1
        %s3002 = scalar_lea.sflag [#allocation4], %s3001
        %s3003 = sand.u32 %s187, 1
        %s3004 = smul.addr %s3003, 128
        %s3005 = scalar_lea.vmem [#allocation14], %s3004
        // Predicated region
        $region77: #{tpu_custom_call.1} parent=47 // pred_check
          %p3006 = pneg %p197
        $region78: #{tpu_custom_call.1} parent=47 // pred_check_branch
          %3008 = sbr.rel (%p3006) target = $region80
        $region79: #{tpu_custom_call.1} parent=47 // pred_region
          %s3009 = smul.u32 16, %s27
          %3011 = vsyncadd %s3002, 0
          %s3012 = smul.addr %s3009, 8
          %s3013 = scalar_lea.hbm %s7, %s3012
          %s3014 = sshll.u32 %s3005, 4
          %s3015 = int_to_ptr.vmem [resolvable:$true] %s3014
          %s3016 = sshll.u32 %s3013, 4
          %s3017 = int_to_ptr.hbm [resolvable:$true] %s3016
          %3022 = dma.vmem_to_hbm [thread:$0]  %s3015, 2048, %s3017, %s3002, 128, 128, 8
        $region80: #{tpu_custom_call.1} parent=47 // pred_fallthru
          _
      $region48: #{tpu_custom_call.1} parent=5 // pred_fallthru
        _
      %p3023 = scmp.le.s32.totalorder 2, %s22
      // Predicated region
      $region81: #{tpu_custom_call.1} parent=5 // pred_check
        %p3024 = pneg %p3023
      $region82: #{tpu_custom_call.1} parent=5 // pred_check_branch
        %3026 = sbr.rel (%p3024) target = $region84
      $region83: #{tpu_custom_call.1} parent=5 // pred_region
        %s3027 = ssub.s32 %s22, 2
        // Predicated region
        $region85: #{tpu_custom_call.1} parent=83 // pred_check
          %p3028 = pneg %p203
        $region86: #{tpu_custom_call.1} parent=83 // pred_check_branch
          %3030 = sbr.rel (%p3028) target = $region88
        $region87: #{tpu_custom_call.1} parent=83 // pred_region
          %s3031 = sand.u32 %s188, 1
          %s3032 = scalar_lea.sflag [#allocation4], %s3031
          %s3033 = sand.u32 %s188, 1
          %s3034 = smul.addr %s3033, 128
          %s3035 = scalar_lea.vmem [#allocation14], %s3034
          %3037 = dma.done %s3032, 2048
        $region88: #{tpu_custom_call.1} parent=83 // pred_fallthru
          _
      $region84: #{tpu_custom_call.1} parent=5 // pred_fallthru
        _
    $region6: #{tpu_custom_call.1} parent=1 // loop_footer
      %s26 = sadd.s32 1, %s22
    $region7: #{tpu_custom_call.1} parent=1 // loop_footer_branch
      %21 = sbr.rel target = $region3
    $region8: #{tpu_custom_call.1} parent=1 // loop_exit
      _
    %3038 = vsyncpa [#allocation3], 1
    %s3039 = scalar_lea.sflag [#allocation3], 1
    %3040 = vsyncpa %s3039, 1
    %3041 = vsyncpa [#allocation6], 1
    %3042 = vsyncpa [#allocation9], 1
    %3043 = vsyncpa [#allocation12], 1
    %3044 = vsyncpa [#allocation4], 1
    %s3045 = scalar_lea.sflag [#allocation4], 1
    %3046 = vsyncpa %s3045, 1

</llo_original>
